<compile_context>
chip_gen: v6e
topology: v6e:2x2x1
jax: 0.10.0
libtpu: 0.0.40
codegen_flags: <defaults>
</compile_context>

<pallas_src>
import jax
import jax.numpy as jnp
from jax.experimental import pallas as pl
from jax.experimental.pallas import tpu as pltpu


# ----------------------------- Pallas kernels -----------------------------

def _conv1_pool_kernel(cols_ref, w_ref, b_ref, o_ref):
    """Fused conv1 + bias + ReLU + 2x2 maxpool for one batch element.

    cols_ref : (1, 4, 256, 100) bf16   4 = pool offsets (ph,pw), 256 = Cin*8*8,
                                       100 = pooled spatial positions (10x10)
    w_ref    : (32, 256) bf16          conv1 weight, K ordered (cin, kh, kw)
    b_ref    : (32, 1)  f32
    o_ref    : (1, 32, 100) bf16
    """
    w = w_ref[...]
    acc = jnp.dot(w, cols_ref[0, 0], preferred_element_type=jnp.float32)
    for d in range(1, 4):  # max over the 4 pool offsets (bias/ReLU commute)
        acc = jnp.maximum(
            acc, jnp.dot(w, cols_ref[0, d], preferred_element_type=jnp.float32))
    o_ref[0] = jnp.maximum(acc + b_ref[...], 0.0).astype(o_ref.dtype)


def _conv_relu_kernel(cols_ref, w_ref, b_ref, o_ref):
    """Generic conv-as-matmul + bias + ReLU (channels-first) for one batch.

    cols_ref : (1, K, S) bf16,  w_ref : (Cout, K) bf16,  b_ref : (Cout, 1) f32
    o_ref    : (1, Cout, S) bf16
    """
    acc = jnp.dot(w_ref[...], cols_ref[0], preferred_element_type=jnp.float32)
    o_ref[0] = jnp.maximum(acc + b_ref[...], 0.0).astype(o_ref.dtype)


def _fc_head_kernel(x_ref, w1_ref, b1_ref, w2_ref, b2_ref, o_ref):
    """Fused fc1 + ReLU + out.

    x_ref : (B, 1600) bf16, w1_ref : (1600, 256) bf16, b1_ref : (1, 256) f32
    w2_ref: (256, 5) f32,   b2_ref : (1, 5) f32,       o_ref  : (B, 5) f32
    """
    h = jnp.dot(x_ref[...], w1_ref[...], preferred_element_type=jnp.float32)
    h = jnp.maximum(h + b1_ref[...], 0.0)
    o_ref[...] = (jnp.dot(h, w2_ref[...], preferred_element_type=jnp.float32)
                  + b2_ref[...]).astype(o_ref.dtype)


# ------------------------------ Kernel wrappers -----------------------------

def conv1_pool(cols, w, b):
    """cols: (B, 4, 256, 100) bf16 -> (B, 32, 100) bf16."""
    B = cols.shape[0]
    return pl.pallas_call(
        _conv1_pool_kernel,
        out_shape=jax.ShapeDtypeStruct((B, 32, 100), jnp.bfloat16),
        grid=(B,),
        in_specs=[
            pl.BlockSpec((1, 4, 256, 100), lambda i: (i, 0, 0, 0)),
            pl.BlockSpec((32, 256), lambda i: (0, 0)),   # weight resident
            pl.BlockSpec((32, 1), lambda i: (0, 0)),
        ],
        out_specs=pl.BlockSpec((1, 32, 100), lambda i: (i, 0, 0)),
        compiler_params=pltpu.CompilerParams(
            dimension_semantics=("parallel",)),          # v7x megacore
    )(cols, w, b)


def conv_relu(cols, w, b):
    """cols: (B, K, S) bf16, w: (Cout, K) bf16, b: (Cout, 1) -> (B, Cout, S)."""
    B, K, S = cols.shape
    Cout = w.shape[0]
    return pl.pallas_call(
        _conv_relu_kernel,
        out_shape=jax.ShapeDtypeStruct((B, Cout, S), jnp.bfloat16),
        grid=(B,),
        in_specs=[
            pl.BlockSpec((1, K, S), lambda i: (i, 0, 0)),
            pl.BlockSpec((Cout, K), lambda i: (0, 0)),
            pl.BlockSpec((Cout, 1), lambda i: (0, 0)),
        ],
        out_specs=pl.BlockSpec((1, Cout, S), lambda i: (i, 0, 0)),
        compiler_params=pltpu.CompilerParams(
            dimension_semantics=("parallel",)),
    )(cols, w, b)


def fc_head(x, w1, b1, w2, b2):
    """x: (B, 1600) bf16 -> (B, 5) f32   (fc1 + ReLU + out fused)."""
    B, K = x.shape
    N1 = w1.shape[1]
    N2 = w2.shape[1]
    return pl.pallas_call(
        _fc_head_kernel,
        out_shape=jax.ShapeDtypeStruct((B, N2), jnp.float32),
        grid=(1,),
        in_specs=[
            pl.BlockSpec((B, K), lambda i: (0, 0)),
            pl.BlockSpec((K, N1), lambda i: (0, 0)),
            pl.BlockSpec((1, N1), lambda i: (0, 0)),
            pl.BlockSpec((N1, N2), lambda i: (0, 0)),
            pl.BlockSpec((1, N2), lambda i: (0, 0)),
        ],
        out_specs=pl.BlockSpec((B, N2), lambda i: (0, 0)),
        compiler_params=pltpu.CompilerParams(
            dimension_semantics=("arbitrary",)),
    )(x, w1, b1, w2, b2)


# ------------------------------- Glue (JAX) --------------------------------

def im2col_cf(x, kh, kw, stride, pad):
    """Channels-first im2col. x: (B, C, H, W) -> (B, C*kh*kw, OH*OW).

    K ordered (c, kh, kw) to match W.reshape(Cout, -1); columns ordered (oh, ow).
    """
    B, C, H, W = x.shape
    xp = jnp.pad(x, ((0, 0), (0, 0), (pad, pad), (pad, pad)))
    OH = (H + 2 * pad - kh) // stride + 1
    OW = (W + 2 * pad - kw) // stride + 1
    pats = []
    for dh in range(kh):
        for dw in range(kw):
            pats.append(
                xp[:, :, dh:dh + stride * OH:stride, dw:dw + stride * OW:stride])
    p = jnp.stack(pats, axis=2)                      # (B, C, kh*kw, OH, OW)
    return p.reshape(B, C * kh * kw, OH * OW)


def im2col_conv1_pooled(x):
    """conv1 im2col with columns grouped by 2x2 pool offset.

    x: (B, 4, 80, 80) f32 -> (B, 4, 256, 100) bf16
       axis1 = pool offset d = ph*2+pw,  axis2 = (cin, kh, kw),
       axis3 = pooled spatial position (oh', ow') row-major (10x10).
    """
    B = x.shape[0]
    xp = jnp.pad(x, ((0, 0), (0, 0), (2, 2), (2, 2)))        # pad=2 -> (B,4,84,84)
    pats = []
    for dh in range(8):
        for dw in range(8):
            pats.append(xp[:, :, dh:dh + 4 * 20:4, dw:dw + 4 * 20:4])  # (B,4,20,20)
    p = jnp.stack(pats, axis=2)                     # (B, Ci=4, KK=64, 20, 20)
    p = p.reshape(B, 4, 64, 10, 2, 10, 2)           # (B, Ci, KK, oh', ph, ow', pw)
    p = p.transpose(0, 4, 6, 1, 2, 3, 5)            # (B, ph, pw, Ci, KK, oh', ow')
    return p.reshape(B, 4, 256, 100).astype(jnp.bfloat16)


# --------------------------- Parameters (synthetic) --------------------------

def _uniform(key, shape, fan_in):
    bound = 1.0 / (fan_in ** 0.5)  # PyTorch default-style init
    return jax.random.uniform(key, shape, jnp.float32, -bound, bound)


def init_params(key):
    """Synthetic params in PyTorch layouts: conv (Cout,Cin,KH,KW), linear (out,in)."""
    ks = jax.random.split(key, 10)
    return {
        "w1": _uniform(ks[0], (32, 4, 8, 8), 4 * 8 * 8),
        "b1": _uniform(ks[1], (32,), 4 * 8 * 8),
        "w2": _uniform(ks[2], (64, 32, 4, 4), 32 * 4 * 4),
        "b2": _uniform(ks[3], (64,), 32 * 4 * 4),
        "w3": _uniform(ks[4], (64, 64, 3, 3), 64 * 3 * 3),
        "b3": _uniform(ks[5], (64,), 64 * 3 * 3),
        "wfc1": _uniform(ks[6], (256, 1600), 1600),
        "bfc1": _uniform(ks[7], (256,), 1600),
        "wout": _uniform(ks[8], (5, 256), 256),
        "bout": _uniform(ks[9], (5,), 256),
    }


def prepare_params(p):
    """One-time layout conversion (outside jit): no per-call weight transposes."""
    bf16, f32 = jnp.bfloat16, jnp.float32
    return {
        "w1": p["w1"].reshape(32, 4 * 8 * 8).astype(bf16),     # (Cout, Cin*KH*KW)
        "b1": p["b1"].reshape(32, 1).astype(f32),
        "w2": p["w2"].reshape(64, 32 * 4 * 4).astype(bf16),
        "b2": p["b2"].reshape(64, 1).astype(f32),
        "w3": p["w3"].reshape(64, 64 * 3 * 3).astype(bf16),
        "b3": p["b3"].reshape(64, 1).astype(f32),
        "wfc1": p["wfc1"].T.astype(bf16),                      # (1600, 256)
        "bfc1": p["bfc1"].reshape(1, 256).astype(f32),
        "wout": p["wout"].T.astype(f32),                       # (256, 5)
        "bout": p["bout"].reshape(1, 5).astype(f32),
    }


# --------------------------------- Forward ----------------------------------

def deep_network_forward(x_nchw, kp):
    """x_nchw: (B, 4, 80, 80) f32, kp: prepare_params(...) -> (B, 5) f32."""
    B = x_nchw.shape[0]

    # conv1 + ReLU + 2x2 maxpool (single fused kernel, grid over batch)
    cols1 = im2col_conv1_pooled(x_nchw)                   # (B, 4, 256, 100) bf16
    a1 = conv1_pool(cols1, kp["w1"], kp["b1"])            # (B, 32, 100) bf16

    # conv2 + ReLU
    cols2 = im2col_cf(a1.reshape(B, 32, 10, 10), 4, 4, 2, 1)   # (B, 512, 25)
    a2 = conv_relu(cols2, kp["w2"], kp["b2"])             # (B, 64, 25) bf16

    # conv3 + ReLU
    # TODO(synk): fusing conv2+conv3 into one kernel would need in-kernel
    # im2col of the intermediate activation (lane/sublane relayouts); kept as
    # two tiny pipelined kernels instead.
    cols3 = im2col_cf(a2.reshape(B, 64, 5, 5), 3, 3, 1, 1)     # (B, 576, 25)
    a3 = conv_relu(cols3, kp["w3"], kp["b3"])             # (B, 64, 25) bf16

    # Channels-first layout => this reshape IS PyTorch's NCHW x.view(B, -1).
    x = a3.reshape(B, 1600)

    # fc1 + ReLU + out (fused)
    return fc_head(x, kp["wfc1"], kp["bfc1"], kp["wout"], kp["bout"])  # (B, 5)


if __name__ == "__main__":
    key = jax.random.PRNGKey(0)
    pkey, xkey = jax.random.split(key)
    params = prepare_params(init_params(pkey))   # layout prep once, outside jit
    # 80x80 input is implied by fc1 expecting 1600 = 64*5*5 features.
    x = jax.random.uniform(xkey, (2, 4, 80, 80), jnp.float32)

    out = jax.jit(deep_network_forward)(x, params)
    out = jax.block_until_ready(out)
    assert out.shape == (2, 5) and out.dtype == jnp.float32
    print("KERNEL_OK")
</pallas_src>

<mosaic_0001>
module attributes {stable_mosaic.version = 11 : i64} {
  func.func @_conv1_pool_kernel(%arg0: i32, %arg1: memref<1x4x256x100xbf16, #tpu.memory_space<vmem>>, %arg2: memref<32x256xbf16, #tpu.memory_space<vmem>>, %arg3: memref<32x1xf32, #tpu.memory_space<vmem>>, %arg4: memref<1x32x100xbf16, #tpu.memory_space<vmem>>) attributes {dimension_semantics = [#tpu.dimension_semantics<parallel>], iteration_bounds = array<i64: 2>, scalar_prefetch = 0 : i64, scratch_operands = 0 : i64, tpu.core_type = #tpu.core_type<tc>, window_params = [{transform_indices = @transform_0, window_bounds = array<i64: 1, 4, 256, 100>}, {pipeline_mode = #tpu.pipeline_mode<synchronous>, transform_indices = @transform_1, window_bounds = array<i64: 32, 256>}, {pipeline_mode = #tpu.pipeline_mode<synchronous>, transform_indices = @transform_2, window_bounds = array<i64: 32, 1>}, {transform_indices = @transform_3, window_bounds = array<i64: 1, 32, 100>}]} {
    %c0 = arith.constant 0 : index
    %c0_0 = arith.constant 0 : index
    %0 = vector.load %arg2[%c0, %c0_0] : memref<32x256xbf16, #tpu.memory_space<vmem>>, vector<32x256xbf16>
    %c0_1 = arith.constant 0 : index
    %c0_2 = arith.constant 0 : index
    %c0_3 = arith.constant 0 : index
    %c0_4 = arith.constant 0 : index
    %1 = vector.load %arg1[%c0_1, %c0_2, %c0_3, %c0_4] : memref<1x4x256x100xbf16, #tpu.memory_space<vmem>>, vector<1x1x256x100xbf16>
    %2 = vector.shape_cast %1 : vector<1x1x256x100xbf16> to vector<256x100xbf16>
    %cst = arith.constant dense<0.000000e+00> : vector<32x100xf32>
    %3 = tpu.matmul %0, %2, %cst {dimension_numbers = #tpu.dot_dimension_numbers<[1], [0], [0], [1], [0, 0, 1, 1], [], []>} : vector<32x256xbf16>, vector<256x100xbf16>, vector<32x100xf32> -> vector<32x100xf32>
    %c0_5 = arith.constant 0 : index
    %c1 = arith.constant 1 : index
    %c0_6 = arith.constant 0 : index
    %c0_7 = arith.constant 0 : index
    %4 = vector.load %arg1[%c0_5, %c1, %c0_6, %c0_7] : memref<1x4x256x100xbf16, #tpu.memory_space<vmem>>, vector<1x1x256x100xbf16>
    %5 = vector.shape_cast %4 : vector<1x1x256x100xbf16> to vector<256x100xbf16>
    %cst_8 = arith.constant dense<0.000000e+00> : vector<32x100xf32>
    %6 = tpu.matmul %0, %5, %cst_8 {dimension_numbers = #tpu.dot_dimension_numbers<[1], [0], [0], [1], [0, 0, 1, 1], [], []>} : vector<32x256xbf16>, vector<256x100xbf16>, vector<32x100xf32> -> vector<32x100xf32>
    %7 = arith.maximumf %3, %6 : vector<32x100xf32>
    %c0_9 = arith.constant 0 : index
    %c2 = arith.constant 2 : index
    %c0_10 = arith.constant 0 : index
    %c0_11 = arith.constant 0 : index
    %8 = vector.load %arg1[%c0_9, %c2, %c0_10, %c0_11] : memref<1x4x256x100xbf16, #tpu.memory_space<vmem>>, vector<1x1x256x100xbf16>
    %9 = vector.shape_cast %8 : vector<1x1x256x100xbf16> to vector<256x100xbf16>
    %cst_12 = arith.constant dense<0.000000e+00> : vector<32x100xf32>
    %10 = tpu.matmul %0, %9, %cst_12 {dimension_numbers = #tpu.dot_dimension_numbers<[1], [0], [0], [1], [0, 0, 1, 1], [], []>} : vector<32x256xbf16>, vector<256x100xbf16>, vector<32x100xf32> -> vector<32x100xf32>
    %11 = arith.maximumf %7, %10 : vector<32x100xf32>
    %c0_13 = arith.constant 0 : index
    %c3 = arith.constant 3 : index
    %c0_14 = arith.constant 0 : index
    %c0_15 = arith.constant 0 : index
    %12 = vector.load %arg1[%c0_13, %c3, %c0_14, %c0_15] : memref<1x4x256x100xbf16, #tpu.memory_space<vmem>>, vector<1x1x256x100xbf16>
    %13 = vector.shape_cast %12 : vector<1x1x256x100xbf16> to vector<256x100xbf16>
    %cst_16 = arith.constant dense<0.000000e+00> : vector<32x100xf32>
    %14 = tpu.matmul %0, %13, %cst_16 {dimension_numbers = #tpu.dot_dimension_numbers<[1], [0], [0], [1], [0, 0, 1, 1], [], []>} : vector<32x256xbf16>, vector<256x100xbf16>, vector<32x100xf32> -> vector<32x100xf32>
    %15 = arith.maximumf %11, %14 : vector<32x100xf32>
    %c0_17 = arith.constant 0 : index
    %c0_18 = arith.constant 0 : index
    %16 = vector.load %arg3[%c0_17, %c0_18] : memref<32x1xf32, #tpu.memory_space<vmem>>, vector<32x1xf32>
    %17 = vector.broadcast %16 : vector<32x1xf32> to vector<32x100xf32>
    %18 = arith.addf %15, %17 : vector<32x100xf32>
    %cst_19 = arith.constant 0.000000e+00 : f32
    %19 = vector.broadcast %cst_19 : f32 to vector<32x100xf32>
    %20 = arith.maximumf %18, %19 : vector<32x100xf32>
    %21 = arith.truncf %20 : vector<32x100xf32> to vector<32x100xbf16>
    %c0_20 = arith.constant 0 : index
    %c0_21 = arith.constant 0 : index
    %c0_22 = arith.constant 0 : index
    %22 = vector.load %arg4[%c0_20, %c0_21, %c0_22] : memref<1x32x100xbf16, #tpu.memory_space<vmem>>, vector<1x32x100xbf16>
    %23 = vector.shape_cast %22 : vector<1x32x100xbf16> to vector<32x100xbf16>
    %24 = vector.shape_cast %21 : vector<32x100xbf16> to vector<1x32x100xbf16>
    tpu.vector_store %arg4[%c0_20, %c0_21, %c0_22], %24 {strides = array<i32>} : memref<1x32x100xbf16, #tpu.memory_space<vmem>>, vector<1x32x100xbf16>,
    return
  }
  func.func @transform_0(%arg0: i32) -> (i32, i32, i32, i32) {
    %c0_i32 = arith.constant 0 : i32
    %c0_i32_0 = arith.constant 0 : i32
    %c0_i32_1 = arith.constant 0 : i32
    %c0_i32_2 = arith.constant 0 : i32
    return %arg0, %c0_i32, %c0_i32_0, %c0_i32_1 : i32, i32, i32, i32
  }
  func.func @transform_1(%arg0: i32) -> (i32, i32) {
    %c0_i32 = arith.constant 0 : i32
    %c0_i32_0 = arith.constant 0 : i32
    %c0_i32_1 = arith.constant 0 : i32
    return %c0_i32, %c0_i32_0 : i32, i32
  }
  func.func @transform_2(%arg0: i32) -> (i32, i32) {
    %c0_i32 = arith.constant 0 : i32
    %c0_i32_0 = arith.constant 0 : i32
    %c0_i32_1 = arith.constant 0 : i32
    return %c0_i32, %c0_i32_0 : i32, i32
  }
  func.func @transform_3(%arg0: i32) -> (i32, i32, i32) {
    %c0_i32 = arith.constant 0 : i32
    %c0_i32_0 = arith.constant 0 : i32
    %c0_i32_1 = arith.constant 0 : i32
    return %arg0, %c0_i32, %c0_i32_0 : i32, i32, i32
  }
}

module attributes {stable_mosaic.version = 11 : i64} {
  func.func @_conv_relu_kernel(%arg0: i32, %arg1: memref<1x512x25xbf16, #tpu.memory_space<vmem>>, %arg2: memref<64x512xbf16, #tpu.memory_space<vmem>>, %arg3: memref<64x1xf32, #tpu.memory_space<vmem>>, %arg4: memref<1x64x25xbf16, #tpu.memory_space<vmem>>) attributes {dimension_semantics = [#tpu.dimension_semantics<parallel>], iteration_bounds = array<i64: 2>, scalar_prefetch = 0 : i64, scratch_operands = 0 : i64, tpu.core_type = #tpu.core_type<tc>, window_params = [{transform_indices = @transform_0, window_bounds = array<i64: 1, 512, 25>}, {pipeline_mode = #tpu.pipeline_mode<synchronous>, transform_indices = @transform_1, window_bounds = array<i64: 64, 512>}, {pipeline_mode = #tpu.pipeline_mode<synchronous>, transform_indices = @transform_2, window_bounds = array<i64: 64, 1>}, {transform_indices = @transform_3, window_bounds = array<i64: 1, 64, 25>}]} {
    %c0 = arith.constant 0 : index
    %c0_0 = arith.constant 0 : index
    %0 = vector.load %arg2[%c0, %c0_0] : memref<64x512xbf16, #tpu.memory_space<vmem>>, vector<64x512xbf16>
    %c0_1 = arith.constant 0 : index
    %c0_2 = arith.constant 0 : index
    %c0_3 = arith.constant 0 : index
    %1 = vector.load %arg1[%c0_1, %c0_2, %c0_3] : memref<1x512x25xbf16, #tpu.memory_space<vmem>>, vector<1x512x25xbf16>
    %2 = vector.shape_cast %1 : vector<1x512x25xbf16> to vector<512x25xbf16>
    %cst = arith.constant dense<0.000000e+00> : vector<64x25xf32>
    %3 = tpu.matmul %0, %2, %cst {dimension_numbers = #tpu.dot_dimension_numbers<[1], [0], [0], [1], [0, 0, 1, 1], [], []>} : vector<64x512xbf16>, vector<512x25xbf16>, vector<64x25xf32> -> vector<64x25xf32>
    %c0_4 = arith.constant 0 : index
    %c0_5 = arith.constant 0 : index
    %4 = vector.load %arg3[%c0_4, %c0_5] : memref<64x1xf32, #tpu.memory_space<vmem>>, vector<64x1xf32>
    %5 = vector.broadcast %4 : vector<64x1xf32> to vector<64x25xf32>
    %6 = arith.addf %3, %5 : vector<64x25xf32>
    %cst_6 = arith.constant 0.000000e+00 : f32
    %7 = vector.broadcast %cst_6 : f32 to vector<64x25xf32>
    %8 = arith.maximumf %6, %7 : vector<64x25xf32>
    %9 = arith.truncf %8 : vector<64x25xf32> to vector<64x25xbf16>
    %c0_7 = arith.constant 0 : index
    %c0_8 = arith.constant 0 : index
    %c0_9 = arith.constant 0 : index
    %10 = vector.load %arg4[%c0_7, %c0_8, %c0_9] : memref<1x64x25xbf16, #tpu.memory_space<vmem>>, vector<1x64x25xbf16>
    %11 = vector.shape_cast %10 : vector<1x64x25xbf16> to vector<64x25xbf16>
    %12 = vector.shape_cast %9 : vector<64x25xbf16> to vector<1x64x25xbf16>
    tpu.vector_store %arg4[%c0_7, %c0_8, %c0_9], %12 {strides = array<i32>} : memref<1x64x25xbf16, #tpu.memory_space<vmem>>, vector<1x64x25xbf16>,
    return
  }
  func.func @transform_0(%arg0: i32) -> (i32, i32, i32) {
    %c0_i32 = arith.constant 0 : i32
    %c0_i32_0 = arith.constant 0 : i32
    %c0_i32_1 = arith.constant 0 : i32
    return %arg0, %c0_i32, %c0_i32_0 : i32, i32, i32
  }
  func.func @transform_1(%arg0: i32) -> (i32, i32) {
    %c0_i32 = arith.constant 0 : i32
    %c0_i32_0 = arith.constant 0 : i32
    %c0_i32_1 = arith.constant 0 : i32
    return %c0_i32, %c0_i32_0 : i32, i32
  }
  func.func @transform_2(%arg0: i32) -> (i32, i32) {
    %c0_i32 = arith.constant 0 : i32
    %c0_i32_0 = arith.constant 0 : i32
    %c0_i32_1 = arith.constant 0 : i32
    return %c0_i32, %c0_i32_0 : i32, i32
  }
  func.func @transform_3(%arg0: i32) -> (i32, i32, i32) {
    %c0_i32 = arith.constant 0 : i32
    %c0_i32_0 = arith.constant 0 : i32
    %c0_i32_1 = arith.constant 0 : i32
    return %arg0, %c0_i32, %c0_i32_0 : i32, i32, i32
  }
}

module attributes {stable_mosaic.version = 11 : i64} {
  func.func @_conv_relu_kernel(%arg0: i32, %arg1: memref<1x576x25xbf16, #tpu.memory_space<vmem>>, %arg2: memref<64x576xbf16, #tpu.memory_space<vmem>>, %arg3: memref<64x1xf32, #tpu.memory_space<vmem>>, %arg4: memref<1x64x25xbf16, #tpu.memory_space<vmem>>) attributes {dimension_semantics = [#tpu.dimension_semantics<parallel>], iteration_bounds = array<i64: 2>, scalar_prefetch = 0 : i64, scratch_operands = 0 : i64, tpu.core_type = #tpu.core_type<tc>, window_params = [{transform_indices = @transform_0, window_bounds = array<i64: 1, 576, 25>}, {pipeline_mode = #tpu.pipeline_mode<synchronous>, transform_indices = @transform_1, window_bounds = array<i64: 64, 576>}, {pipeline_mode = #tpu.pipeline_mode<synchronous>, transform_indices = @transform_2, window_bounds = array<i64: 64, 1>}, {transform_indices = @transform_3, window_bounds = array<i64: 1, 64, 25>}]} {
    %c0 = arith.constant 0 : index
    %c0_0 = arith.constant 0 : index
    %0 = vector.load %arg2[%c0, %c0_0] : memref<64x576xbf16, #tpu.memory_space<vmem>>, vector<64x576xbf16>
    %c0_1 = arith.constant 0 : index
    %c0_2 = arith.constant 0 : index
    %c0_3 = arith.constant 0 : index
    %1 = vector.load %arg1[%c0_1, %c0_2, %c0_3] : memref<1x576x25xbf16, #tpu.memory_space<vmem>>, vector<1x576x25xbf16>
    %2 = vector.shape_cast %1 : vector<1x576x25xbf16> to vector<576x25xbf16>
    %cst = arith.constant dense<0.000000e+00> : vector<64x25xf32>
    %3 = tpu.matmul %0, %2, %cst {dimension_numbers = #tpu.dot_dimension_numbers<[1], [0], [0], [1], [0, 0, 1, 1], [], []>} : vector<64x576xbf16>, vector<576x25xbf16>, vector<64x25xf32> -> vector<64x25xf32>
    %c0_4 = arith.constant 0 : index
    %c0_5 = arith.constant 0 : index
    %4 = vector.load %arg3[%c0_4, %c0_5] : memref<64x1xf32, #tpu.memory_space<vmem>>, vector<64x1xf32>
    %5 = vector.broadcast %4 : vector<64x1xf32> to vector<64x25xf32>
    %6 = arith.addf %3, %5 : vector<64x25xf32>
    %cst_6 = arith.constant 0.000000e+00 : f32
    %7 = vector.broadcast %cst_6 : f32 to vector<64x25xf32>
    %8 = arith.maximumf %6, %7 : vector<64x25xf32>
    %9 = arith.truncf %8 : vector<64x25xf32> to vector<64x25xbf16>
    %c0_7 = arith.constant 0 : index
    %c0_8 = arith.constant 0 : index
    %c0_9 = arith.constant 0 : index
    %10 = vector.load %arg4[%c0_7, %c0_8, %c0_9] : memref<1x64x25xbf16, #tpu.memory_space<vmem>>, vector<1x64x25xbf16>
    %11 = vector.shape_cast %10 : vector<1x64x25xbf16> to vector<64x25xbf16>
    %12 = vector.shape_cast %9 : vector<64x25xbf16> to vector<1x64x25xbf16>
    tpu.vector_store %arg4[%c0_7, %c0_8, %c0_9], %12 {strides = array<i32>} : memref<1x64x25xbf16, #tpu.memory_space<vmem>>, vector<1x64x25xbf16>,
    return
  }
  func.func @transform_0(%arg0: i32) -> (i32, i32, i32) {
    %c0_i32 = arith.constant 0 : i32
    %c0_i32_0 = arith.constant 0 : i32
    %c0_i32_1 = arith.constant 0 : i32
    return %arg0, %c0_i32, %c0_i32_0 : i32, i32, i32
  }
  func.func @transform_1(%arg0: i32) -> (i32, i32) {
    %c0_i32 = arith.constant 0 : i32
    %c0_i32_0 = arith.constant 0 : i32
    %c0_i32_1 = arith.constant 0 : i32
    return %c0_i32, %c0_i32_0 : i32, i32
  }
  func.func @transform_2(%arg0: i32) -> (i32, i32) {
    %c0_i32 = arith.constant 0 : i32
    %c0_i32_0 = arith.constant 0 : i32
    %c0_i32_1 = arith.constant 0 : i32
    return %c0_i32, %c0_i32_0 : i32, i32
  }
  func.func @transform_3(%arg0: i32) -> (i32, i32, i32) {
    %c0_i32 = arith.constant 0 : i32
    %c0_i32_0 = arith.constant 0 : i32
    %c0_i32_1 = arith.constant 0 : i32
    return %arg0, %c0_i32, %c0_i32_0 : i32, i32, i32
  }
}

module attributes {stable_mosaic.version = 11 : i64} {
  func.func @_fc_head_kernel(%arg0: i32, %arg1: memref<2x1600xbf16, #tpu.memory_space<vmem>>, %arg2: memref<1600x256xbf16, #tpu.memory_space<vmem>>, %arg3: memref<1x256xf32, #tpu.memory_space<vmem>>, %arg4: memref<256x5xf32, #tpu.memory_space<vmem>>, %arg5: memref<1x5xf32, #tpu.memory_space<vmem>>, %arg6: memref<2x5xf32, #tpu.memory_space<vmem>>) attributes {dimension_semantics = [#tpu.dimension_semantics<arbitrary>], iteration_bounds = array<i64: 1>, scalar_prefetch = 0 : i64, scratch_operands = 0 : i64, tpu.core_type = #tpu.core_type<tc>, window_params = [{pipeline_mode = #tpu.pipeline_mode<synchronous>, transform_indices = @transform_0, window_bounds = array<i64: 2, 1600>}, {pipeline_mode = #tpu.pipeline_mode<synchronous>, transform_indices = @transform_1, window_bounds = array<i64: 1600, 256>}, {pipeline_mode = #tpu.pipeline_mode<synchronous>, transform_indices = @transform_2, window_bounds = array<i64: 1, 256>}, {pipeline_mode = #tpu.pipeline_mode<synchronous>, transform_indices = @transform_3, window_bounds = array<i64: 256, 5>}, {pipeline_mode = #tpu.pipeline_mode<synchronous>, transform_indices = @transform_4, window_bounds = array<i64: 1, 5>}, {pipeline_mode = #tpu.pipeline_mode<synchronous>, transform_indices = @transform_5, window_bounds = array<i64: 2, 5>}]} {
    %c0 = arith.constant 0 : index
    %c0_0 = arith.constant 0 : index
    %0 = vector.load %arg1[%c0, %c0_0] : memref<2x1600xbf16, #tpu.memory_space<vmem>>, vector<2x1600xbf16>
    %c0_1 = arith.constant 0 : index
    %c0_2 = arith.constant 0 : index
    %1 = vector.load %arg2[%c0_1, %c0_2] : memref<1600x256xbf16, #tpu.memory_space<vmem>>, vector<1600x256xbf16>
    %cst = arith.constant dense<0.000000e+00> : vector<2x256xf32>
    %2 = tpu.matmul %0, %1, %cst {dimension_numbers = #tpu.dot_dimension_numbers<[1], [0], [0], [1], [0, 0, 1, 1], [], []>} : vector<2x1600xbf16>, vector<1600x256xbf16>, vector<2x256xf32> -> vector<2x256xf32>
    %c0_3 = arith.constant 0 : index
    %c0_4 = arith.constant 0 : index
    %3 = vector.load %arg3[%c0_3, %c0_4] : memref<1x256xf32, #tpu.memory_space<vmem>>, vector<1x256xf32>
    %4 = vector.broadcast %3 : vector<1x256xf32> to vector<2x256xf32>
    %5 = arith.addf %2, %4 : vector<2x256xf32>
    %cst_5 = arith.constant 0.000000e+00 : f32
    %6 = vector.broadcast %cst_5 : f32 to vector<2x256xf32>
    %7 = arith.maximumf %5, %6 : vector<2x256xf32>
    %c0_6 = arith.constant 0 : index
    %c0_7 = arith.constant 0 : index
    %8 = vector.load %arg4[%c0_6, %c0_7] : memref<256x5xf32, #tpu.memory_space<vmem>>, vector<256x5xf32>
    %cst_8 = arith.constant dense<0.000000e+00> : vector<2x5xf32>
    %9 = tpu.matmul %7, %8, %cst_8 {dimension_numbers = #tpu.dot_dimension_numbers<[1], [0], [0], [1], [0, 0, 1, 1], [], []>} : vector<2x256xf32>, vector<256x5xf32>, vector<2x5xf32> -> vector<2x5xf32>
    %c0_9 = arith.constant 0 : index
    %c0_10 = arith.constant 0 : index
    %10 = vector.load %arg5[%c0_9, %c0_10] : memref<1x5xf32, #tpu.memory_space<vmem>>, vector<1x5xf32>
    %11 = vector.broadcast %10 : vector<1x5xf32> to vector<2x5xf32>
    %12 = arith.addf %9, %11 : vector<2x5xf32>
    %c0_11 = arith.constant 0 : index
    %c0_12 = arith.constant 0 : index
    %13 = vector.load %arg6[%c0_11, %c0_12] : memref<2x5xf32, #tpu.memory_space<vmem>>, vector<2x5xf32>
    tpu.vector_store %arg6[%c0_11, %c0_12], %12 {strides = array<i32>} : memref<2x5xf32, #tpu.memory_space<vmem>>, vector<2x5xf32>,
    return
  }
  func.func @transform_0(%arg0: i32) -> (i32, i32) {
    %c0_i32 = arith.constant 0 : i32
    %c0_i32_0 = arith.constant 0 : i32
    %c0_i32_1 = arith.constant 0 : i32
    return %c0_i32, %c0_i32_0 : i32, i32
  }
  func.func @transform_1(%arg0: i32) -> (i32, i32) {
    %c0_i32 = arith.constant 0 : i32
    %c0_i32_0 = arith.constant 0 : i32
    %c0_i32_1 = arith.constant 0 : i32
    return %c0_i32, %c0_i32_0 : i32, i32
  }
  func.func @transform_2(%arg0: i32) -> (i32, i32) {
    %c0_i32 = arith.constant 0 : i32
    %c0_i32_0 = arith.constant 0 : i32
    %c0_i32_1 = arith.constant 0 : i32
    return %c0_i32, %c0_i32_0 : i32, i32
  }
  func.func @transform_3(%arg0: i32) -> (i32, i32) {
    %c0_i32 = arith.constant 0 : i32
    %c0_i32_0 = arith.constant 0 : i32
    %c0_i32_1 = arith.constant 0 : i32
    return %c0_i32, %c0_i32_0 : i32, i32
  }
  func.func @transform_4(%arg0: i32) -> (i32, i32) {
    %c0_i32 = arith.constant 0 : i32
    %c0_i32_0 = arith.constant 0 : i32
    %c0_i32_1 = arith.constant 0 : i32
    return %c0_i32, %c0_i32_0 : i32, i32
  }
  func.func @transform_5(%arg0: i32) -> (i32, i32) {
    %c0_i32 = arith.constant 0 : i32
    %c0_i32_0 = arith.constant 0 : i32
    %c0_i32_1 = arith.constant 0 : i32
    return %c0_i32, %c0_i32_0 : i32, i32
  }
}

</mosaic_0001>

<llo_original>
// kernel: deep_network_forward.4
$region0: #{deep_network_forward.4}
  #allocation0 [shape = 'u32[]', space=smem, size = 0x4, offset = 0x4, fixed_abs, tag = 'smem constant byte address 0x4 - core index']
  #allocation1 [shape = 'u32[144,128]{1,0:T(1,128)}', space=vmem, size = 0x12000, scoped, tag = 'internal scratch']
  %s0 = inlined_call_operand.vmem [shape: bf16[2,4,256,100], index: 0, kind: input, shape index: {}]
  %s1 = inlined_call_operand.vmem [shape: bf16[32,256], index: 1, kind: input, shape index: {}]
  %s2 = inlined_call_operand.vmem [shape: f32[32,1], index: 2, kind: input, shape index: {}]
  %s3 = inlined_call_operand.vmem [shape: bf16[2,32,100], index: 3, kind: output, shape index: {}]
  %s4 = sld [smem:[#allocation0]]
  $region45: #{deep_network_forward.4} parent=0
    _
  %s6 = ssub.s32 1, %s4
  %s7 = scalar_select 0, %s6, %s4
  loop: start=0, step=1, limit=4
  $region2: #{deep_network_forward.4} parent=0 // loop_pre_header
    _
  $region3: #{deep_network_forward.4} parent=0 // loop_header
    %s9 = sphi 0, %s13
    %p10 = scmp.ge.s32.totalorder %s9, 4
    %s19 = sphi 0, %s21
    %s22 = sphi 0, %s19
    %s23 = sphi 0, %s22
    %s39 = sphi 0, %s23
    %s43 = sphi 0, %s43
    %s45 = sphi 0, %s43
    %s46 = sphi 0, %s45
    %s60 = sphi 0, %s46
    %s64 = sphi 0, %s64
    %s66 = sphi 0, %s64
    %s67 = sphi 0, %s66
    %s81 = sphi 0, %s67
    %s87 = sphi 0, %s89
    %s90 = sphi 0, %s87
    %s91 = sphi 0, %s90
    %s107 = sphi 0, %s91
  $region4: #{deep_network_forward.4} parent=0 // loop_header_branch
    %12 = sbr.rel (%p10) target = $region8
  $region5: #{deep_network_forward.4} parent=0 // loop_body
    %s14 = ssub.s32 %s9, 1
    %s15 = ssub.s32 %s9, 2
    %s16 = sadd.s32 %s9, 1
    %s17 = ssub.s32 %s9, %s16
    %p18 = scmp.eq.s32.totalorder %s17, 0
    %s20 = sadd.s32 %s19, 1
    %s21 = scalar_select %p18, %s19, %s20
    %p24 = pneg %p18
    %p25 = scmp.eq.s32.totalorder %s9, 1
    %p26 = por %p24, %p25
    %p27 = scmp.ne.s32.totalorder %s19, %s22
    %p28 = scmp.eq.s32.totalorder %s9, 0
    %p29 = por %p27, %p28
    %p30 = scmp.ne.s32.totalorder %s19, %s22
    %p31 = scmp.eq.s32.totalorder %s14, 1
    %p32 = por %p30, %p31
    %p33 = scmp.ne.s32.totalorder %s22, %s23
    %p34 = scmp.eq.s32.totalorder %s14, 0
    %p35 = por %p33, %p34
    %p36 = scmp.ne.s32.totalorder %s22, %s23
    %p37 = scmp.eq.s32.totalorder %s15, 1
    %p38 = por %p36, %p37
    %p40 = scmp.ne.s32.totalorder %s23, %s39
    %p41 = scmp.eq.s32.totalorder %s15, 0
    %p42 = por %p40, %p41
    %s44 = sadd.s32 %s43, 1
    %p47 = scmp.eq.s32.totalorder %s9, 1
    %p48 = scmp.ne.s32.totalorder %s43, %s45
    %p49 = scmp.eq.s32.totalorder %s9, 0
    %p50 = por %p48, %p49
    %p51 = scmp.ne.s32.totalorder %s43, %s45
    %p52 = scmp.eq.s32.totalorder %s14, 1
    %p53 = por %p51, %p52
    %p54 = scmp.ne.s32.totalorder %s45, %s46
    %p55 = scmp.eq.s32.totalorder %s14, 0
    %p56 = por %p54, %p55
    %p57 = scmp.ne.s32.totalorder %s45, %s46
    %p58 = scmp.eq.s32.totalorder %s15, 1
    %p59 = por %p57, %p58
    %p61 = scmp.ne.s32.totalorder %s46, %s60
    %p62 = scmp.eq.s32.totalorder %s15, 0
    %p63 = por %p61, %p62
    %s65 = sadd.s32 %s64, 1
    %p68 = scmp.eq.s32.totalorder %s9, 1
    %p69 = scmp.ne.s32.totalorder %s64, %s66
    %p70 = scmp.eq.s32.totalorder %s9, 0
    %p71 = por %p69, %p70
    %p72 = scmp.ne.s32.totalorder %s64, %s66
    %p73 = scmp.eq.s32.totalorder %s14, 1
    %p74 = por %p72, %p73
    %p75 = scmp.ne.s32.totalorder %s66, %s67
    %p76 = scmp.eq.s32.totalorder %s14, 0
    %p77 = por %p75, %p76
    %p78 = scmp.ne.s32.totalorder %s66, %s67
    %p79 = scmp.eq.s32.totalorder %s15, 1
    %p80 = por %p78, %p79
    %p82 = scmp.ne.s32.totalorder %s67, %s81
    %p83 = scmp.eq.s32.totalorder %s15, 0
    %p84 = por %p82, %p83
    %s85 = ssub.s32 %s9, %s16
    %p86 = scmp.eq.s32.totalorder %s85, 0
    %s88 = sadd.s32 %s87, 1
    %s89 = scalar_select %p86, %s87, %s88
    %p92 = pneg %p86
    %p93 = scmp.eq.s32.totalorder %s9, 1
    %p94 = por %p92, %p93
    %p95 = scmp.ne.s32.totalorder %s87, %s90
    %p96 = scmp.eq.s32.totalorder %s9, 0
    %p97 = por %p95, %p96
    %p98 = scmp.ne.s32.totalorder %s87, %s90
    %p99 = scmp.eq.s32.totalorder %s14, 1
    %p100 = por %p98, %p99
    %p101 = scmp.ne.s32.totalorder %s90, %s91
    %p102 = scmp.eq.s32.totalorder %s14, 0
    %p103 = por %p101, %p102
    %p104 = scmp.ne.s32.totalorder %s90, %s91
    %p105 = scmp.eq.s32.totalorder %s15, 1
    %p106 = por %p104, %p105
    %p108 = scmp.ne.s32.totalorder %s91, %s107
    %p109 = scmp.eq.s32.totalorder %s15, 0
    %p110 = por %p108, %p109
    %p111 = scmp.le.s32.totalorder 1, %s9
    %p112 = scmp.lt.s32.totalorder %s9, 3
    %p113 = pnand %p111, %p112
    %p114 = pneg %p113
    // Predicated region
    $region9: #{deep_network_forward.4} parent=5 // pred_check
      _
    $region10: #{deep_network_forward.4} parent=5 // pred_check_branch
      %116 = sbr.rel (%p113) target = $region12
    $region11: #{deep_network_forward.4} parent=5 // pred_region
      %s117 = ssub.s32 %s9, 1
      // Predicated region
      $region13: #{deep_network_forward.4} parent=11 // pred_check
        %p118 = pneg %p56
      $region14: #{deep_network_forward.4} parent=11 // pred_check_branch
        %120 = sbr.rel (%p118) target = $region16
      $region15: #{deep_network_forward.4} parent=11 // pred_region
        _
      $region16: #{deep_network_forward.4} parent=11 // pred_fallthru
        _
      // Predicated region
      $region17: #{deep_network_forward.4} parent=11 // pred_check
        %p121 = pneg %p77
      $region18: #{deep_network_forward.4} parent=11 // pred_check_branch
        %123 = sbr.rel (%p121) target = $region20
      $region19: #{deep_network_forward.4} parent=11 // pred_region
        _
      $region20: #{deep_network_forward.4} parent=11 // pred_fallthru
        _
    $region12: #{deep_network_forward.4} parent=5 // pred_fallthru
      _
    %p124 = scmp.lt.s32.totalorder %s9, 2
    // Predicated region
    $region21: #{deep_network_forward.4} parent=5 // pred_check
      %p125 = pneg %p124
    $region22: #{deep_network_forward.4} parent=5 // pred_check_branch
      %127 = sbr.rel (%p125) target = $region24
    $region23: #{deep_network_forward.4} parent=5 // pred_region
      // Predicated region
      $region25: #{deep_network_forward.4} parent=23 // pred_check
        %p128 = pneg %p29
      $region26: #{deep_network_forward.4} parent=23 // pred_check_branch
        %130 = sbr.rel (%p128) target = $region28
      $region27: #{deep_network_forward.4} parent=23 // pred_region
        %p131 = scmp.lt.s32.totalorder %s9, 1
        %s132 = scalar_select %p131, %s9, 1
        %s133 = smul.addr %s132, 128
        %s134 = smul.addr %s133, 4
        %s135 = scalar_lea.vmem %s0, %s134
      $region28: #{deep_network_forward.4} parent=23 // pred_fallthru
        _
    $region24: #{deep_network_forward.4} parent=5 // pred_fallthru
      _
    %p136 = scmp.le.s32.totalorder 1, %s9
    %p137 = scmp.lt.s32.totalorder %s9, 3
    %p138 = pnand %p136, %p137
    %p139 = pneg %p138
    // Predicated region
    $region29: #{deep_network_forward.4} parent=5 // pred_check
      _
    $region30: #{deep_network_forward.4} parent=5 // pred_check_branch
      %141 = sbr.rel (%p138) target = $region32
    $region31: #{deep_network_forward.4} parent=5 // pred_region
      %s142 = ssub.s32 %s9, 1
      %p143 = scmp.lt.s32.totalorder %s14, 1
      %s144 = scalar_select %p143, %s14, 1
      %s145 = smul.addr %s144, 128
      %s146 = smul.addr %s145, 4
      %s147 = scalar_lea.vmem %s0, %s146
      %p148 = pneg %p35
      %p149 = pneg %p32
      %p150 = pneg %p56
      %p151 = pneg %p53
      %p152 = pneg %p77
      %p153 = pneg %p74
      %p154 = pneg %p103
      %p155 = pneg %p100
      %p156 = scmp.lt.s32.totalorder %s14, 1
      %s157 = scalar_select %p156, %s14, 1
      %s158 = smul.addr %s157, 4
      %s159 = smul.addr %s158, 4
      %s160 = scalar_lea.vmem %s3, %s159
      %p161 = scmp.lt.s32.totalorder %s14, 1
      %s162 = scalar_select %p161, %s14, 1
      %s163 = smul.addr %s162, 128
      %s164 = smul.addr %s163, 4
      %s165 = scalar_lea.vmem %s0, %s164
      %p166 = scmp.lt.s32.totalorder %s14, 1
      %s167 = scalar_select %p166, %s14, 1
      %s168 = smul.addr %s167, 4
      %s169 = smul.addr %s168, 4
      %s170 = scalar_lea.vmem %s3, %s169
      %v172 = vld [vmem:[%s1] sm:$0xff]
      %v173 = vld [vmem:[%s1 + $0x8] sm:$0xff]
      %v174 = vld [vmem:[%s1 + $0x10] sm:$0xff]
      %v175 = vld [vmem:[%s1 + $0x18] sm:$0xff]
      %v176 = vld [vmem:[%s165] sm:$0xf]
      %v177 = vld [vmem:[%s165 + $0x4] sm:$0xf]
      %v178 = vld [vmem:[%s165 + $0x8] sm:$0xf]
      %v179 = vld [vmem:[%s165 + $0xc] sm:$0xf]
      %v180 = vld [vmem:[%s165 + $0x10] sm:$0xf]
      %v181 = vld [vmem:[%s165 + $0x14] sm:$0xf]
      %v182 = vld [vmem:[%s165 + $0x18] sm:$0xf]
      %v183 = vld [vmem:[%s165 + $0x1c] sm:$0xf]
      %v184 = vld [vmem:[%s165 + $0x20] sm:$0xf]
      %v185 = vld [vmem:[%s165 + $0x24] sm:$0xf]
      %v186 = vld [vmem:[%s165 + $0x28] sm:$0xf]
      %v187 = vld [vmem:[%s165 + $0x2c] sm:$0xf]
      %v188 = vld [vmem:[%s165 + $0x30] sm:$0xf]
      %v189 = vld [vmem:[%s165 + $0x34] sm:$0xf]
      %v190 = vld [vmem:[%s165 + $0x38] sm:$0xf]
      %v191 = vld [vmem:[%s165 + $0x3c] sm:$0xf]
      %v192 = vld [vmem:[%s165 + $0x40] sm:$0xf]
      %v193 = vld [vmem:[%s165 + $0x44] sm:$0xf]
      %v194 = vld [vmem:[%s165 + $0x48] sm:$0xf]
      %v195 = vld [vmem:[%s165 + $0x4c] sm:$0xf]
      %v196 = vld [vmem:[%s165 + $0x50] sm:$0xf]
      %v197 = vld [vmem:[%s165 + $0x54] sm:$0xf]
      %v198 = vld [vmem:[%s165 + $0x58] sm:$0xf]
      %v199 = vld [vmem:[%s165 + $0x5c] sm:$0xf]
      %v200 = vld [vmem:[%s165 + $0x60] sm:$0xf]
      %v201 = vld [vmem:[%s165 + $0x64] sm:$0xf]
      %v202 = vld [vmem:[%s165 + $0x68] sm:$0xf]
      %v203 = vld [vmem:[%s165 + $0x6c] sm:$0xf]
      %v204 = vld [vmem:[%s165 + $0x70] sm:$0xf]
      %v205 = vld [vmem:[%s165 + $0x74] sm:$0xf]
      %v206 = vld [vmem:[%s165 + $0x78] sm:$0xf]
      %v207 = vld [vmem:[%s165 + $0x7c] sm:$0xf]
      %v212 = vunpack.c.l.b16 %v172
      %v213 = vunpack.c.h.b16 %v172
      %v214 = vunpack.c.l.b16 %v173
      %v215 = vunpack.c.h.b16 %v173
      %v216 = vunpack.c.l.b16 %v174
      %v217 = vunpack.c.h.b16 %v174
      %v218 = vunpack.c.l.b16 %v175
      %v219 = vunpack.c.h.b16 %v175
      %v220 = vpack.c.b16 %v214, %v212
      %v221 = vpack.c.b16 %v215, %v213
      %v222 = vpack.c.b16 %v218, %v216
      %v223 = vpack.c.b16 %v219, %v217
      %v260 = vunpack.c.l.b16 %v176
      %v261 = vunpack.c.l.b16 %v177
      %v262 = vunpack.c.l.b16 %v178
      %v263 = vunpack.c.l.b16 %v179
      %v264 = vunpack.c.l.b16 %v180
      %v265 = vunpack.c.l.b16 %v181
      %v266 = vunpack.c.l.b16 %v182
      %v267 = vunpack.c.l.b16 %v183
      %v268 = vunpack.c.l.b16 %v184
      %v269 = vunpack.c.l.b16 %v185
      %v270 = vunpack.c.l.b16 %v186
      %v271 = vunpack.c.l.b16 %v187
      %v272 = vunpack.c.l.b16 %v188
      %v273 = vunpack.c.l.b16 %v189
      %v274 = vunpack.c.l.b16 %v190
      %v275 = vunpack.c.l.b16 %v191
      %v276 = vunpack.c.l.b16 %v192
      %v277 = vunpack.c.l.b16 %v193
      %v278 = vunpack.c.l.b16 %v194
      %v279 = vunpack.c.l.b16 %v195
      %v280 = vunpack.c.l.b16 %v196
      %v281 = vunpack.c.l.b16 %v197
      %v282 = vunpack.c.l.b16 %v198
      %v283 = vunpack.c.l.b16 %v199
      %v284 = vunpack.c.l.b16 %v200
      %v285 = vunpack.c.l.b16 %v201
      %v286 = vunpack.c.l.b16 %v202
      %v287 = vunpack.c.l.b16 %v203
      %v288 = vunpack.c.l.b16 %v204
      %v289 = vunpack.c.l.b16 %v205
      %v290 = vunpack.c.l.b16 %v206
      %v291 = vunpack.c.l.b16 %v207
      %v292 = vpack.c.b16 %v261, %v260
      %v293 = vpack.c.b16 %v263, %v262
      %v294 = vpack.c.b16 %v265, %v264
      %v295 = vpack.c.b16 %v267, %v266
      %v296 = vpack.c.b16 %v269, %v268
      %v297 = vpack.c.b16 %v271, %v270
      %v298 = vpack.c.b16 %v273, %v272
      %v299 = vpack.c.b16 %v275, %v274
      %v300 = vpack.c.b16 %v277, %v276
      %v301 = vpack.c.b16 %v279, %v278
      %v302 = vpack.c.b16 %v281, %v280
      %v303 = vpack.c.b16 %v283, %v282
      %v304 = vpack.c.b16 %v285, %v284
      %v305 = vpack.c.b16 %v287, %v286
      %v306 = vpack.c.b16 %v289, %v288
      %v307 = vpack.c.b16 %v291, %v290
      %324 = vmatprep.subr.bf16.mxu0 0
      %325 = vmatpush1.bf16.msra.mxu0 %v299
      %326 = vmatprep.subr.bf16.mxu0 0
      %327 = vmatpush1.bf16.msra.mxu0 %v298
      %328 = vmatprep.subr.bf16.mxu0 0
      %329 = vmatpush1.bf16.msra.mxu0 %v297
      %330 = vmatprep.subr.bf16.mxu0 0
      %331 = vmatpush1.bf16.msra.mxu0 %v296
      %332 = vmatprep.subr.bf16.mxu0 0
      %333 = vmatpush1.bf16.msra.mxu0 %v295
      %334 = vmatprep.subr.bf16.mxu0 0
      %335 = vmatpush1.bf16.msra.mxu0 %v294
      %336 = vmatprep.subr.bf16.mxu0 0
      %337 = vmatpush1.bf16.msra.mxu0 %v293
      %338 = vmatprep.subr.bf16.mxu0 0
      %339 = vmatpush1.bf16.msra.mxu0 %v292
      %340 = vmatprep.subr.bf16.mxu0 0
      %341 = vmatpush2.bf16.msra.mxu0 %v307
      %342 = vmatprep.subr.bf16.mxu0 0
      %343 = vmatpush2.bf16.msra.mxu0 %v306
      %344 = vmatprep.subr.bf16.mxu0 0
      %345 = vmatpush2.bf16.msra.mxu0 %v305
      %346 = vmatprep.subr.bf16.mxu0 0
      %347 = vmatpush2.bf16.msra.mxu0 %v304
      %348 = vmatprep.subr.bf16.mxu0 0
      %349 = vmatpush2.bf16.msra.mxu0 %v303
      %350 = vmatprep.subr.bf16.mxu0 0
      %351 = vmatpush2.bf16.msra.mxu0 %v302
      %352 = vmatprep.subr.bf16.mxu0 0
      %353 = vmatpush2.bf16.msra.mxu0 %v301
      %354 = vmatprep.subr.bf16.mxu0 0
      %355 = vmatpush2.bf16.msra.mxu0 %v300
      %356 = vmatprep.mubr.bf16.mxu0 %v221
      %357 = vmatmul.mubr.bf16.gmra.mxu0 %v220
      %v358 = vpop.f32.mrf.mxu0
      %v359 = vadd.f32 0.0, %v358
      %v360 = vpop.f32.mrf.mxu0
      %v361 = vpop.f32.mrf.mxu0
      %v362 = vadd.f32 0.0, %v361
      %v363 = vpop.f32.mrf.mxu0
      %364 = vmatprep.mubr.bf16.mxu0 %v223
      %365 = vmatmul.mubr.bf16.gmra.mxu0 %v222
      %v366 = vpop.f32.mrf.mxu0
      %v367 = vadd.f32 0.0, %v366
      %v368 = vpop.f32.mrf.mxu0
      %v369 = vpop.f32.mrf.mxu0
      %v370 = vadd.f32 0.0, %v369
      %v371 = vpop.f32.mrf.mxu0
      %372 = vdwg.mxu0
      %s373 = scalar_lea.vmem %s165, 128
      %v374 = vld [vmem:[%s373] sm:$0xf]
      %v375 = vld [vmem:[%s373 + $0x4] sm:$0xf]
      %v376 = vld [vmem:[%s373 + $0x8] sm:$0xf]
      %v377 = vld [vmem:[%s373 + $0xc] sm:$0xf]
      %v378 = vld [vmem:[%s373 + $0x10] sm:$0xf]
      %v379 = vld [vmem:[%s373 + $0x14] sm:$0xf]
      %v380 = vld [vmem:[%s373 + $0x18] sm:$0xf]
      %v381 = vld [vmem:[%s373 + $0x1c] sm:$0xf]
      %v382 = vld [vmem:[%s373 + $0x20] sm:$0xf]
      %v383 = vld [vmem:[%s373 + $0x24] sm:$0xf]
      %v384 = vld [vmem:[%s373 + $0x28] sm:$0xf]
      %v385 = vld [vmem:[%s373 + $0x2c] sm:$0xf]
      %v386 = vld [vmem:[%s373 + $0x30] sm:$0xf]
      %v387 = vld [vmem:[%s373 + $0x34] sm:$0xf]
      %v388 = vld [vmem:[%s373 + $0x38] sm:$0xf]
      %v389 = vld [vmem:[%s373 + $0x3c] sm:$0xf]
      %v390 = vld [vmem:[%s373 + $0x40] sm:$0xf]
      %v391 = vld [vmem:[%s373 + $0x44] sm:$0xf]
      %v392 = vld [vmem:[%s373 + $0x48] sm:$0xf]
      %v393 = vld [vmem:[%s373 + $0x4c] sm:$0xf]
      %v394 = vld [vmem:[%s373 + $0x50] sm:$0xf]
      %v395 = vld [vmem:[%s373 + $0x54] sm:$0xf]
      %v396 = vld [vmem:[%s373 + $0x58] sm:$0xf]
      %v397 = vld [vmem:[%s373 + $0x5c] sm:$0xf]
      %v398 = vld [vmem:[%s373 + $0x60] sm:$0xf]
      %v399 = vld [vmem:[%s373 + $0x64] sm:$0xf]
      %v400 = vld [vmem:[%s373 + $0x68] sm:$0xf]
      %v401 = vld [vmem:[%s373 + $0x6c] sm:$0xf]
      %v402 = vld [vmem:[%s373 + $0x70] sm:$0xf]
      %v403 = vld [vmem:[%s373 + $0x74] sm:$0xf]
      %v404 = vld [vmem:[%s373 + $0x78] sm:$0xf]
      %v405 = vld [vmem:[%s373 + $0x7c] sm:$0xf]
      %v438 = vunpack.c.l.b16 %v374
      %v439 = vunpack.c.l.b16 %v375
      %v440 = vunpack.c.l.b16 %v376
      %v441 = vunpack.c.l.b16 %v377
      %v442 = vunpack.c.l.b16 %v378
      %v443 = vunpack.c.l.b16 %v379
      %v444 = vunpack.c.l.b16 %v380
      %v445 = vunpack.c.l.b16 %v381
      %v446 = vunpack.c.l.b16 %v382
      %v447 = vunpack.c.l.b16 %v383
      %v448 = vunpack.c.l.b16 %v384
      %v449 = vunpack.c.l.b16 %v385
      %v450 = vunpack.c.l.b16 %v386
      %v451 = vunpack.c.l.b16 %v387
      %v452 = vunpack.c.l.b16 %v388
      %v453 = vunpack.c.l.b16 %v389
      %v454 = vunpack.c.l.b16 %v390
      %v455 = vunpack.c.l.b16 %v391
      %v456 = vunpack.c.l.b16 %v392
      %v457 = vunpack.c.l.b16 %v393
      %v458 = vunpack.c.l.b16 %v394
      %v459 = vunpack.c.l.b16 %v395
      %v460 = vunpack.c.l.b16 %v396
      %v461 = vunpack.c.l.b16 %v397
      %v462 = vunpack.c.l.b16 %v398
      %v463 = vunpack.c.l.b16 %v399
      %v464 = vunpack.c.l.b16 %v400
      %v465 = vunpack.c.l.b16 %v401
      %v466 = vunpack.c.l.b16 %v402
      %v467 = vunpack.c.l.b16 %v403
      %v468 = vunpack.c.l.b16 %v404
      %v469 = vunpack.c.l.b16 %v405
      %v470 = vpack.c.b16 %v439, %v438
      %v471 = vpack.c.b16 %v441, %v440
      %v472 = vpack.c.b16 %v443, %v442
      %v473 = vpack.c.b16 %v445, %v444
      %v474 = vpack.c.b16 %v447, %v446
      %v475 = vpack.c.b16 %v449, %v448
      %v476 = vpack.c.b16 %v451, %v450
      %v477 = vpack.c.b16 %v453, %v452
      %v478 = vpack.c.b16 %v455, %v454
      %v479 = vpack.c.b16 %v457, %v456
      %v480 = vpack.c.b16 %v459, %v458
      %v481 = vpack.c.b16 %v461, %v460
      %v482 = vpack.c.b16 %v463, %v462
      %v483 = vpack.c.b16 %v465, %v464
      %v484 = vpack.c.b16 %v467, %v466
      %v485 = vpack.c.b16 %v469, %v468
      %502 = vmatprep.subr.bf16.mxu0 0
      %503 = vmatpush1.bf16.msra.mxu0 %v477
      %504 = vmatprep.subr.bf16.mxu0 0
      %505 = vmatpush1.bf16.msra.mxu0 %v476
      %506 = vmatprep.subr.bf16.mxu0 0
      %507 = vmatpush1.bf16.msra.mxu0 %v475
      %508 = vmatprep.subr.bf16.mxu0 0
      %509 = vmatpush1.bf16.msra.mxu0 %v474
      %510 = vmatprep.subr.bf16.mxu0 0
      %511 = vmatpush1.bf16.msra.mxu0 %v473
      %512 = vmatprep.subr.bf16.mxu0 0
      %513 = vmatpush1.bf16.msra.mxu0 %v472
      %514 = vmatprep.subr.bf16.mxu0 0
      %515 = vmatpush1.bf16.msra.mxu0 %v471
      %516 = vmatprep.subr.bf16.mxu0 0
      %517 = vmatpush1.bf16.msra.mxu0 %v470
      %518 = vmatprep.subr.bf16.mxu0 0
      %519 = vmatpush2.bf16.msra.mxu0 %v485
      %520 = vmatprep.subr.bf16.mxu0 0
      %521 = vmatpush2.bf16.msra.mxu0 %v484
      %522 = vmatprep.subr.bf16.mxu0 0
      %523 = vmatpush2.bf16.msra.mxu0 %v483
      %524 = vmatprep.subr.bf16.mxu0 0
      %525 = vmatpush2.bf16.msra.mxu0 %v482
      %526 = vmatprep.subr.bf16.mxu0 0
      %527 = vmatpush2.bf16.msra.mxu0 %v481
      %528 = vmatprep.subr.bf16.mxu0 0
      %529 = vmatpush2.bf16.msra.mxu0 %v480
      %530 = vmatprep.subr.bf16.mxu0 0
      %531 = vmatpush2.bf16.msra.mxu0 %v479
      %532 = vmatprep.subr.bf16.mxu0 0
      %533 = vmatpush2.bf16.msra.mxu0 %v478
      %534 = vmatprep.mubr.bf16.mxu0 %v221
      %535 = vmatmul.mubr.bf16.gmra.mxu0 %v220
      %v536 = vpop.f32.mrf.mxu0
      %v537 = vadd.f32 0.0, %v536
      %v538 = vpop.f32.mrf.mxu0
      %v539 = vpop.f32.mrf.mxu0
      %v540 = vadd.f32 0.0, %v539
      %v541 = vpop.f32.mrf.mxu0
      %542 = vmatprep.mubr.bf16.mxu0 %v223
      %543 = vmatmul.mubr.bf16.gmra.mxu0 %v222
      %v544 = vpop.f32.mrf.mxu0
      %v545 = vadd.f32 0.0, %v544
      %v546 = vpop.f32.mrf.mxu0
      %v547 = vpop.f32.mrf.mxu0
      %v548 = vadd.f32 0.0, %v547
      %v549 = vpop.f32.mrf.mxu0
      %550 = vdwg.mxu0
      %v551 = vmax.f32 %v359, %v537
      %v552 = vmax.f32 %v362, %v540
      %v553 = vmax.f32 %v367, %v545
      %v554 = vmax.f32 %v370, %v548
      %s555 = scalar_lea.vmem %s165, 256
      %v556 = vld [vmem:[%s555] sm:$0xf]
      %v557 = vld [vmem:[%s555 + $0x4] sm:$0xf]
      %v558 = vld [vmem:[%s555 + $0x8] sm:$0xf]
      %v559 = vld [vmem:[%s555 + $0xc] sm:$0xf]
      %v560 = vld [vmem:[%s555 + $0x10] sm:$0xf]
      %v561 = vld [vmem:[%s555 + $0x14] sm:$0xf]
      %v562 = vld [vmem:[%s555 + $0x18] sm:$0xf]
      %v563 = vld [vmem:[%s555 + $0x1c] sm:$0xf]
      %v564 = vld [vmem:[%s555 + $0x20] sm:$0xf]
      %v565 = vld [vmem:[%s555 + $0x24] sm:$0xf]
      %v566 = vld [vmem:[%s555 + $0x28] sm:$0xf]
      %v567 = vld [vmem:[%s555 + $0x2c] sm:$0xf]
      %v568 = vld [vmem:[%s555 + $0x30] sm:$0xf]
      %v569 = vld [vmem:[%s555 + $0x34] sm:$0xf]
      %v570 = vld [vmem:[%s555 + $0x38] sm:$0xf]
      %v571 = vld [vmem:[%s555 + $0x3c] sm:$0xf]
      %v572 = vld [vmem:[%s555 + $0x40] sm:$0xf]
      %v573 = vld [vmem:[%s555 + $0x44] sm:$0xf]
      %v574 = vld [vmem:[%s555 + $0x48] sm:$0xf]
      %v575 = vld [vmem:[%s555 + $0x4c] sm:$0xf]
      %v576 = vld [vmem:[%s555 + $0x50] sm:$0xf]
      %v577 = vld [vmem:[%s555 + $0x54] sm:$0xf]
      %v578 = vld [vmem:[%s555 + $0x58] sm:$0xf]
      %v579 = vld [vmem:[%s555 + $0x5c] sm:$0xf]
      %v580 = vld [vmem:[%s555 + $0x60] sm:$0xf]
      %v581 = vld [vmem:[%s555 + $0x64] sm:$0xf]
      %v582 = vld [vmem:[%s555 + $0x68] sm:$0xf]
      %v583 = vld [vmem:[%s555 + $0x6c] sm:$0xf]
      %v584 = vld [vmem:[%s555 + $0x70] sm:$0xf]
      %v585 = vld [vmem:[%s555 + $0x74] sm:$0xf]
      %v586 = vld [vmem:[%s555 + $0x78] sm:$0xf]
      %v587 = vld [vmem:[%s555 + $0x7c] sm:$0xf]
      %v620 = vunpack.c.l.b16 %v556
      %v621 = vunpack.c.l.b16 %v557
      %v622 = vunpack.c.l.b16 %v558
      %v623 = vunpack.c.l.b16 %v559
      %v624 = vunpack.c.l.b16 %v560
      %v625 = vunpack.c.l.b16 %v561
      %v626 = vunpack.c.l.b16 %v562
      %v627 = vunpack.c.l.b16 %v563
      %v628 = vunpack.c.l.b16 %v564
      %v629 = vunpack.c.l.b16 %v565
      %v630 = vunpack.c.l.b16 %v566
      %v631 = vunpack.c.l.b16 %v567
      %v632 = vunpack.c.l.b16 %v568
      %v633 = vunpack.c.l.b16 %v569
      %v634 = vunpack.c.l.b16 %v570
      %v635 = vunpack.c.l.b16 %v571
      %v636 = vunpack.c.l.b16 %v572
      %v637 = vunpack.c.l.b16 %v573
      %v638 = vunpack.c.l.b16 %v574
      %v639 = vunpack.c.l.b16 %v575
      %v640 = vunpack.c.l.b16 %v576
      %v641 = vunpack.c.l.b16 %v577
      %v642 = vunpack.c.l.b16 %v578
      %v643 = vunpack.c.l.b16 %v579
      %v644 = vunpack.c.l.b16 %v580
      %v645 = vunpack.c.l.b16 %v581
      %v646 = vunpack.c.l.b16 %v582
      %v647 = vunpack.c.l.b16 %v583
      %v648 = vunpack.c.l.b16 %v584
      %v649 = vunpack.c.l.b16 %v585
      %v650 = vunpack.c.l.b16 %v586
      %v651 = vunpack.c.l.b16 %v587
      %v652 = vpack.c.b16 %v621, %v620
      %v653 = vpack.c.b16 %v623, %v622
      %v654 = vpack.c.b16 %v625, %v624
      %v655 = vpack.c.b16 %v627, %v626
      %v656 = vpack.c.b16 %v629, %v628
      %v657 = vpack.c.b16 %v631, %v630
      %v658 = vpack.c.b16 %v633, %v632
      %v659 = vpack.c.b16 %v635, %v634
      %v660 = vpack.c.b16 %v637, %v636
      %v661 = vpack.c.b16 %v639, %v638
      %v662 = vpack.c.b16 %v641, %v640
      %v663 = vpack.c.b16 %v643, %v642
      %v664 = vpack.c.b16 %v645, %v644
      %v665 = vpack.c.b16 %v647, %v646
      %v666 = vpack.c.b16 %v649, %v648
      %v667 = vpack.c.b16 %v651, %v650
      %684 = vmatprep.subr.bf16.mxu0 0
      %685 = vmatpush1.bf16.msra.mxu0 %v659
      %686 = vmatprep.subr.bf16.mxu0 0
      %687 = vmatpush1.bf16.msra.mxu0 %v658
      %688 = vmatprep.subr.bf16.mxu0 0
      %689 = vmatpush1.bf16.msra.mxu0 %v657
      %690 = vmatprep.subr.bf16.mxu0 0
      %691 = vmatpush1.bf16.msra.mxu0 %v656
      %692 = vmatprep.subr.bf16.mxu0 0
      %693 = vmatpush1.bf16.msra.mxu0 %v655
      %694 = vmatprep.subr.bf16.mxu0 0
      %695 = vmatpush1.bf16.msra.mxu0 %v654
      %696 = vmatprep.subr.bf16.mxu0 0
      %697 = vmatpush1.bf16.msra.mxu0 %v653
      %698 = vmatprep.subr.bf16.mxu0 0
      %699 = vmatpush1.bf16.msra.mxu0 %v652
      %700 = vmatprep.subr.bf16.mxu0 0
      %701 = vmatpush2.bf16.msra.mxu0 %v667
      %702 = vmatprep.subr.bf16.mxu0 0
      %703 = vmatpush2.bf16.msra.mxu0 %v666
      %704 = vmatprep.subr.bf16.mxu0 0
      %705 = vmatpush2.bf16.msra.mxu0 %v665
      %706 = vmatprep.subr.bf16.mxu0 0
      %707 = vmatpush2.bf16.msra.mxu0 %v664
      %708 = vmatprep.subr.bf16.mxu0 0
      %709 = vmatpush2.bf16.msra.mxu0 %v663
      %710 = vmatprep.subr.bf16.mxu0 0
      %711 = vmatpush2.bf16.msra.mxu0 %v662
      %712 = vmatprep.subr.bf16.mxu0 0
      %713 = vmatpush2.bf16.msra.mxu0 %v661
      %714 = vmatprep.subr.bf16.mxu0 0
      %715 = vmatpush2.bf16.msra.mxu0 %v660
      %716 = vmatprep.mubr.bf16.mxu0 %v221
      %717 = vmatmul.mubr.bf16.gmra.mxu0 %v220
      %v718 = vpop.f32.mrf.mxu0
      %v719 = vadd.f32 0.0, %v718
      %v720 = vpop.f32.mrf.mxu0
      %v721 = vpop.f32.mrf.mxu0
      %v722 = vadd.f32 0.0, %v721
      %v723 = vpop.f32.mrf.mxu0
      %724 = vmatprep.mubr.bf16.mxu0 %v223
      %725 = vmatmul.mubr.bf16.gmra.mxu0 %v222
      %v726 = vpop.f32.mrf.mxu0
      %v727 = vadd.f32 0.0, %v726
      %v728 = vpop.f32.mrf.mxu0
      %v729 = vpop.f32.mrf.mxu0
      %v730 = vadd.f32 0.0, %v729
      %v731 = vpop.f32.mrf.mxu0
      %732 = vdwg.mxu0
      %v733 = vmax.f32 %v551, %v719
      %v734 = vmax.f32 %v552, %v722
      %v735 = vmax.f32 %v553, %v727
      %v736 = vmax.f32 %v554, %v730
      %s737 = scalar_lea.vmem %s165, 384
      %v738 = vld [vmem:[%s737] sm:$0xf]
      %v739 = vld [vmem:[%s737 + $0x4] sm:$0xf]
      %v740 = vld [vmem:[%s737 + $0x8] sm:$0xf]
      %v741 = vld [vmem:[%s737 + $0xc] sm:$0xf]
      %v742 = vld [vmem:[%s737 + $0x10] sm:$0xf]
      %v743 = vld [vmem:[%s737 + $0x14] sm:$0xf]
      %v744 = vld [vmem:[%s737 + $0x18] sm:$0xf]
      %v745 = vld [vmem:[%s737 + $0x1c] sm:$0xf]
      %v746 = vld [vmem:[%s737 + $0x20] sm:$0xf]
      %v747 = vld [vmem:[%s737 + $0x24] sm:$0xf]
      %v748 = vld [vmem:[%s737 + $0x28] sm:$0xf]
      %v749 = vld [vmem:[%s737 + $0x2c] sm:$0xf]
      %v750 = vld [vmem:[%s737 + $0x30] sm:$0xf]
      %v751 = vld [vmem:[%s737 + $0x34] sm:$0xf]
      %v752 = vld [vmem:[%s737 + $0x38] sm:$0xf]
      %v753 = vld [vmem:[%s737 + $0x3c] sm:$0xf]
      %v754 = vld [vmem:[%s737 + $0x40] sm:$0xf]
      %v755 = vld [vmem:[%s737 + $0x44] sm:$0xf]
      %v756 = vld [vmem:[%s737 + $0x48] sm:$0xf]
      %v757 = vld [vmem:[%s737 + $0x4c] sm:$0xf]
      %v758 = vld [vmem:[%s737 + $0x50] sm:$0xf]
      %v759 = vld [vmem:[%s737 + $0x54] sm:$0xf]
      %v760 = vld [vmem:[%s737 + $0x58] sm:$0xf]
      %v761 = vld [vmem:[%s737 + $0x5c] sm:$0xf]
      %v762 = vld [vmem:[%s737 + $0x60] sm:$0xf]
      %v763 = vld [vmem:[%s737 + $0x64] sm:$0xf]
      %v764 = vld [vmem:[%s737 + $0x68] sm:$0xf]
      %v765 = vld [vmem:[%s737 + $0x6c] sm:$0xf]
      %v766 = vld [vmem:[%s737 + $0x70] sm:$0xf]
      %v767 = vld [vmem:[%s737 + $0x74] sm:$0xf]
      %v768 = vld [vmem:[%s737 + $0x78] sm:$0xf]
      %v769 = vld [vmem:[%s737 + $0x7c] sm:$0xf]
      %v802 = vunpack.c.l.b16 %v738
      %v803 = vunpack.c.l.b16 %v739
      %v804 = vunpack.c.l.b16 %v740
      %v805 = vunpack.c.l.b16 %v741
      %v806 = vunpack.c.l.b16 %v742
      %v807 = vunpack.c.l.b16 %v743
      %v808 = vunpack.c.l.b16 %v744
      %v809 = vunpack.c.l.b16 %v745
      %v810 = vunpack.c.l.b16 %v746
      %v811 = vunpack.c.l.b16 %v747
      %v812 = vunpack.c.l.b16 %v748
      %v813 = vunpack.c.l.b16 %v749
      %v814 = vunpack.c.l.b16 %v750
      %v815 = vunpack.c.l.b16 %v751
      %v816 = vunpack.c.l.b16 %v752
      %v817 = vunpack.c.l.b16 %v753
      %v818 = vunpack.c.l.b16 %v754
      %v819 = vunpack.c.l.b16 %v755
      %v820 = vunpack.c.l.b16 %v756
      %v821 = vunpack.c.l.b16 %v757
      %v822 = vunpack.c.l.b16 %v758
      %v823 = vunpack.c.l.b16 %v759
      %v824 = vunpack.c.l.b16 %v760
      %v825 = vunpack.c.l.b16 %v761
      %v826 = vunpack.c.l.b16 %v762
      %v827 = vunpack.c.l.b16 %v763
      %v828 = vunpack.c.l.b16 %v764
      %v829 = vunpack.c.l.b16 %v765
      %v830 = vunpack.c.l.b16 %v766
      %v831 = vunpack.c.l.b16 %v767
      %v832 = vunpack.c.l.b16 %v768
      %v833 = vunpack.c.l.b16 %v769
      %v834 = vpack.c.b16 %v803, %v802
      %v835 = vpack.c.b16 %v805, %v804
      %v836 = vpack.c.b16 %v807, %v806
      %v837 = vpack.c.b16 %v809, %v808
      %v838 = vpack.c.b16 %v811, %v810
      %v839 = vpack.c.b16 %v813, %v812
      %v840 = vpack.c.b16 %v815, %v814
      %v841 = vpack.c.b16 %v817, %v816
      %v842 = vpack.c.b16 %v819, %v818
      %v843 = vpack.c.b16 %v821, %v820
      %v844 = vpack.c.b16 %v823, %v822
      %v845 = vpack.c.b16 %v825, %v824
      %v846 = vpack.c.b16 %v827, %v826
      %v847 = vpack.c.b16 %v829, %v828
      %v848 = vpack.c.b16 %v831, %v830
      %v849 = vpack.c.b16 %v833, %v832
      %866 = vmatprep.subr.bf16.mxu0 0
      %867 = vmatpush1.bf16.msra.mxu0 %v841
      %868 = vmatprep.subr.bf16.mxu0 0
      %869 = vmatpush1.bf16.msra.mxu0 %v840
      %870 = vmatprep.subr.bf16.mxu0 0
      %871 = vmatpush1.bf16.msra.mxu0 %v839
      %872 = vmatprep.subr.bf16.mxu0 0
      %873 = vmatpush1.bf16.msra.mxu0 %v838
      %874 = vmatprep.subr.bf16.mxu0 0
      %875 = vmatpush1.bf16.msra.mxu0 %v837
      %876 = vmatprep.subr.bf16.mxu0 0
      %877 = vmatpush1.bf16.msra.mxu0 %v836
      %878 = vmatprep.subr.bf16.mxu0 0
      %879 = vmatpush1.bf16.msra.mxu0 %v835
      %880 = vmatprep.subr.bf16.mxu0 0
      %881 = vmatpush1.bf16.msra.mxu0 %v834
      %882 = vmatprep.subr.bf16.mxu0 0
      %883 = vmatpush2.bf16.msra.mxu0 %v849
      %884 = vmatprep.subr.bf16.mxu0 0
      %885 = vmatpush2.bf16.msra.mxu0 %v848
      %886 = vmatprep.subr.bf16.mxu0 0
      %887 = vmatpush2.bf16.msra.mxu0 %v847
      %888 = vmatprep.subr.bf16.mxu0 0
      %889 = vmatpush2.bf16.msra.mxu0 %v846
      %890 = vmatprep.subr.bf16.mxu0 0
      %891 = vmatpush2.bf16.msra.mxu0 %v845
      %892 = vmatprep.subr.bf16.mxu0 0
      %893 = vmatpush2.bf16.msra.mxu0 %v844
      %894 = vmatprep.subr.bf16.mxu0 0
      %895 = vmatpush2.bf16.msra.mxu0 %v843
      %896 = vmatprep.subr.bf16.mxu0 0
      %897 = vmatpush2.bf16.msra.mxu0 %v842
      %898 = vmatprep.mubr.bf16.mxu0 %v221
      %899 = vmatmul.mubr.bf16.gmra.mxu0 %v220
      %v900 = vpop.f32.mrf.mxu0
      %v901 = vadd.f32 0.0, %v900
      %v902 = vpop.f32.mrf.mxu0
      %v903 = vpop.f32.mrf.mxu0
      %v904 = vadd.f32 0.0, %v903
      %v905 = vpop.f32.mrf.mxu0
      %906 = vmatprep.mubr.bf16.mxu0 %v223
      %907 = vmatmul.mubr.bf16.gmra.mxu0 %v222
      %v908 = vpop.f32.mrf.mxu0
      %v909 = vadd.f32 0.0, %v908
      %v910 = vpop.f32.mrf.mxu0
      %v911 = vpop.f32.mrf.mxu0
      %v912 = vadd.f32 0.0, %v911
      %v913 = vpop.f32.mrf.mxu0
      %914 = vdwg.mxu0
      %v915 = vmax.f32 %v733, %v901
      %v916 = vmax.f32 %v734, %v904
      %v917 = vmax.f32 %v735, %v909
      %v918 = vmax.f32 %v736, %v912
      %v919 = vld [vmem:[%s2] sm:$0xff]
      %v920 = vld [vmem:[%s2 + $0x8] sm:$0xff]
      %v921 = vld [vmem:[%s2 + $0x10] sm:$0xff]
      %v922 = vld [vmem:[%s2 + $0x18] sm:$0xff]
      %924 = vset.pattern.permute.xlu0 0
      %925 = vperm.xlu0 %924, %v919
      %v926 = vpop.permute.xlu0 %925
      %929 = vset.pattern.permute.xlu0 0
      %930 = vperm.xlu0 %929, %v920
      %v931 = vpop.permute.xlu0 %930
      %934 = vset.pattern.permute.xlu0 0
      %935 = vperm.xlu0 %934, %v921
      %v936 = vpop.permute.xlu0 %935
      %939 = vset.pattern.permute.xlu0 0
      %940 = vperm.xlu0 %939, %v922
      %v941 = vpop.permute.xlu0 %940
      %v943 = vadd.f32 %v915, %v926
      %v944 = vadd.f32 %v916, %v931
      %v945 = vadd.f32 %v917, %v936
      %v946 = vadd.f32 %v918, %v941
      %v947 = vmax.f32 %v943, 0.0
      %v948 = vmax.f32 %v944, 0.0
      %v949 = vmax.f32 %v945, 0.0
      %v950 = vmax.f32 %v946, 0.0
      %v951 = vpack.c.bf16 %v948, %v947
      %v952 = vpack.c.bf16 %v950, %v949
      %v955 = vunpack.c.l.b16 %v951
      %v956 = vunpack.c.h.b16 %v951
      %v957 = vunpack.c.l.b16 %v952
      %v958 = vunpack.c.h.b16 %v952
      %v959 = vpack.c.b16 %v955, %v955
      %v960 = vpack.c.b16 %v956, %v956
      %v961 = vpack.c.b16 %v957, %v957
      %v962 = vpack.c.b16 %v958, %v958
      %vm967 = vcmask 814080
      %968 = vst.msk [vmem:[%s170] sm:$0xf] %vm967, %v959
      %969 = vst.msk [vmem:[%s170 + $0x4] sm:$0xf] %vm967, %v960
      %970 = vst.msk [vmem:[%s170 + $0x8] sm:$0xf] %vm967, %v961
      %971 = vst.msk [vmem:[%s170 + $0xc] sm:$0xf] %vm967, %v962
      %p972 = scmp.lt.s32.totalorder %s14, 1
      %s973 = scalar_select %p972, %s14, 1
      %s974 = smul.addr %s973, 4
      %s975 = smul.addr %s974, 4
      %s976 = scalar_lea.vmem %s3, %s975
      // Predicated region
      $region33: #{deep_network_forward.4} parent=31 // pred_check
        %p977 = pneg %p100
      $region34: #{deep_network_forward.4} parent=31 // pred_check_branch
        %979 = sbr.rel (%p977) target = $region36
      $region35: #{deep_network_forward.4} parent=31 // pred_region
        _
      $region36: #{deep_network_forward.4} parent=31 // pred_fallthru
        _
    $region32: #{deep_network_forward.4} parent=5 // pred_fallthru
      _
    %p980 = scmp.le.s32.totalorder 2, %s9
    // Predicated region
    $region37: #{deep_network_forward.4} parent=5 // pred_check
      %p981 = pneg %p980
    $region38: #{deep_network_forward.4} parent=5 // pred_check_branch
      %983 = sbr.rel (%p981) target = $region40
    $region39: #{deep_network_forward.4} parent=5 // pred_region
      %s984 = ssub.s32 %s9, 2
      // Predicated region
      $region41: #{deep_network_forward.4} parent=39 // pred_check
        %p985 = pneg %p106
      $region42: #{deep_network_forward.4} parent=39 // pred_check_branch
        %987 = sbr.rel (%p985) target = $region44
      $region43: #{deep_network_forward.4} parent=39 // pred_region
        %p988 = scmp.lt.s32.totalorder %s15, 1
        %s989 = scalar_select %p988, %s15, 1
        %s990 = smul.addr %s989, 4
        %s991 = smul.addr %s990, 4
        %s992 = scalar_lea.vmem %s3, %s991
      $region44: #{deep_network_forward.4} parent=39 // pred_fallthru
        _
    $region40: #{deep_network_forward.4} parent=5 // pred_fallthru
      _
  $region6: #{deep_network_forward.4} parent=0 // loop_footer
    %s13 = sadd.s32 1, %s9
  $region7: #{deep_network_forward.4} parent=0 // loop_footer_branch
    %8 = sbr.rel target = $region3
  $region8: #{deep_network_forward.4} parent=0 // loop_exit
    _

// kernel: deep_network_forward.5
$region0: #{deep_network_forward.5}
  #allocation0 [shape = 'u32[]', space=smem, size = 0x4, offset = 0x4, fixed_abs, tag = 'smem constant byte address 0x4 - core index']
  #allocation1 [shape = 'u32[144,128]{1,0:T(1,128)}', space=vmem, size = 0x12000, scoped, tag = 'internal scratch']
  %s0 = inlined_call_operand.vmem [shape: bf16[2,512,25], index: 0, kind: input, shape index: {}]
  %s1 = inlined_call_operand.vmem [shape: bf16[64,512], index: 1, kind: input, shape index: {}]
  %s2 = inlined_call_operand.vmem [shape: f32[64,1], index: 2, kind: input, shape index: {}]
  %s3 = inlined_call_operand.vmem [shape: bf16[2,64,25], index: 3, kind: output, shape index: {}]
  %s4 = sld [smem:[#allocation0]]
  $region45: #{deep_network_forward.5} parent=0
    _
  %s6 = ssub.s32 1, %s4
  %s7 = scalar_select 0, %s6, %s4
  loop: start=0, step=1, limit=4
  $region2: #{deep_network_forward.5} parent=0 // loop_pre_header
    _
  $region3: #{deep_network_forward.5} parent=0 // loop_header
    %s9 = sphi 0, %s13
    %p10 = scmp.ge.s32.totalorder %s9, 4
    %s19 = sphi 0, %s21
    %s22 = sphi 0, %s19
    %s23 = sphi 0, %s22
    %s39 = sphi 0, %s23
    %s43 = sphi 0, %s43
    %s45 = sphi 0, %s43
    %s46 = sphi 0, %s45
    %s60 = sphi 0, %s46
    %s64 = sphi 0, %s64
    %s66 = sphi 0, %s64
    %s67 = sphi 0, %s66
    %s81 = sphi 0, %s67
    %s87 = sphi 0, %s89
    %s90 = sphi 0, %s87
    %s91 = sphi 0, %s90
    %s107 = sphi 0, %s91
  $region4: #{deep_network_forward.5} parent=0 // loop_header_branch
    %12 = sbr.rel (%p10) target = $region8
  $region5: #{deep_network_forward.5} parent=0 // loop_body
    %s14 = ssub.s32 %s9, 1
    %s15 = ssub.s32 %s9, 2
    %s16 = sadd.s32 %s9, 1
    %s17 = ssub.s32 %s9, %s16
    %p18 = scmp.eq.s32.totalorder %s17, 0
    %s20 = sadd.s32 %s19, 1
    %s21 = scalar_select %p18, %s19, %s20
    %p24 = pneg %p18
    %p25 = scmp.eq.s32.totalorder %s9, 1
    %p26 = por %p24, %p25
    %p27 = scmp.ne.s32.totalorder %s19, %s22
    %p28 = scmp.eq.s32.totalorder %s9, 0
    %p29 = por %p27, %p28
    %p30 = scmp.ne.s32.totalorder %s19, %s22
    %p31 = scmp.eq.s32.totalorder %s14, 1
    %p32 = por %p30, %p31
    %p33 = scmp.ne.s32.totalorder %s22, %s23
    %p34 = scmp.eq.s32.totalorder %s14, 0
    %p35 = por %p33, %p34
    %p36 = scmp.ne.s32.totalorder %s22, %s23
    %p37 = scmp.eq.s32.totalorder %s15, 1
    %p38 = por %p36, %p37
    %p40 = scmp.ne.s32.totalorder %s23, %s39
    %p41 = scmp.eq.s32.totalorder %s15, 0
    %p42 = por %p40, %p41
    %s44 = sadd.s32 %s43, 1
    %p47 = scmp.eq.s32.totalorder %s9, 1
    %p48 = scmp.ne.s32.totalorder %s43, %s45
    %p49 = scmp.eq.s32.totalorder %s9, 0
    %p50 = por %p48, %p49
    %p51 = scmp.ne.s32.totalorder %s43, %s45
    %p52 = scmp.eq.s32.totalorder %s14, 1
    %p53 = por %p51, %p52
    %p54 = scmp.ne.s32.totalorder %s45, %s46
    %p55 = scmp.eq.s32.totalorder %s14, 0
    %p56 = por %p54, %p55
    %p57 = scmp.ne.s32.totalorder %s45, %s46
    %p58 = scmp.eq.s32.totalorder %s15, 1
    %p59 = por %p57, %p58
    %p61 = scmp.ne.s32.totalorder %s46, %s60
    %p62 = scmp.eq.s32.totalorder %s15, 0
    %p63 = por %p61, %p62
    %s65 = sadd.s32 %s64, 1
    %p68 = scmp.eq.s32.totalorder %s9, 1
    %p69 = scmp.ne.s32.totalorder %s64, %s66
    %p70 = scmp.eq.s32.totalorder %s9, 0
    %p71 = por %p69, %p70
    %p72 = scmp.ne.s32.totalorder %s64, %s66
    %p73 = scmp.eq.s32.totalorder %s14, 1
    %p74 = por %p72, %p73
    %p75 = scmp.ne.s32.totalorder %s66, %s67
    %p76 = scmp.eq.s32.totalorder %s14, 0
    %p77 = por %p75, %p76
    %p78 = scmp.ne.s32.totalorder %s66, %s67
    %p79 = scmp.eq.s32.totalorder %s15, 1
    %p80 = por %p78, %p79
    %p82 = scmp.ne.s32.totalorder %s67, %s81
    %p83 = scmp.eq.s32.totalorder %s15, 0
    %p84 = por %p82, %p83
    %s85 = ssub.s32 %s9, %s16
    %p86 = scmp.eq.s32.totalorder %s85, 0
    %s88 = sadd.s32 %s87, 1
    %s89 = scalar_select %p86, %s87, %s88
    %p92 = pneg %p86
    %p93 = scmp.eq.s32.totalorder %s9, 1
    %p94 = por %p92, %p93
    %p95 = scmp.ne.s32.totalorder %s87, %s90
    %p96 = scmp.eq.s32.totalorder %s9, 0
    %p97 = por %p95, %p96
    %p98 = scmp.ne.s32.totalorder %s87, %s90
    %p99 = scmp.eq.s32.totalorder %s14, 1
    %p100 = por %p98, %p99
    %p101 = scmp.ne.s32.totalorder %s90, %s91
    %p102 = scmp.eq.s32.totalorder %s14, 0
    %p103 = por %p101, %p102
    %p104 = scmp.ne.s32.totalorder %s90, %s91
    %p105 = scmp.eq.s32.totalorder %s15, 1
    %p106 = por %p104, %p105
    %p108 = scmp.ne.s32.totalorder %s91, %s107
    %p109 = scmp.eq.s32.totalorder %s15, 0
    %p110 = por %p108, %p109
    %p111 = scmp.le.s32.totalorder 1, %s9
    %p112 = scmp.lt.s32.totalorder %s9, 3
    %p113 = pnand %p111, %p112
    %p114 = pneg %p113
    // Predicated region
    $region9: #{deep_network_forward.5} parent=5 // pred_check
      _
    $region10: #{deep_network_forward.5} parent=5 // pred_check_branch
      %116 = sbr.rel (%p113) target = $region12
    $region11: #{deep_network_forward.5} parent=5 // pred_region
      %s117 = ssub.s32 %s9, 1
      // Predicated region
      $region13: #{deep_network_forward.5} parent=11 // pred_check
        %p118 = pneg %p56
      $region14: #{deep_network_forward.5} parent=11 // pred_check_branch
        %120 = sbr.rel (%p118) target = $region16
      $region15: #{deep_network_forward.5} parent=11 // pred_region
        _
      $region16: #{deep_network_forward.5} parent=11 // pred_fallthru
        _
      // Predicated region
      $region17: #{deep_network_forward.5} parent=11 // pred_check
        %p121 = pneg %p77
      $region18: #{deep_network_forward.5} parent=11 // pred_check_branch
        %123 = sbr.rel (%p121) target = $region20
      $region19: #{deep_network_forward.5} parent=11 // pred_region
        _
      $region20: #{deep_network_forward.5} parent=11 // pred_fallthru
        _
    $region12: #{deep_network_forward.5} parent=5 // pred_fallthru
      _
    %p124 = scmp.lt.s32.totalorder %s9, 2
    // Predicated region
    $region21: #{deep_network_forward.5} parent=5 // pred_check
      %p125 = pneg %p124
    $region22: #{deep_network_forward.5} parent=5 // pred_check_branch
      %127 = sbr.rel (%p125) target = $region24
    $region23: #{deep_network_forward.5} parent=5 // pred_region
      // Predicated region
      $region25: #{deep_network_forward.5} parent=23 // pred_check
        %p128 = pneg %p29
      $region26: #{deep_network_forward.5} parent=23 // pred_check_branch
        %130 = sbr.rel (%p128) target = $region28
      $region27: #{deep_network_forward.5} parent=23 // pred_region
        %p131 = scmp.lt.s32.totalorder %s9, 1
        %s132 = scalar_select %p131, %s9, 1
        %s133 = smul.addr %s132, 64
        %s134 = smul.addr %s133, 4
        %s135 = scalar_lea.vmem %s0, %s134
      $region28: #{deep_network_forward.5} parent=23 // pred_fallthru
        _
    $region24: #{deep_network_forward.5} parent=5 // pred_fallthru
      _
    %p136 = scmp.le.s32.totalorder 1, %s9
    %p137 = scmp.lt.s32.totalorder %s9, 3
    %p138 = pnand %p136, %p137
    %p139 = pneg %p138
    // Predicated region
    $region29: #{deep_network_forward.5} parent=5 // pred_check
      _
    $region30: #{deep_network_forward.5} parent=5 // pred_check_branch
      %141 = sbr.rel (%p138) target = $region32
    $region31: #{deep_network_forward.5} parent=5 // pred_region
      %s142 = ssub.s32 %s9, 1
      %p143 = scmp.lt.s32.totalorder %s14, 1
      %s144 = scalar_select %p143, %s14, 1
      %s145 = smul.addr %s144, 64
      %s146 = smul.addr %s145, 4
      %s147 = scalar_lea.vmem %s0, %s146
      %p148 = pneg %p35
      %p149 = pneg %p32
      %p150 = pneg %p56
      %p151 = pneg %p53
      %p152 = pneg %p77
      %p153 = pneg %p74
      %p154 = pneg %p103
      %p155 = pneg %p100
      %p156 = scmp.lt.s32.totalorder %s14, 1
      %s157 = scalar_select %p156, %s14, 1
      %s158 = smul.addr %s157, 8
      %s159 = smul.addr %s158, 4
      %s160 = scalar_lea.vmem %s3, %s159
      %p161 = scmp.lt.s32.totalorder %s14, 1
      %s162 = scalar_select %p161, %s14, 1
      %s163 = smul.addr %s162, 64
      %s164 = smul.addr %s163, 4
      %s165 = scalar_lea.vmem %s0, %s164
      %p166 = scmp.lt.s32.totalorder %s14, 1
      %s167 = scalar_select %p166, %s14, 1
      %s168 = smul.addr %s167, 8
      %s169 = smul.addr %s168, 4
      %s170 = scalar_lea.vmem %s3, %s169
      %v172 = vld [vmem:[%s1] sm:$0xff]
      %v173 = vld [vmem:[%s1 + $0x8] sm:$0xff]
      %v174 = vld [vmem:[%s1 + $0x10] sm:$0xff]
      %v175 = vld [vmem:[%s1 + $0x18] sm:$0xff]
      %v176 = vld [vmem:[%s1 + $0x20] sm:$0xff]
      %v177 = vld [vmem:[%s1 + $0x28] sm:$0xff]
      %v178 = vld [vmem:[%s1 + $0x30] sm:$0xff]
      %v179 = vld [vmem:[%s1 + $0x38] sm:$0xff]
      %v180 = vld [vmem:[%s1 + $0x40] sm:$0xff]
      %v181 = vld [vmem:[%s1 + $0x48] sm:$0xff]
      %v182 = vld [vmem:[%s1 + $0x50] sm:$0xff]
      %v183 = vld [vmem:[%s1 + $0x58] sm:$0xff]
      %v184 = vld [vmem:[%s1 + $0x60] sm:$0xff]
      %v185 = vld [vmem:[%s1 + $0x68] sm:$0xff]
      %v186 = vld [vmem:[%s1 + $0x70] sm:$0xff]
      %v187 = vld [vmem:[%s1 + $0x78] sm:$0xff]
      %v188 = vld [vmem:[%s165] sm:$0xf]
      %v189 = vld [vmem:[%s165 + $0x4] sm:$0xf]
      %v190 = vld [vmem:[%s165 + $0x8] sm:$0xf]
      %v191 = vld [vmem:[%s165 + $0xc] sm:$0xf]
      %v192 = vld [vmem:[%s165 + $0x10] sm:$0xf]
      %v193 = vld [vmem:[%s165 + $0x14] sm:$0xf]
      %v194 = vld [vmem:[%s165 + $0x18] sm:$0xf]
      %v195 = vld [vmem:[%s165 + $0x1c] sm:$0xf]
      %v196 = vld [vmem:[%s165 + $0x20] sm:$0xf]
      %v197 = vld [vmem:[%s165 + $0x24] sm:$0xf]
      %v198 = vld [vmem:[%s165 + $0x28] sm:$0xf]
      %v199 = vld [vmem:[%s165 + $0x2c] sm:$0xf]
      %v200 = vld [vmem:[%s165 + $0x30] sm:$0xf]
      %v201 = vld [vmem:[%s165 + $0x34] sm:$0xf]
      %v202 = vld [vmem:[%s165 + $0x38] sm:$0xf]
      %v203 = vld [vmem:[%s165 + $0x3c] sm:$0xf]
      %v204 = vld [vmem:[%s165 + $0x40] sm:$0xf]
      %v205 = vld [vmem:[%s165 + $0x44] sm:$0xf]
      %v206 = vld [vmem:[%s165 + $0x48] sm:$0xf]
      %v207 = vld [vmem:[%s165 + $0x4c] sm:$0xf]
      %v208 = vld [vmem:[%s165 + $0x50] sm:$0xf]
      %v209 = vld [vmem:[%s165 + $0x54] sm:$0xf]
      %v210 = vld [vmem:[%s165 + $0x58] sm:$0xf]
      %v211 = vld [vmem:[%s165 + $0x5c] sm:$0xf]
      %v212 = vld [vmem:[%s165 + $0x60] sm:$0xf]
      %v213 = vld [vmem:[%s165 + $0x64] sm:$0xf]
      %v214 = vld [vmem:[%s165 + $0x68] sm:$0xf]
      %v215 = vld [vmem:[%s165 + $0x6c] sm:$0xf]
      %v216 = vld [vmem:[%s165 + $0x70] sm:$0xf]
      %v217 = vld [vmem:[%s165 + $0x74] sm:$0xf]
      %v218 = vld [vmem:[%s165 + $0x78] sm:$0xf]
      %v219 = vld [vmem:[%s165 + $0x7c] sm:$0xf]
      %v220 = vld [vmem:[%s165 + $0x80] sm:$0xf]
      %v221 = vld [vmem:[%s165 + $0x84] sm:$0xf]
      %v222 = vld [vmem:[%s165 + $0x88] sm:$0xf]
      %v223 = vld [vmem:[%s165 + $0x8c] sm:$0xf]
      %v224 = vld [vmem:[%s165 + $0x90] sm:$0xf]
      %v225 = vld [vmem:[%s165 + $0x94] sm:$0xf]
      %v226 = vld [vmem:[%s165 + $0x98] sm:$0xf]
      %v227 = vld [vmem:[%s165 + $0x9c] sm:$0xf]
      %v228 = vld [vmem:[%s165 + $0xa0] sm:$0xf]
      %v229 = vld [vmem:[%s165 + $0xa4] sm:$0xf]
      %v230 = vld [vmem:[%s165 + $0xa8] sm:$0xf]
      %v231 = vld [vmem:[%s165 + $0xac] sm:$0xf]
      %v232 = vld [vmem:[%s165 + $0xb0] sm:$0xf]
      %v233 = vld [vmem:[%s165 + $0xb4] sm:$0xf]
      %v234 = vld [vmem:[%s165 + $0xb8] sm:$0xf]
      %v235 = vld [vmem:[%s165 + $0xbc] sm:$0xf]
      %v236 = vld [vmem:[%s165 + $0xc0] sm:$0xf]
      %v237 = vld [vmem:[%s165 + $0xc4] sm:$0xf]
      %v238 = vld [vmem:[%s165 + $0xc8] sm:$0xf]
      %v239 = vld [vmem:[%s165 + $0xcc] sm:$0xf]
      %v240 = vld [vmem:[%s165 + $0xd0] sm:$0xf]
      %v241 = vld [vmem:[%s165 + $0xd4] sm:$0xf]
      %v242 = vld [vmem:[%s165 + $0xd8] sm:$0xf]
      %v243 = vld [vmem:[%s165 + $0xdc] sm:$0xf]
      %v244 = vld [vmem:[%s165 + $0xe0] sm:$0xf]
      %v245 = vld [vmem:[%s165 + $0xe4] sm:$0xf]
      %v246 = vld [vmem:[%s165 + $0xe8] sm:$0xf]
      %v247 = vld [vmem:[%s165 + $0xec] sm:$0xf]
      %v248 = vld [vmem:[%s165 + $0xf0] sm:$0xf]
      %v249 = vld [vmem:[%s165 + $0xf4] sm:$0xf]
      %v250 = vld [vmem:[%s165 + $0xf8] sm:$0xf]
      %v251 = vld [vmem:[%s165 + $0xfc] sm:$0xf]
      %v252 = vld [vmem:[%s2] sm:$0xff]
      %v253 = vld [vmem:[%s2 + $0x8] sm:$0xff]
      %v254 = vld [vmem:[%s2 + $0x10] sm:$0xff]
      %v255 = vld [vmem:[%s2 + $0x18] sm:$0xff]
      %v256 = vld [vmem:[%s2 + $0x20] sm:$0xff]
      %v257 = vld [vmem:[%s2 + $0x28] sm:$0xff]
      %v258 = vld [vmem:[%s2 + $0x30] sm:$0xff]
      %v259 = vld [vmem:[%s2 + $0x38] sm:$0xff]
      %261 = vset.pattern.permute.xlu0 0
      %262 = vperm.xlu0 %261, %v252
      %v263 = vpop.permute.xlu0 %262
      %266 = vset.pattern.permute.xlu0 0
      %267 = vperm.xlu0 %266, %v253
      %v268 = vpop.permute.xlu0 %267
      %271 = vset.pattern.permute.xlu0 0
      %272 = vperm.xlu0 %271, %v254
      %v273 = vpop.permute.xlu0 %272
      %276 = vset.pattern.permute.xlu0 0
      %277 = vperm.xlu0 %276, %v255
      %v278 = vpop.permute.xlu0 %277
      %281 = vset.pattern.permute.xlu0 0
      %282 = vperm.xlu0 %281, %v256
      %v283 = vpop.permute.xlu0 %282
      %286 = vset.pattern.permute.xlu0 0
      %287 = vperm.xlu0 %286, %v257
      %v288 = vpop.permute.xlu0 %287
      %291 = vset.pattern.permute.xlu0 0
      %292 = vperm.xlu0 %291, %v258
      %v293 = vpop.permute.xlu0 %292
      %296 = vset.pattern.permute.xlu0 0
      %297 = vperm.xlu0 %296, %v259
      %v298 = vpop.permute.xlu0 %297
      %v316 = vunpack.c.l.b16 %v172
      %v317 = vunpack.c.h.b16 %v172
      %v318 = vunpack.c.l.b16 %v173
      %v319 = vunpack.c.h.b16 %v173
      %v320 = vunpack.c.l.b16 %v174
      %v321 = vunpack.c.h.b16 %v174
      %v322 = vunpack.c.l.b16 %v175
      %v323 = vunpack.c.h.b16 %v175
      %v324 = vunpack.c.l.b16 %v176
      %v325 = vunpack.c.h.b16 %v176
      %v326 = vunpack.c.l.b16 %v177
      %v327 = vunpack.c.h.b16 %v177
      %v328 = vunpack.c.l.b16 %v178
      %v329 = vunpack.c.h.b16 %v178
      %v330 = vunpack.c.l.b16 %v179
      %v331 = vunpack.c.h.b16 %v179
      %v332 = vunpack.c.l.b16 %v180
      %v333 = vunpack.c.h.b16 %v180
      %v334 = vunpack.c.l.b16 %v181
      %v335 = vunpack.c.h.b16 %v181
      %v336 = vunpack.c.l.b16 %v182
      %v337 = vunpack.c.h.b16 %v182
      %v338 = vunpack.c.l.b16 %v183
      %v339 = vunpack.c.h.b16 %v183
      %v340 = vunpack.c.l.b16 %v184
      %v341 = vunpack.c.h.b16 %v184
      %v342 = vunpack.c.l.b16 %v185
      %v343 = vunpack.c.h.b16 %v185
      %v344 = vunpack.c.l.b16 %v186
      %v345 = vunpack.c.h.b16 %v186
      %v346 = vunpack.c.l.b16 %v187
      %v347 = vunpack.c.h.b16 %v187
      %v348 = vpack.c.b16 %v320, %v316
      %v349 = vpack.c.b16 %v321, %v317
      %v350 = vpack.c.b16 %v322, %v318
      %v351 = vpack.c.b16 %v323, %v319
      %v352 = vpack.c.b16 %v328, %v324
      %v353 = vpack.c.b16 %v329, %v325
      %v354 = vpack.c.b16 %v330, %v326
      %v355 = vpack.c.b16 %v331, %v327
      %v356 = vpack.c.b16 %v336, %v332
      %v357 = vpack.c.b16 %v337, %v333
      %v358 = vpack.c.b16 %v338, %v334
      %v359 = vpack.c.b16 %v339, %v335
      %v360 = vpack.c.b16 %v344, %v340
      %v361 = vpack.c.b16 %v345, %v341
      %v362 = vpack.c.b16 %v346, %v342
      %v363 = vpack.c.b16 %v347, %v343
      %v444 = vunpack.c.l.b16 %v188
      %v445 = vunpack.c.l.b16 %v189
      %v446 = vunpack.c.l.b16 %v190
      %v447 = vunpack.c.l.b16 %v191
      %v448 = vunpack.c.l.b16 %v192
      %v449 = vunpack.c.l.b16 %v193
      %v450 = vunpack.c.l.b16 %v194
      %v451 = vunpack.c.l.b16 %v195
      %v452 = vunpack.c.l.b16 %v196
      %v453 = vunpack.c.l.b16 %v197
      %v454 = vunpack.c.l.b16 %v198
      %v455 = vunpack.c.l.b16 %v199
      %v456 = vunpack.c.l.b16 %v200
      %v457 = vunpack.c.l.b16 %v201
      %v458 = vunpack.c.l.b16 %v202
      %v459 = vunpack.c.l.b16 %v203
      %v460 = vunpack.c.l.b16 %v204
      %v461 = vunpack.c.l.b16 %v205
      %v462 = vunpack.c.l.b16 %v206
      %v463 = vunpack.c.l.b16 %v207
      %v464 = vunpack.c.l.b16 %v208
      %v465 = vunpack.c.l.b16 %v209
      %v466 = vunpack.c.l.b16 %v210
      %v467 = vunpack.c.l.b16 %v211
      %v468 = vunpack.c.l.b16 %v212
      %v469 = vunpack.c.l.b16 %v213
      %v470 = vunpack.c.l.b16 %v214
      %v471 = vunpack.c.l.b16 %v215
      %v472 = vunpack.c.l.b16 %v216
      %v473 = vunpack.c.l.b16 %v217
      %v474 = vunpack.c.l.b16 %v218
      %v475 = vunpack.c.l.b16 %v219
      %v476 = vunpack.c.l.b16 %v220
      %v477 = vunpack.c.l.b16 %v221
      %v478 = vunpack.c.l.b16 %v222
      %v479 = vunpack.c.l.b16 %v223
      %v480 = vunpack.c.l.b16 %v224
      %v481 = vunpack.c.l.b16 %v225
      %v482 = vunpack.c.l.b16 %v226
      %v483 = vunpack.c.l.b16 %v227
      %v484 = vunpack.c.l.b16 %v228
      %v485 = vunpack.c.l.b16 %v229
      %v486 = vunpack.c.l.b16 %v230
      %v487 = vunpack.c.l.b16 %v231
      %v488 = vunpack.c.l.b16 %v232
      %v489 = vunpack.c.l.b16 %v233
      %v490 = vunpack.c.l.b16 %v234
      %v491 = vunpack.c.l.b16 %v235
      %v492 = vunpack.c.l.b16 %v236
      %v493 = vunpack.c.l.b16 %v237
      %v494 = vunpack.c.l.b16 %v238
      %v495 = vunpack.c.l.b16 %v239
      %v496 = vunpack.c.l.b16 %v240
      %v497 = vunpack.c.l.b16 %v241
      %v498 = vunpack.c.l.b16 %v242
      %v499 = vunpack.c.l.b16 %v243
      %v500 = vunpack.c.l.b16 %v244
      %v501 = vunpack.c.l.b16 %v245
      %v502 = vunpack.c.l.b16 %v246
      %v503 = vunpack.c.l.b16 %v247
      %v504 = vunpack.c.l.b16 %v248
      %v505 = vunpack.c.l.b16 %v249
      %v506 = vunpack.c.l.b16 %v250
      %v507 = vunpack.c.l.b16 %v251
      %v508 = vpack.c.b16 %v445, %v444
      %v509 = vpack.c.b16 %v447, %v446
      %v510 = vpack.c.b16 %v449, %v448
      %v511 = vpack.c.b16 %v451, %v450
      %v512 = vpack.c.b16 %v453, %v452
      %v513 = vpack.c.b16 %v455, %v454
      %v514 = vpack.c.b16 %v457, %v456
      %v515 = vpack.c.b16 %v459, %v458
      %v516 = vpack.c.b16 %v461, %v460
      %v517 = vpack.c.b16 %v463, %v462
      %v518 = vpack.c.b16 %v465, %v464
      %v519 = vpack.c.b16 %v467, %v466
      %v520 = vpack.c.b16 %v469, %v468
      %v521 = vpack.c.b16 %v471, %v470
      %v522 = vpack.c.b16 %v473, %v472
      %v523 = vpack.c.b16 %v475, %v474
      %v524 = vpack.c.b16 %v477, %v476
      %v525 = vpack.c.b16 %v479, %v478
      %v526 = vpack.c.b16 %v481, %v480
      %v527 = vpack.c.b16 %v483, %v482
      %v528 = vpack.c.b16 %v485, %v484
      %v529 = vpack.c.b16 %v487, %v486
      %v530 = vpack.c.b16 %v489, %v488
      %v531 = vpack.c.b16 %v491, %v490
      %v532 = vpack.c.b16 %v493, %v492
      %v533 = vpack.c.b16 %v495, %v494
      %v534 = vpack.c.b16 %v497, %v496
      %v535 = vpack.c.b16 %v499, %v498
      %v536 = vpack.c.b16 %v501, %v500
      %v537 = vpack.c.b16 %v503, %v502
      %v538 = vpack.c.b16 %v505, %v504
      %v539 = vpack.c.b16 %v507, %v506
      %572 = vmatprep.subr.bf16.mxu0 0
      %573 = vmatpush1.bf16.msra.mxu0 %v515
      %574 = vmatprep.subr.bf16.mxu0 0
      %575 = vmatpush1.bf16.msra.mxu0 %v514
      %576 = vmatprep.subr.bf16.mxu0 0
      %577 = vmatpush1.bf16.msra.mxu0 %v513
      %578 = vmatprep.subr.bf16.mxu0 0
      %579 = vmatpush1.bf16.msra.mxu0 %v512
      %580 = vmatprep.subr.bf16.mxu0 0
      %581 = vmatpush1.bf16.msra.mxu0 %v511
      %582 = vmatprep.subr.bf16.mxu0 0
      %583 = vmatpush1.bf16.msra.mxu0 %v510
      %584 = vmatprep.subr.bf16.mxu0 0
      %585 = vmatpush1.bf16.msra.mxu0 %v509
      %586 = vmatprep.subr.bf16.mxu0 0
      %587 = vmatpush1.bf16.msra.mxu0 %v508
      %588 = vmatprep.subr.bf16.mxu0 0
      %589 = vmatpush2.bf16.msra.mxu0 %v523
      %590 = vmatprep.subr.bf16.mxu0 0
      %591 = vmatpush2.bf16.msra.mxu0 %v522
      %592 = vmatprep.subr.bf16.mxu0 0
      %593 = vmatpush2.bf16.msra.mxu0 %v521
      %594 = vmatprep.subr.bf16.mxu0 0
      %595 = vmatpush2.bf16.msra.mxu0 %v520
      %596 = vmatprep.subr.bf16.mxu0 0
      %597 = vmatpush2.bf16.msra.mxu0 %v519
      %598 = vmatprep.subr.bf16.mxu0 0
      %599 = vmatpush2.bf16.msra.mxu0 %v518
      %600 = vmatprep.subr.bf16.mxu0 0
      %601 = vmatpush2.bf16.msra.mxu0 %v517
      %602 = vmatprep.subr.bf16.mxu0 0
      %603 = vmatpush2.bf16.msra.mxu0 %v516
      %604 = vmatprep.mubr.bf16.mxu0 %v349
      %605 = vmatmul.mubr.bf16.gmra.mxu0 %v348
      %v606 = vpop.f32.mrf.mxu0
      %v607 = vadd.f32 %v263, %v606
      %v608 = vpop.f32.mrf.mxu0
      %v609 = vpop.f32.mrf.mxu0
      %v610 = vadd.f32 %v268, %v609
      %v611 = vpop.f32.mrf.mxu0
      %612 = vmatprep.mubr.bf16.mxu0 %v353
      %613 = vmatmul.mubr.bf16.gmra.mxu0 %v352
      %v614 = vpop.f32.mrf.mxu0
      %v615 = vadd.f32 %v273, %v614
      %v616 = vpop.f32.mrf.mxu0
      %v617 = vpop.f32.mrf.mxu0
      %v618 = vadd.f32 %v278, %v617
      %v619 = vpop.f32.mrf.mxu0
      %620 = vmatprep.mubr.bf16.mxu0 %v357
      %621 = vmatmul.mubr.bf16.gmra.mxu0 %v356
      %v622 = vpop.f32.mrf.mxu0
      %v623 = vadd.f32 %v283, %v622
      %v624 = vpop.f32.mrf.mxu0
      %v625 = vpop.f32.mrf.mxu0
      %v626 = vadd.f32 %v288, %v625
      %v627 = vpop.f32.mrf.mxu0
      %628 = vmatprep.mubr.bf16.mxu0 %v361
      %629 = vmatmul.mubr.bf16.gmra.mxu0 %v360
      %v630 = vpop.f32.mrf.mxu0
      %v631 = vadd.f32 %v293, %v630
      %v632 = vpop.f32.mrf.mxu0
      %v633 = vpop.f32.mrf.mxu0
      %v634 = vadd.f32 %v298, %v633
      %v635 = vpop.f32.mrf.mxu0
      %636 = vdwg.mxu0
      %637 = vmatprep.subr.bf16.mxu0 0
      %638 = vmatpush1.bf16.msra.mxu0 %v531
      %639 = vmatprep.subr.bf16.mxu0 0
      %640 = vmatpush1.bf16.msra.mxu0 %v530
      %641 = vmatprep.subr.bf16.mxu0 0
      %642 = vmatpush1.bf16.msra.mxu0 %v529
      %643 = vmatprep.subr.bf16.mxu0 0
      %644 = vmatpush1.bf16.msra.mxu0 %v528
      %645 = vmatprep.subr.bf16.mxu0 0
      %646 = vmatpush1.bf16.msra.mxu0 %v527
      %647 = vmatprep.subr.bf16.mxu0 0
      %648 = vmatpush1.bf16.msra.mxu0 %v526
      %649 = vmatprep.subr.bf16.mxu0 0
      %650 = vmatpush1.bf16.msra.mxu0 %v525
      %651 = vmatprep.subr.bf16.mxu0 0
      %652 = vmatpush1.bf16.msra.mxu0 %v524
      %653 = vmatprep.subr.bf16.mxu0 0
      %654 = vmatpush2.bf16.msra.mxu0 %v539
      %655 = vmatprep.subr.bf16.mxu0 0
      %656 = vmatpush2.bf16.msra.mxu0 %v538
      %657 = vmatprep.subr.bf16.mxu0 0
      %658 = vmatpush2.bf16.msra.mxu0 %v537
      %659 = vmatprep.subr.bf16.mxu0 0
      %660 = vmatpush2.bf16.msra.mxu0 %v536
      %661 = vmatprep.subr.bf16.mxu0 0
      %662 = vmatpush2.bf16.msra.mxu0 %v535
      %663 = vmatprep.subr.bf16.mxu0 0
      %664 = vmatpush2.bf16.msra.mxu0 %v534
      %665 = vmatprep.subr.bf16.mxu0 0
      %666 = vmatpush2.bf16.msra.mxu0 %v533
      %667 = vmatprep.subr.bf16.mxu0 0
      %668 = vmatpush2.bf16.msra.mxu0 %v532
      %669 = vmatprep.mubr.bf16.mxu0 %v351
      %670 = vmatmul.mubr.bf16.gmra.mxu0 %v350
      %v671 = vpop.f32.mrf.mxu0
      %v672 = vadd.f32 %v607, %v671
      %v673 = vpop.f32.mrf.mxu0
      %v674 = vpop.f32.mrf.mxu0
      %v675 = vadd.f32 %v610, %v674
      %v676 = vpop.f32.mrf.mxu0
      %677 = vmatprep.mubr.bf16.mxu0 %v355
      %678 = vmatmul.mubr.bf16.gmra.mxu0 %v354
      %v679 = vpop.f32.mrf.mxu0
      %v680 = vadd.f32 %v615, %v679
      %v681 = vpop.f32.mrf.mxu0
      %v682 = vpop.f32.mrf.mxu0
      %v683 = vadd.f32 %v618, %v682
      %v684 = vpop.f32.mrf.mxu0
      %685 = vmatprep.mubr.bf16.mxu0 %v359
      %686 = vmatmul.mubr.bf16.gmra.mxu0 %v358
      %v687 = vpop.f32.mrf.mxu0
      %v688 = vadd.f32 %v623, %v687
      %v689 = vpop.f32.mrf.mxu0
      %v690 = vpop.f32.mrf.mxu0
      %v691 = vadd.f32 %v626, %v690
      %v692 = vpop.f32.mrf.mxu0
      %693 = vmatprep.mubr.bf16.mxu0 %v363
      %694 = vmatmul.mubr.bf16.gmra.mxu0 %v362
      %v695 = vpop.f32.mrf.mxu0
      %v696 = vadd.f32 %v631, %v695
      %v697 = vpop.f32.mrf.mxu0
      %v698 = vpop.f32.mrf.mxu0
      %v699 = vadd.f32 %v634, %v698
      %v700 = vpop.f32.mrf.mxu0
      %701 = vdwg.mxu0
      %v702 = vmax.f32 %v672, 0.0
      %v703 = vmax.f32 %v675, 0.0
      %v704 = vmax.f32 %v680, 0.0
      %v705 = vmax.f32 %v683, 0.0
      %v706 = vmax.f32 %v688, 0.0
      %v707 = vmax.f32 %v691, 0.0
      %v708 = vmax.f32 %v696, 0.0
      %v709 = vmax.f32 %v699, 0.0
      %v710 = vpack.c.bf16 %v703, %v702
      %v711 = vpack.c.bf16 %v705, %v704
      %v712 = vpack.c.bf16 %v707, %v706
      %v713 = vpack.c.bf16 %v709, %v708
      %v718 = vunpack.c.l.b16 %v710
      %v719 = vunpack.c.h.b16 %v710
      %v720 = vunpack.c.l.b16 %v711
      %v721 = vunpack.c.h.b16 %v711
      %v722 = vunpack.c.l.b16 %v712
      %v723 = vunpack.c.h.b16 %v712
      %v724 = vunpack.c.l.b16 %v713
      %v725 = vunpack.c.h.b16 %v713
      %v726 = vpack.c.b16 %v718, %v718
      %v727 = vpack.c.b16 %v719, %v719
      %v728 = vpack.c.b16 %v720, %v720
      %v729 = vpack.c.b16 %v721, %v721
      %v730 = vpack.c.b16 %v722, %v722
      %v731 = vpack.c.b16 %v723, %v723
      %v732 = vpack.c.b16 %v724, %v724
      %v733 = vpack.c.b16 %v725, %v725
      %vm742 = vcmask 199680
      %743 = vst.msk [vmem:[%s170] sm:$0xf] %vm742, %v726
      %744 = vst.msk [vmem:[%s170 + $0x4] sm:$0xf] %vm742, %v727
      %745 = vst.msk [vmem:[%s170 + $0x8] sm:$0xf] %vm742, %v728
      %746 = vst.msk [vmem:[%s170 + $0xc] sm:$0xf] %vm742, %v729
      %747 = vst.msk [vmem:[%s170 + $0x10] sm:$0xf] %vm742, %v730
      %748 = vst.msk [vmem:[%s170 + $0x14] sm:$0xf] %vm742, %v731
      %749 = vst.msk [vmem:[%s170 + $0x18] sm:$0xf] %vm742, %v732
      %750 = vst.msk [vmem:[%s170 + $0x1c] sm:$0xf] %vm742, %v733
      %p751 = scmp.lt.s32.totalorder %s14, 1
      %s752 = scalar_select %p751, %s14, 1
      %s753 = smul.addr %s752, 8
      %s754 = smul.addr %s753, 4
      %s755 = scalar_lea.vmem %s3, %s754
      // Predicated region
      $region33: #{deep_network_forward.5} parent=31 // pred_check
        %p756 = pneg %p100
      $region34: #{deep_network_forward.5} parent=31 // pred_check_branch
        %758 = sbr.rel (%p756) target = $region36
      $region35: #{deep_network_forward.5} parent=31 // pred_region
        _
      $region36: #{deep_network_forward.5} parent=31 // pred_fallthru
        _
    $region32: #{deep_network_forward.5} parent=5 // pred_fallthru
      _
    %p759 = scmp.le.s32.totalorder 2, %s9
    // Predicated region
    $region37: #{deep_network_forward.5} parent=5 // pred_check
      %p760 = pneg %p759
    $region38: #{deep_network_forward.5} parent=5 // pred_check_branch
      %762 = sbr.rel (%p760) target = $region40
    $region39: #{deep_network_forward.5} parent=5 // pred_region
      %s763 = ssub.s32 %s9, 2
      // Predicated region
      $region41: #{deep_network_forward.5} parent=39 // pred_check
        %p764 = pneg %p106
      $region42: #{deep_network_forward.5} parent=39 // pred_check_branch
        %766 = sbr.rel (%p764) target = $region44
      $region43: #{deep_network_forward.5} parent=39 // pred_region
        %p767 = scmp.lt.s32.totalorder %s15, 1
        %s768 = scalar_select %p767, %s15, 1
        %s769 = smul.addr %s768, 8
        %s770 = smul.addr %s769, 4
        %s771 = scalar_lea.vmem %s3, %s770
      $region44: #{deep_network_forward.5} parent=39 // pred_fallthru
        _
    $region40: #{deep_network_forward.5} parent=5 // pred_fallthru
      _
  $region6: #{deep_network_forward.5} parent=0 // loop_footer
    %s13 = sadd.s32 1, %s9
  $region7: #{deep_network_forward.5} parent=0 // loop_footer_branch
    %8 = sbr.rel target = $region3
  $region8: #{deep_network_forward.5} parent=0 // loop_exit
    _

// kernel: deep_network_forward.6
$region0: #{deep_network_forward.6}
  #allocation0 [shape = 'u32[]', space=smem, size = 0x4, offset = 0x4, fixed_abs, tag = 'smem constant byte address 0x4 - core index']
  #allocation1 [shape = 'u32[144,128]{1,0:T(1,128)}', space=vmem, size = 0x12000, scoped, tag = 'internal scratch']
  %s0 = inlined_call_operand.vmem [shape: bf16[2,576,25], index: 0, kind: input, shape index: {}]
  %s1 = inlined_call_operand.vmem [shape: bf16[64,576], index: 1, kind: input, shape index: {}]
  %s2 = inlined_call_operand.vmem [shape: f32[64,1], index: 2, kind: input, shape index: {}]
  %s3 = inlined_call_operand.vmem [shape: bf16[2,64,25], index: 3, kind: output, shape index: {}]
  %s4 = sld [smem:[#allocation0]]
  $region45: #{deep_network_forward.6} parent=0
    _
  %s6 = ssub.s32 1, %s4
  %s7 = scalar_select 0, %s6, %s4
  loop: start=0, step=1, limit=4
  $region2: #{deep_network_forward.6} parent=0 // loop_pre_header
    _
  $region3: #{deep_network_forward.6} parent=0 // loop_header
    %s9 = sphi 0, %s13
    %p10 = scmp.ge.s32.totalorder %s9, 4
    %s19 = sphi 0, %s21
    %s22 = sphi 0, %s19
    %s23 = sphi 0, %s22
    %s39 = sphi 0, %s23
    %s43 = sphi 0, %s43
    %s45 = sphi 0, %s43
    %s46 = sphi 0, %s45
    %s60 = sphi 0, %s46
    %s64 = sphi 0, %s64
    %s66 = sphi 0, %s64
    %s67 = sphi 0, %s66
    %s81 = sphi 0, %s67
    %s87 = sphi 0, %s89
    %s90 = sphi 0, %s87
    %s91 = sphi 0, %s90
    %s107 = sphi 0, %s91
  $region4: #{deep_network_forward.6} parent=0 // loop_header_branch
    %12 = sbr.rel (%p10) target = $region8
  $region5: #{deep_network_forward.6} parent=0 // loop_body
    %s14 = ssub.s32 %s9, 1
    %s15 = ssub.s32 %s9, 2
    %s16 = sadd.s32 %s9, 1
    %s17 = ssub.s32 %s9, %s16
    %p18 = scmp.eq.s32.totalorder %s17, 0
    %s20 = sadd.s32 %s19, 1
    %s21 = scalar_select %p18, %s19, %s20
    %p24 = pneg %p18
    %p25 = scmp.eq.s32.totalorder %s9, 1
    %p26 = por %p24, %p25
    %p27 = scmp.ne.s32.totalorder %s19, %s22
    %p28 = scmp.eq.s32.totalorder %s9, 0
    %p29 = por %p27, %p28
    %p30 = scmp.ne.s32.totalorder %s19, %s22
    %p31 = scmp.eq.s32.totalorder %s14, 1
    %p32 = por %p30, %p31
    %p33 = scmp.ne.s32.totalorder %s22, %s23
    %p34 = scmp.eq.s32.totalorder %s14, 0
    %p35 = por %p33, %p34
    %p36 = scmp.ne.s32.totalorder %s22, %s23
    %p37 = scmp.eq.s32.totalorder %s15, 1
    %p38 = por %p36, %p37
    %p40 = scmp.ne.s32.totalorder %s23, %s39
    %p41 = scmp.eq.s32.totalorder %s15, 0
    %p42 = por %p40, %p41
    %s44 = sadd.s32 %s43, 1
    %p47 = scmp.eq.s32.totalorder %s9, 1
    %p48 = scmp.ne.s32.totalorder %s43, %s45
    %p49 = scmp.eq.s32.totalorder %s9, 0
    %p50 = por %p48, %p49
    %p51 = scmp.ne.s32.totalorder %s43, %s45
    %p52 = scmp.eq.s32.totalorder %s14, 1
    %p53 = por %p51, %p52
    %p54 = scmp.ne.s32.totalorder %s45, %s46
    %p55 = scmp.eq.s32.totalorder %s14, 0
    %p56 = por %p54, %p55
    %p57 = scmp.ne.s32.totalorder %s45, %s46
    %p58 = scmp.eq.s32.totalorder %s15, 1
    %p59 = por %p57, %p58
    %p61 = scmp.ne.s32.totalorder %s46, %s60
    %p62 = scmp.eq.s32.totalorder %s15, 0
    %p63 = por %p61, %p62
    %s65 = sadd.s32 %s64, 1
    %p68 = scmp.eq.s32.totalorder %s9, 1
    %p69 = scmp.ne.s32.totalorder %s64, %s66
    %p70 = scmp.eq.s32.totalorder %s9, 0
    %p71 = por %p69, %p70
    %p72 = scmp.ne.s32.totalorder %s64, %s66
    %p73 = scmp.eq.s32.totalorder %s14, 1
    %p74 = por %p72, %p73
    %p75 = scmp.ne.s32.totalorder %s66, %s67
    %p76 = scmp.eq.s32.totalorder %s14, 0
    %p77 = por %p75, %p76
    %p78 = scmp.ne.s32.totalorder %s66, %s67
    %p79 = scmp.eq.s32.totalorder %s15, 1
    %p80 = por %p78, %p79
    %p82 = scmp.ne.s32.totalorder %s67, %s81
    %p83 = scmp.eq.s32.totalorder %s15, 0
    %p84 = por %p82, %p83
    %s85 = ssub.s32 %s9, %s16
    %p86 = scmp.eq.s32.totalorder %s85, 0
    %s88 = sadd.s32 %s87, 1
    %s89 = scalar_select %p86, %s87, %s88
    %p92 = pneg %p86
    %p93 = scmp.eq.s32.totalorder %s9, 1
    %p94 = por %p92, %p93
    %p95 = scmp.ne.s32.totalorder %s87, %s90
    %p96 = scmp.eq.s32.totalorder %s9, 0
    %p97 = por %p95, %p96
    %p98 = scmp.ne.s32.totalorder %s87, %s90
    %p99 = scmp.eq.s32.totalorder %s14, 1
    %p100 = por %p98, %p99
    %p101 = scmp.ne.s32.totalorder %s90, %s91
    %p102 = scmp.eq.s32.totalorder %s14, 0
    %p103 = por %p101, %p102
    %p104 = scmp.ne.s32.totalorder %s90, %s91
    %p105 = scmp.eq.s32.totalorder %s15, 1
    %p106 = por %p104, %p105
    %p108 = scmp.ne.s32.totalorder %s91, %s107
    %p109 = scmp.eq.s32.totalorder %s15, 0
    %p110 = por %p108, %p109
    %p111 = scmp.le.s32.totalorder 1, %s9
    %p112 = scmp.lt.s32.totalorder %s9, 3
    %p113 = pnand %p111, %p112
    %p114 = pneg %p113
    // Predicated region
    $region9: #{deep_network_forward.6} parent=5 // pred_check
      _
    $region10: #{deep_network_forward.6} parent=5 // pred_check_branch
      %116 = sbr.rel (%p113) target = $region12
    $region11: #{deep_network_forward.6} parent=5 // pred_region
      %s117 = ssub.s32 %s9, 1
      // Predicated region
      $region13: #{deep_network_forward.6} parent=11 // pred_check
        %p118 = pneg %p56
      $region14: #{deep_network_forward.6} parent=11 // pred_check_branch
        %120 = sbr.rel (%p118) target = $region16
      $region15: #{deep_network_forward.6} parent=11 // pred_region
        _
      $region16: #{deep_network_forward.6} parent=11 // pred_fallthru
        _
      // Predicated region
      $region17: #{deep_network_forward.6} parent=11 // pred_check
        %p121 = pneg %p77
      $region18: #{deep_network_forward.6} parent=11 // pred_check_branch
        %123 = sbr.rel (%p121) target = $region20
      $region19: #{deep_network_forward.6} parent=11 // pred_region
        _
      $region20: #{deep_network_forward.6} parent=11 // pred_fallthru
        _
    $region12: #{deep_network_forward.6} parent=5 // pred_fallthru
      _
    %p124 = scmp.lt.s32.totalorder %s9, 2
    // Predicated region
    $region21: #{deep_network_forward.6} parent=5 // pred_check
      %p125 = pneg %p124
    $region22: #{deep_network_forward.6} parent=5 // pred_check_branch
      %127 = sbr.rel (%p125) target = $region24
    $region23: #{deep_network_forward.6} parent=5 // pred_region
      // Predicated region
      $region25: #{deep_network_forward.6} parent=23 // pred_check
        %p128 = pneg %p29
      $region26: #{deep_network_forward.6} parent=23 // pred_check_branch
        %130 = sbr.rel (%p128) target = $region28
      $region27: #{deep_network_forward.6} parent=23 // pred_region
        %p131 = scmp.lt.s32.totalorder %s9, 1
        %s132 = scalar_select %p131, %s9, 1
        %s133 = smul.addr %s132, 72
        %s134 = smul.addr %s133, 4
        %s135 = scalar_lea.vmem %s0, %s134
      $region28: #{deep_network_forward.6} parent=23 // pred_fallthru
        _
    $region24: #{deep_network_forward.6} parent=5 // pred_fallthru
      _
    %p136 = scmp.le.s32.totalorder 1, %s9
    %p137 = scmp.lt.s32.totalorder %s9, 3
    %p138 = pnand %p136, %p137
    %p139 = pneg %p138
    // Predicated region
    $region29: #{deep_network_forward.6} parent=5 // pred_check
      _
    $region30: #{deep_network_forward.6} parent=5 // pred_check_branch
      %141 = sbr.rel (%p138) target = $region32
    $region31: #{deep_network_forward.6} parent=5 // pred_region
      %s142 = ssub.s32 %s9, 1
      %p143 = scmp.lt.s32.totalorder %s14, 1
      %s144 = scalar_select %p143, %s14, 1
      %s145 = smul.addr %s144, 72
      %s146 = smul.addr %s145, 4
      %s147 = scalar_lea.vmem %s0, %s146
      %p148 = pneg %p35
      %p149 = pneg %p32
      %p150 = pneg %p56
      %p151 = pneg %p53
      %p152 = pneg %p77
      %p153 = pneg %p74
      %p154 = pneg %p103
      %p155 = pneg %p100
      %p156 = scmp.lt.s32.totalorder %s14, 1
      %s157 = scalar_select %p156, %s14, 1
      %s158 = smul.addr %s157, 8
      %s159 = smul.addr %s158, 4
      %s160 = scalar_lea.vmem %s3, %s159
      %p161 = scmp.lt.s32.totalorder %s14, 1
      %s162 = scalar_select %p161, %s14, 1
      %s163 = smul.addr %s162, 72
      %s164 = smul.addr %s163, 4
      %s165 = scalar_lea.vmem %s0, %s164
      %p166 = scmp.lt.s32.totalorder %s14, 1
      %s167 = scalar_select %p166, %s14, 1
      %s168 = smul.addr %s167, 8
      %s169 = smul.addr %s168, 4
      %s170 = scalar_lea.vmem %s3, %s169
      %v172 = vld [vmem:[%s1] sm:$0xff]
      %v173 = vld [vmem:[%s1 + $0x8] sm:$0xff]
      %v174 = vld [vmem:[%s1 + $0x10] sm:$0xf]
      %v175 = vld [vmem:[%s1 + $0x14] sm:$0xff]
      %v176 = vld [vmem:[%s1 + $0x1c] sm:$0xff]
      %v177 = vld [vmem:[%s1 + $0x24] sm:$0xf]
      %v178 = vld [vmem:[%s1 + $0x28] sm:$0xff]
      %v179 = vld [vmem:[%s1 + $0x30] sm:$0xff]
      %v180 = vld [vmem:[%s1 + $0x38] sm:$0xf]
      %v181 = vld [vmem:[%s1 + $0x3c] sm:$0xff]
      %v182 = vld [vmem:[%s1 + $0x44] sm:$0xff]
      %v183 = vld [vmem:[%s1 + $0x4c] sm:$0xf]
      %v184 = vld [vmem:[%s1 + $0x50] sm:$0xff]
      %v185 = vld [vmem:[%s1 + $0x58] sm:$0xff]
      %v186 = vld [vmem:[%s1 + $0x60] sm:$0xf]
      %v187 = vld [vmem:[%s1 + $0x64] sm:$0xff]
      %v188 = vld [vmem:[%s1 + $0x6c] sm:$0xff]
      %v189 = vld [vmem:[%s1 + $0x74] sm:$0xf]
      %v190 = vld [vmem:[%s1 + $0x78] sm:$0xff]
      %v191 = vld [vmem:[%s1 + $0x80] sm:$0xff]
      %v192 = vld [vmem:[%s1 + $0x88] sm:$0xf]
      %v193 = vld [vmem:[%s1 + $0x8c] sm:$0xff]
      %v194 = vld [vmem:[%s1 + $0x94] sm:$0xff]
      %v195 = vld [vmem:[%s1 + $0x9c] sm:$0xf]
      %v196 = vld [vmem:[%s165] sm:$0xf]
      %v197 = vld [vmem:[%s165 + $0x4] sm:$0xf]
      %v198 = vld [vmem:[%s165 + $0x8] sm:$0xf]
      %v199 = vld [vmem:[%s165 + $0xc] sm:$0xf]
      %v200 = vld [vmem:[%s165 + $0x10] sm:$0xf]
      %v201 = vld [vmem:[%s165 + $0x14] sm:$0xf]
      %v202 = vld [vmem:[%s165 + $0x18] sm:$0xf]
      %v203 = vld [vmem:[%s165 + $0x1c] sm:$0xf]
      %v204 = vld [vmem:[%s165 + $0x20] sm:$0xf]
      %v205 = vld [vmem:[%s165 + $0x24] sm:$0xf]
      %v206 = vld [vmem:[%s165 + $0x28] sm:$0xf]
      %v207 = vld [vmem:[%s165 + $0x2c] sm:$0xf]
      %v208 = vld [vmem:[%s165 + $0x30] sm:$0xf]
      %v209 = vld [vmem:[%s165 + $0x34] sm:$0xf]
      %v210 = vld [vmem:[%s165 + $0x38] sm:$0xf]
      %v211 = vld [vmem:[%s165 + $0x3c] sm:$0xf]
      %v212 = vld [vmem:[%s165 + $0x40] sm:$0xf]
      %v213 = vld [vmem:[%s165 + $0x44] sm:$0xf]
      %v214 = vld [vmem:[%s165 + $0x48] sm:$0xf]
      %v215 = vld [vmem:[%s165 + $0x4c] sm:$0xf]
      %v216 = vld [vmem:[%s165 + $0x50] sm:$0xf]
      %v217 = vld [vmem:[%s165 + $0x54] sm:$0xf]
      %v218 = vld [vmem:[%s165 + $0x58] sm:$0xf]
      %v219 = vld [vmem:[%s165 + $0x5c] sm:$0xf]
      %v220 = vld [vmem:[%s165 + $0x60] sm:$0xf]
      %v221 = vld [vmem:[%s165 + $0x64] sm:$0xf]
      %v222 = vld [vmem:[%s165 + $0x68] sm:$0xf]
      %v223 = vld [vmem:[%s165 + $0x6c] sm:$0xf]
      %v224 = vld [vmem:[%s165 + $0x70] sm:$0xf]
      %v225 = vld [vmem:[%s165 + $0x74] sm:$0xf]
      %v226 = vld [vmem:[%s165 + $0x78] sm:$0xf]
      %v227 = vld [vmem:[%s165 + $0x7c] sm:$0xf]
      %v228 = vld [vmem:[%s165 + $0x80] sm:$0xf]
      %v229 = vld [vmem:[%s165 + $0x84] sm:$0xf]
      %v230 = vld [vmem:[%s165 + $0x88] sm:$0xf]
      %v231 = vld [vmem:[%s165 + $0x8c] sm:$0xf]
      %v232 = vld [vmem:[%s165 + $0x90] sm:$0xf]
      %v233 = vld [vmem:[%s165 + $0x94] sm:$0xf]
      %v234 = vld [vmem:[%s165 + $0x98] sm:$0xf]
      %v235 = vld [vmem:[%s165 + $0x9c] sm:$0xf]
      %v236 = vld [vmem:[%s165 + $0xa0] sm:$0xf]
      %v237 = vld [vmem:[%s165 + $0xa4] sm:$0xf]
      %v238 = vld [vmem:[%s165 + $0xa8] sm:$0xf]
      %v239 = vld [vmem:[%s165 + $0xac] sm:$0xf]
      %v240 = vld [vmem:[%s165 + $0xb0] sm:$0xf]
      %v241 = vld [vmem:[%s165 + $0xb4] sm:$0xf]
      %v242 = vld [vmem:[%s165 + $0xb8] sm:$0xf]
      %v243 = vld [vmem:[%s165 + $0xbc] sm:$0xf]
      %v244 = vld [vmem:[%s165 + $0xc0] sm:$0xf]
      %v245 = vld [vmem:[%s165 + $0xc4] sm:$0xf]
      %v246 = vld [vmem:[%s165 + $0xc8] sm:$0xf]
      %v247 = vld [vmem:[%s165 + $0xcc] sm:$0xf]
      %v248 = vld [vmem:[%s165 + $0xd0] sm:$0xf]
      %v249 = vld [vmem:[%s165 + $0xd4] sm:$0xf]
      %v250 = vld [vmem:[%s165 + $0xd8] sm:$0xf]
      %v251 = vld [vmem:[%s165 + $0xdc] sm:$0xf]
      %v252 = vld [vmem:[%s165 + $0xe0] sm:$0xf]
      %v253 = vld [vmem:[%s165 + $0xe4] sm:$0xf]
      %v254 = vld [vmem:[%s165 + $0xe8] sm:$0xf]
      %v255 = vld [vmem:[%s165 + $0xec] sm:$0xf]
      %v256 = vld [vmem:[%s165 + $0xf0] sm:$0xf]
      %v257 = vld [vmem:[%s165 + $0xf4] sm:$0xf]
      %v258 = vld [vmem:[%s165 + $0xf8] sm:$0xf]
      %v259 = vld [vmem:[%s165 + $0xfc] sm:$0xf]
      %v260 = vld [vmem:[%s165 + $0x100] sm:$0xf]
      %v261 = vld [vmem:[%s165 + $0x104] sm:$0xf]
      %v262 = vld [vmem:[%s165 + $0x108] sm:$0xf]
      %v263 = vld [vmem:[%s165 + $0x10c] sm:$0xf]
      %v264 = vld [vmem:[%s165 + $0x110] sm:$0xf]
      %v265 = vld [vmem:[%s165 + $0x114] sm:$0xf]
      %v266 = vld [vmem:[%s165 + $0x118] sm:$0xf]
      %v267 = vld [vmem:[%s165 + $0x11c] sm:$0xf]
      %v268 = vld [vmem:[%s2] sm:$0xff]
      %v269 = vld [vmem:[%s2 + $0x8] sm:$0xff]
      %v270 = vld [vmem:[%s2 + $0x10] sm:$0xff]
      %v271 = vld [vmem:[%s2 + $0x18] sm:$0xff]
      %v272 = vld [vmem:[%s2 + $0x20] sm:$0xff]
      %v273 = vld [vmem:[%s2 + $0x28] sm:$0xff]
      %v274 = vld [vmem:[%s2 + $0x30] sm:$0xff]
      %v275 = vld [vmem:[%s2 + $0x38] sm:$0xff]
      %277 = vset.pattern.permute.xlu0 0
      %278 = vperm.xlu0 %277, %v268
      %v279 = vpop.permute.xlu0 %278
      %282 = vset.pattern.permute.xlu0 0
      %283 = vperm.xlu0 %282, %v269
      %v284 = vpop.permute.xlu0 %283
      %287 = vset.pattern.permute.xlu0 0
      %288 = vperm.xlu0 %287, %v270
      %v289 = vpop.permute.xlu0 %288
      %292 = vset.pattern.permute.xlu0 0
      %293 = vperm.xlu0 %292, %v271
      %v294 = vpop.permute.xlu0 %293
      %297 = vset.pattern.permute.xlu0 0
      %298 = vperm.xlu0 %297, %v272
      %v299 = vpop.permute.xlu0 %298
      %302 = vset.pattern.permute.xlu0 0
      %303 = vperm.xlu0 %302, %v273
      %v304 = vpop.permute.xlu0 %303
      %307 = vset.pattern.permute.xlu0 0
      %308 = vperm.xlu0 %307, %v274
      %v309 = vpop.permute.xlu0 %308
      %312 = vset.pattern.permute.xlu0 0
      %313 = vperm.xlu0 %312, %v275
      %v314 = vpop.permute.xlu0 %313
      %v340 = vunpack.c.l.b16 %v172
      %v341 = vunpack.c.h.b16 %v172
      %v342 = vunpack.c.l.b16 %v173
      %v343 = vunpack.c.h.b16 %v173
      %v344 = vunpack.c.l.b16 %v174
      %v345 = vunpack.c.l.b16 %v175
      %v346 = vunpack.c.h.b16 %v175
      %v347 = vunpack.c.l.b16 %v176
      %v348 = vunpack.c.h.b16 %v176
      %v349 = vunpack.c.l.b16 %v177
      %v350 = vunpack.c.l.b16 %v178
      %v351 = vunpack.c.h.b16 %v178
      %v352 = vunpack.c.l.b16 %v179
      %v353 = vunpack.c.h.b16 %v179
      %v354 = vunpack.c.l.b16 %v180
      %v355 = vunpack.c.l.b16 %v181
      %v356 = vunpack.c.h.b16 %v181
      %v357 = vunpack.c.l.b16 %v182
      %v358 = vunpack.c.h.b16 %v182
      %v359 = vunpack.c.l.b16 %v183
      %v360 = vunpack.c.l.b16 %v184
      %v361 = vunpack.c.h.b16 %v184
      %v362 = vunpack.c.l.b16 %v185
      %v363 = vunpack.c.h.b16 %v185
      %v364 = vunpack.c.l.b16 %v186
      %v365 = vunpack.c.l.b16 %v187
      %v366 = vunpack.c.h.b16 %v187
      %v367 = vunpack.c.l.b16 %v188
      %v368 = vunpack.c.h.b16 %v188
      %v369 = vunpack.c.l.b16 %v189
      %v370 = vunpack.c.l.b16 %v190
      %v371 = vunpack.c.h.b16 %v190
      %v372 = vunpack.c.l.b16 %v191
      %v373 = vunpack.c.h.b16 %v191
      %v374 = vunpack.c.l.b16 %v192
      %v375 = vunpack.c.l.b16 %v193
      %v376 = vunpack.c.h.b16 %v193
      %v377 = vunpack.c.l.b16 %v194
      %v378 = vunpack.c.h.b16 %v194
      %v379 = vunpack.c.l.b16 %v195
      %v380 = vpack.c.b16 %v345, %v340
      %v381 = vpack.c.b16 %v346, %v341
      %v382 = vpack.c.b16 %v347, %v342
      %v383 = vpack.c.b16 %v348, %v343
      %v384 = vpack.c.b16 %v349, %v344
      %v385 = vpack.c.b16 %v355, %v350
      %v386 = vpack.c.b16 %v356, %v351
      %v387 = vpack.c.b16 %v357, %v352
      %v388 = vpack.c.b16 %v358, %v353
      %v389 = vpack.c.b16 %v359, %v354
      %v390 = vpack.c.b16 %v365, %v360
      %v391 = vpack.c.b16 %v366, %v361
      %v392 = vpack.c.b16 %v367, %v362
      %v393 = vpack.c.b16 %v368, %v363
      %v394 = vpack.c.b16 %v369, %v364
      %v395 = vpack.c.b16 %v375, %v370
      %v396 = vpack.c.b16 %v376, %v371
      %v397 = vpack.c.b16 %v377, %v372
      %v398 = vpack.c.b16 %v378, %v373
      %v399 = vpack.c.b16 %v379, %v374
      %v488 = vunpack.c.l.b16 %v196
      %v489 = vunpack.c.l.b16 %v197
      %v490 = vunpack.c.l.b16 %v198
      %v491 = vunpack.c.l.b16 %v199
      %v492 = vunpack.c.l.b16 %v200
      %v493 = vunpack.c.l.b16 %v201
      %v494 = vunpack.c.l.b16 %v202
      %v495 = vunpack.c.l.b16 %v203
      %v496 = vunpack.c.l.b16 %v204
      %v497 = vunpack.c.l.b16 %v205
      %v498 = vunpack.c.l.b16 %v206
      %v499 = vunpack.c.l.b16 %v207
      %v500 = vunpack.c.l.b16 %v208
      %v501 = vunpack.c.l.b16 %v209
      %v502 = vunpack.c.l.b16 %v210
      %v503 = vunpack.c.l.b16 %v211
      %v504 = vunpack.c.l.b16 %v212
      %v505 = vunpack.c.l.b16 %v213
      %v506 = vunpack.c.l.b16 %v214
      %v507 = vunpack.c.l.b16 %v215
      %v508 = vunpack.c.l.b16 %v216
      %v509 = vunpack.c.l.b16 %v217
      %v510 = vunpack.c.l.b16 %v218
      %v511 = vunpack.c.l.b16 %v219
      %v512 = vunpack.c.l.b16 %v220
      %v513 = vunpack.c.l.b16 %v221
      %v514 = vunpack.c.l.b16 %v222
      %v515 = vunpack.c.l.b16 %v223
      %v516 = vunpack.c.l.b16 %v224
      %v517 = vunpack.c.l.b16 %v225
      %v518 = vunpack.c.l.b16 %v226
      %v519 = vunpack.c.l.b16 %v227
      %v520 = vunpack.c.l.b16 %v228
      %v521 = vunpack.c.l.b16 %v229
      %v522 = vunpack.c.l.b16 %v230
      %v523 = vunpack.c.l.b16 %v231
      %v524 = vunpack.c.l.b16 %v232
      %v525 = vunpack.c.l.b16 %v233
      %v526 = vunpack.c.l.b16 %v234
      %v527 = vunpack.c.l.b16 %v235
      %v528 = vunpack.c.l.b16 %v236
      %v529 = vunpack.c.l.b16 %v237
      %v530 = vunpack.c.l.b16 %v238
      %v531 = vunpack.c.l.b16 %v239
      %v532 = vunpack.c.l.b16 %v240
      %v533 = vunpack.c.l.b16 %v241
      %v534 = vunpack.c.l.b16 %v242
      %v535 = vunpack.c.l.b16 %v243
      %v536 = vunpack.c.l.b16 %v244
      %v537 = vunpack.c.l.b16 %v245
      %v538 = vunpack.c.l.b16 %v246
      %v539 = vunpack.c.l.b16 %v247
      %v540 = vunpack.c.l.b16 %v248
      %v541 = vunpack.c.l.b16 %v249
      %v542 = vunpack.c.l.b16 %v250
      %v543 = vunpack.c.l.b16 %v251
      %v544 = vunpack.c.l.b16 %v252
      %v545 = vunpack.c.l.b16 %v253
      %v546 = vunpack.c.l.b16 %v254
      %v547 = vunpack.c.l.b16 %v255
      %v548 = vunpack.c.l.b16 %v256
      %v549 = vunpack.c.l.b16 %v257
      %v550 = vunpack.c.l.b16 %v258
      %v551 = vunpack.c.l.b16 %v259
      %v552 = vunpack.c.l.b16 %v260
      %v553 = vunpack.c.l.b16 %v261
      %v554 = vunpack.c.l.b16 %v262
      %v555 = vunpack.c.l.b16 %v263
      %v556 = vunpack.c.l.b16 %v264
      %v557 = vunpack.c.l.b16 %v265
      %v558 = vunpack.c.l.b16 %v266
      %v559 = vunpack.c.l.b16 %v267
      %v560 = vpack.c.b16 %v489, %v488
      %v561 = vpack.c.b16 %v491, %v490
      %v562 = vpack.c.b16 %v493, %v492
      %v563 = vpack.c.b16 %v495, %v494
      %v564 = vpack.c.b16 %v497, %v496
      %v565 = vpack.c.b16 %v499, %v498
      %v566 = vpack.c.b16 %v501, %v500
      %v567 = vpack.c.b16 %v503, %v502
      %v568 = vpack.c.b16 %v505, %v504
      %v569 = vpack.c.b16 %v507, %v506
      %v570 = vpack.c.b16 %v509, %v508
      %v571 = vpack.c.b16 %v511, %v510
      %v572 = vpack.c.b16 %v513, %v512
      %v573 = vpack.c.b16 %v515, %v514
      %v574 = vpack.c.b16 %v517, %v516
      %v575 = vpack.c.b16 %v519, %v518
      %v576 = vpack.c.b16 %v521, %v520
      %v577 = vpack.c.b16 %v523, %v522
      %v578 = vpack.c.b16 %v525, %v524
      %v579 = vpack.c.b16 %v527, %v526
      %v580 = vpack.c.b16 %v529, %v528
      %v581 = vpack.c.b16 %v531, %v530
      %v582 = vpack.c.b16 %v533, %v532
      %v583 = vpack.c.b16 %v535, %v534
      %v584 = vpack.c.b16 %v537, %v536
      %v585 = vpack.c.b16 %v539, %v538
      %v586 = vpack.c.b16 %v541, %v540
      %v587 = vpack.c.b16 %v543, %v542
      %v588 = vpack.c.b16 %v545, %v544
      %v589 = vpack.c.b16 %v547, %v546
      %v590 = vpack.c.b16 %v549, %v548
      %v591 = vpack.c.b16 %v551, %v550
      %v592 = vpack.c.b16 %v553, %v552
      %v593 = vpack.c.b16 %v555, %v554
      %v594 = vpack.c.b16 %v557, %v556
      %v595 = vpack.c.b16 %v559, %v558
      %vm632 = vcmask 523264
      %v634 = vsel %vm632, %v384, 0
      %v637 = vsel %vm632, %v389, 0
      %v640 = vsel %vm632, %v394, 0
      %v643 = vsel %vm632, %v399, 0
      %645 = vmatprep.subr.bf16.mxu0 0
      %646 = vmatpush1.bf16.msra.mxu0 %v567
      %647 = vmatprep.subr.bf16.mxu0 0
      %648 = vmatpush1.bf16.msra.mxu0 %v566
      %649 = vmatprep.subr.bf16.mxu0 0
      %650 = vmatpush1.bf16.msra.mxu0 %v565
      %651 = vmatprep.subr.bf16.mxu0 0
      %652 = vmatpush1.bf16.msra.mxu0 %v564
      %653 = vmatprep.subr.bf16.mxu0 0
      %654 = vmatpush1.bf16.msra.mxu0 %v563
      %655 = vmatprep.subr.bf16.mxu0 0
      %656 = vmatpush1.bf16.msra.mxu0 %v562
      %657 = vmatprep.subr.bf16.mxu0 0
      %658 = vmatpush1.bf16.msra.mxu0 %v561
      %659 = vmatprep.subr.bf16.mxu0 0
      %660 = vmatpush1.bf16.msra.mxu0 %v560
      %661 = vmatprep.subr.bf16.mxu0 0
      %662 = vmatpush2.bf16.msra.mxu0 %v575
      %663 = vmatprep.subr.bf16.mxu0 0
      %664 = vmatpush2.bf16.msra.mxu0 %v574
      %665 = vmatprep.subr.bf16.mxu0 0
      %666 = vmatpush2.bf16.msra.mxu0 %v573
      %667 = vmatprep.subr.bf16.mxu0 0
      %668 = vmatpush2.bf16.msra.mxu0 %v572
      %669 = vmatprep.subr.bf16.mxu0 0
      %670 = vmatpush2.bf16.msra.mxu0 %v571
      %671 = vmatprep.subr.bf16.mxu0 0
      %672 = vmatpush2.bf16.msra.mxu0 %v570
      %673 = vmatprep.subr.bf16.mxu0 0
      %674 = vmatpush2.bf16.msra.mxu0 %v569
      %675 = vmatprep.subr.bf16.mxu0 0
      %676 = vmatpush2.bf16.msra.mxu0 %v568
      %677 = vmatprep.mubr.bf16.mxu0 %v381
      %678 = vmatmul.mubr.bf16.gmra.mxu0 %v380
      %v679 = vpop.f32.mrf.mxu0
      %v680 = vadd.f32 %v279, %v679
      %v681 = vpop.f32.mrf.mxu0
      %v682 = vpop.f32.mrf.mxu0
      %v683 = vadd.f32 %v284, %v682
      %v684 = vpop.f32.mrf.mxu0
      %685 = vmatprep.mubr.bf16.mxu0 %v386
      %686 = vmatmul.mubr.bf16.gmra.mxu0 %v385
      %v687 = vpop.f32.mrf.mxu0
      %v688 = vadd.f32 %v289, %v687
      %v689 = vpop.f32.mrf.mxu0
      %v690 = vpop.f32.mrf.mxu0
      %v691 = vadd.f32 %v294, %v690
      %v692 = vpop.f32.mrf.mxu0
      %693 = vmatprep.mubr.bf16.mxu0 %v391
      %694 = vmatmul.mubr.bf16.gmra.mxu0 %v390
      %v695 = vpop.f32.mrf.mxu0
      %v696 = vadd.f32 %v299, %v695
      %v697 = vpop.f32.mrf.mxu0
      %v698 = vpop.f32.mrf.mxu0
      %v699 = vadd.f32 %v304, %v698
      %v700 = vpop.f32.mrf.mxu0
      %701 = vmatprep.mubr.bf16.mxu0 %v396
      %702 = vmatmul.mubr.bf16.gmra.mxu0 %v395
      %v703 = vpop.f32.mrf.mxu0
      %v704 = vadd.f32 %v309, %v703
      %v705 = vpop.f32.mrf.mxu0
      %v706 = vpop.f32.mrf.mxu0
      %v707 = vadd.f32 %v314, %v706
      %v708 = vpop.f32.mrf.mxu0
      %709 = vdwg.mxu0
      %710 = vmatprep.subr.bf16.mxu0 0
      %711 = vmatpush1.bf16.msra.mxu0 %v583
      %712 = vmatprep.subr.bf16.mxu0 0
      %713 = vmatpush1.bf16.msra.mxu0 %v582
      %714 = vmatprep.subr.bf16.mxu0 0
      %715 = vmatpush1.bf16.msra.mxu0 %v581
      %716 = vmatprep.subr.bf16.mxu0 0
      %717 = vmatpush1.bf16.msra.mxu0 %v580
      %718 = vmatprep.subr.bf16.mxu0 0
      %719 = vmatpush1.bf16.msra.mxu0 %v579
      %720 = vmatprep.subr.bf16.mxu0 0
      %721 = vmatpush1.bf16.msra.mxu0 %v578
      %722 = vmatprep.subr.bf16.mxu0 0
      %723 = vmatpush1.bf16.msra.mxu0 %v577
      %724 = vmatprep.subr.bf16.mxu0 0
      %725 = vmatpush1.bf16.msra.mxu0 %v576
      %726 = vmatprep.subr.bf16.mxu0 0
      %727 = vmatpush2.bf16.msra.mxu0 %v591
      %728 = vmatprep.subr.bf16.mxu0 0
      %729 = vmatpush2.bf16.msra.mxu0 %v590
      %730 = vmatprep.subr.bf16.mxu0 0
      %731 = vmatpush2.bf16.msra.mxu0 %v589
      %732 = vmatprep.subr.bf16.mxu0 0
      %733 = vmatpush2.bf16.msra.mxu0 %v588
      %734 = vmatprep.subr.bf16.mxu0 0
      %735 = vmatpush2.bf16.msra.mxu0 %v587
      %736 = vmatprep.subr.bf16.mxu0 0
      %737 = vmatpush2.bf16.msra.mxu0 %v586
      %738 = vmatprep.subr.bf16.mxu0 0
      %739 = vmatpush2.bf16.msra.mxu0 %v585
      %740 = vmatprep.subr.bf16.mxu0 0
      %741 = vmatpush2.bf16.msra.mxu0 %v584
      %742 = vmatprep.mubr.bf16.mxu0 %v383
      %743 = vmatmul.mubr.bf16.gmra.mxu0 %v382
      %v744 = vpop.f32.mrf.mxu0
      %v745 = vadd.f32 %v680, %v744
      %v746 = vpop.f32.mrf.mxu0
      %v747 = vpop.f32.mrf.mxu0
      %v748 = vadd.f32 %v683, %v747
      %v749 = vpop.f32.mrf.mxu0
      %750 = vmatprep.mubr.bf16.mxu0 %v388
      %751 = vmatmul.mubr.bf16.gmra.mxu0 %v387
      %v752 = vpop.f32.mrf.mxu0
      %v753 = vadd.f32 %v688, %v752
      %v754 = vpop.f32.mrf.mxu0
      %v755 = vpop.f32.mrf.mxu0
      %v756 = vadd.f32 %v691, %v755
      %v757 = vpop.f32.mrf.mxu0
      %758 = vmatprep.mubr.bf16.mxu0 %v393
      %759 = vmatmul.mubr.bf16.gmra.mxu0 %v392
      %v760 = vpop.f32.mrf.mxu0
      %v761 = vadd.f32 %v696, %v760
      %v762 = vpop.f32.mrf.mxu0
      %v763 = vpop.f32.mrf.mxu0
      %v764 = vadd.f32 %v699, %v763
      %v765 = vpop.f32.mrf.mxu0
      %766 = vmatprep.mubr.bf16.mxu0 %v398
      %767 = vmatmul.mubr.bf16.gmra.mxu0 %v397
      %v768 = vpop.f32.mrf.mxu0
      %v769 = vadd.f32 %v704, %v768
      %v770 = vpop.f32.mrf.mxu0
      %v771 = vpop.f32.mrf.mxu0
      %v772 = vadd.f32 %v707, %v771
      %v773 = vpop.f32.mrf.mxu0
      %774 = vdwg.mxu0
      %775 = vmatprep.subr.bf16.mxu0 0
      %776 = vmatpush1.bf16.msra.mxu0 0
      %777 = vmatprep.subr.bf16.mxu0 0
      %778 = vmatpush1.bf16.msra.mxu0 0
      %779 = vmatprep.subr.bf16.mxu0 0
      %780 = vmatpush1.bf16.msra.mxu0 0
      %781 = vmatprep.subr.bf16.mxu0 0
      %782 = vmatpush1.bf16.msra.mxu0 0
      %783 = vmatprep.subr.bf16.mxu0 0
      %784 = vmatpush1.bf16.msra.mxu0 %v595
      %785 = vmatprep.subr.bf16.mxu0 0
      %786 = vmatpush1.bf16.msra.mxu0 %v594
      %787 = vmatprep.subr.bf16.mxu0 0
      %788 = vmatpush1.bf16.msra.mxu0 %v593
      %789 = vmatprep.subr.bf16.mxu0 0
      %790 = vmatpush1.bf16.msra.mxu0 %v592
      %791 = vmatprep.subr.bf16.mxu0 0
      %792 = vmatpush2.bf16.msra.mxu0 0
      %793 = vmatprep.subr.bf16.mxu0 0
      %794 = vmatpush2.bf16.msra.mxu0 0
      %795 = vmatprep.subr.bf16.mxu0 0
      %796 = vmatpush2.bf16.msra.mxu0 0
      %797 = vmatprep.subr.bf16.mxu0 0
      %798 = vmatpush2.bf16.msra.mxu0 0
      %799 = vmatprep.subr.bf16.mxu0 0
      %800 = vmatpush2.bf16.msra.mxu0 0
      %801 = vmatprep.subr.bf16.mxu0 0
      %802 = vmatpush2.bf16.msra.mxu0 0
      %803 = vmatprep.subr.bf16.mxu0 0
      %804 = vmatpush2.bf16.msra.mxu0 0
      %805 = vmatprep.subr.bf16.mxu0 0
      %806 = vmatpush2.bf16.msra.mxu0 0
      %807 = vmatprep.mubr.bf16.mxu0 0
      %808 = vmatmul.mubr.bf16.gmra.mxu0 %v634
      %v809 = vpop.f32.mrf.mxu0
      %v810 = vadd.f32 %v745, %v809
      %v811 = vpop.f32.mrf.mxu0
      %v812 = vpop.f32.mrf.mxu0
      %v813 = vadd.f32 %v748, %v812
      %v814 = vpop.f32.mrf.mxu0
      %815 = vmatprep.mubr.bf16.mxu0 0
      %816 = vmatmul.mubr.bf16.gmra.mxu0 %v637
      %v817 = vpop.f32.mrf.mxu0
      %v818 = vadd.f32 %v753, %v817
      %v819 = vpop.f32.mrf.mxu0
      %v820 = vpop.f32.mrf.mxu0
      %v821 = vadd.f32 %v756, %v820
      %v822 = vpop.f32.mrf.mxu0
      %823 = vmatprep.mubr.bf16.mxu0 0
      %824 = vmatmul.mubr.bf16.gmra.mxu0 %v640
      %v825 = vpop.f32.mrf.mxu0
      %v826 = vadd.f32 %v761, %v825
      %v827 = vpop.f32.mrf.mxu0
      %v828 = vpop.f32.mrf.mxu0
      %v829 = vadd.f32 %v764, %v828
      %v830 = vpop.f32.mrf.mxu0
      %831 = vmatprep.mubr.bf16.mxu0 0
      %832 = vmatmul.mubr.bf16.gmra.mxu0 %v643
      %v833 = vpop.f32.mrf.mxu0
      %v834 = vadd.f32 %v769, %v833
      %v835 = vpop.f32.mrf.mxu0
      %v836 = vpop.f32.mrf.mxu0
      %v837 = vadd.f32 %v772, %v836
      %v838 = vpop.f32.mrf.mxu0
      %839 = vdwg.mxu0
      %v840 = vmax.f32 %v810, 0.0
      %v841 = vmax.f32 %v813, 0.0
      %v842 = vmax.f32 %v818, 0.0
      %v843 = vmax.f32 %v821, 0.0
      %v844 = vmax.f32 %v826, 0.0
      %v845 = vmax.f32 %v829, 0.0
      %v846 = vmax.f32 %v834, 0.0
      %v847 = vmax.f32 %v837, 0.0
      %v848 = vpack.c.bf16 %v841, %v840
      %v849 = vpack.c.bf16 %v843, %v842
      %v850 = vpack.c.bf16 %v845, %v844
      %v851 = vpack.c.bf16 %v847, %v846
      %v856 = vunpack.c.l.b16 %v848
      %v857 = vunpack.c.h.b16 %v848
      %v858 = vunpack.c.l.b16 %v849
      %v859 = vunpack.c.h.b16 %v849
      %v860 = vunpack.c.l.b16 %v850
      %v861 = vunpack.c.h.b16 %v850
      %v862 = vunpack.c.l.b16 %v851
      %v863 = vunpack.c.h.b16 %v851
      %v864 = vpack.c.b16 %v856, %v856
      %v865 = vpack.c.b16 %v857, %v857
      %v866 = vpack.c.b16 %v858, %v858
      %v867 = vpack.c.b16 %v859, %v859
      %v868 = vpack.c.b16 %v860, %v860
      %v869 = vpack.c.b16 %v861, %v861
      %v870 = vpack.c.b16 %v862, %v862
      %v871 = vpack.c.b16 %v863, %v863
      %vm880 = vcmask 199680
      %881 = vst.msk [vmem:[%s170] sm:$0xf] %vm880, %v864
      %882 = vst.msk [vmem:[%s170 + $0x4] sm:$0xf] %vm880, %v865
      %883 = vst.msk [vmem:[%s170 + $0x8] sm:$0xf] %vm880, %v866
      %884 = vst.msk [vmem:[%s170 + $0xc] sm:$0xf] %vm880, %v867
      %885 = vst.msk [vmem:[%s170 + $0x10] sm:$0xf] %vm880, %v868
      %886 = vst.msk [vmem:[%s170 + $0x14] sm:$0xf] %vm880, %v869
      %887 = vst.msk [vmem:[%s170 + $0x18] sm:$0xf] %vm880, %v870
      %888 = vst.msk [vmem:[%s170 + $0x1c] sm:$0xf] %vm880, %v871
      %p889 = scmp.lt.s32.totalorder %s14, 1
      %s890 = scalar_select %p889, %s14, 1
      %s891 = smul.addr %s890, 8
      %s892 = smul.addr %s891, 4
      %s893 = scalar_lea.vmem %s3, %s892
      // Predicated region
      $region33: #{deep_network_forward.6} parent=31 // pred_check
        %p894 = pneg %p100
      $region34: #{deep_network_forward.6} parent=31 // pred_check_branch
        %896 = sbr.rel (%p894) target = $region36
      $region35: #{deep_network_forward.6} parent=31 // pred_region
        _
      $region36: #{deep_network_forward.6} parent=31 // pred_fallthru
        _
    $region32: #{deep_network_forward.6} parent=5 // pred_fallthru
      _
    %p897 = scmp.le.s32.totalorder 2, %s9
    // Predicated region
    $region37: #{deep_network_forward.6} parent=5 // pred_check
      %p898 = pneg %p897
    $region38: #{deep_network_forward.6} parent=5 // pred_check_branch
      %900 = sbr.rel (%p898) target = $region40
    $region39: #{deep_network_forward.6} parent=5 // pred_region
      %s901 = ssub.s32 %s9, 2
      // Predicated region
      $region41: #{deep_network_forward.6} parent=39 // pred_check
        %p902 = pneg %p106
      $region42: #{deep_network_forward.6} parent=39 // pred_check_branch
        %904 = sbr.rel (%p902) target = $region44
      $region43: #{deep_network_forward.6} parent=39 // pred_region
        %p905 = scmp.lt.s32.totalorder %s15, 1
        %s906 = scalar_select %p905, %s15, 1
        %s907 = smul.addr %s906, 8
        %s908 = smul.addr %s907, 4
        %s909 = scalar_lea.vmem %s3, %s908
      $region44: #{deep_network_forward.6} parent=39 // pred_fallthru
        _
    $region40: #{deep_network_forward.6} parent=5 // pred_fallthru
      _
  $region6: #{deep_network_forward.6} parent=0 // loop_footer
    %s13 = sadd.s32 1, %s9
  $region7: #{deep_network_forward.6} parent=0 // loop_footer_branch
    %8 = sbr.rel target = $region3
  $region8: #{deep_network_forward.6} parent=0 // loop_exit
    _

// kernel: deep_network_forward.7
$region0: #{deep_network_forward.7}
  #allocation0 [shape = 'u32[]', space=smem, size = 0x4, offset = 0x4, fixed_abs, tag = 'smem constant byte address 0x4 - core index']
  #allocation1 [shape = 'u32[144,128]{1,0:T(1,128)}', space=vmem, size = 0x12000, scoped, tag = 'internal scratch']
  %s0 = inlined_call_operand.vmem [shape: bf16[2,1600], index: 0, kind: input, shape index: {}]
  %s1 = inlined_call_operand.vmem [shape: bf16[1600,256], index: 1, kind: input, shape index: {}]
  %s2 = inlined_call_operand.vmem [shape: f32[1,256], index: 2, kind: input, shape index: {}]
  %s3 = inlined_call_operand.vmem [shape: f32[256,5], index: 3, kind: input, shape index: {}]
  %s4 = inlined_call_operand.vmem [shape: f32[1,5], index: 4, kind: input, shape index: {}]
  %s5 = inlined_call_operand.hbm [shape: f32[2,5], index: 5, kind: output, shape index: {}]
  %s6 = sld [smem:[#allocation0]]
  $region30: #{deep_network_forward.7} parent=0
    _
  %s8 = ssub.s32 1, %s6
  %s9 = scalar_select 0, %s8, %s6
  $region1: #{deep_network_forward.7} parent=0
    #allocation2 [shape = 'u8[1024]{0}', space=vmem, size = 0x400, scoped, tag = 'output window, operand 0, single buffered']
    #allocation3 [shape = 's32[1]{0}', space=sflag, size = 0x4, scoped, tag = 'scoped memory for deep_network_forward.7']
    %10 = vsyncpa [#allocation3], 0
    // Predicated region
    $region2: #{deep_network_forward.7} parent=1 // pred_check
      _
    $region3: #{deep_network_forward.7} parent=1 // pred_check_branch
      %12 = sbr.rel (0) target = $region5
    $region4: #{deep_network_forward.7} parent=1 // pred_region
      _
    $region5: #{deep_network_forward.7} parent=1 // pred_fallthru
      _
    // Predicated region
    $region6: #{deep_network_forward.7} parent=1 // pred_check
      _
    $region7: #{deep_network_forward.7} parent=1 // pred_check_branch
      %14 = sbr.rel (0) target = $region9
    $region8: #{deep_network_forward.7} parent=1 // pred_region
      _
    $region9: #{deep_network_forward.7} parent=1 // pred_fallthru
      _
    // Predicated region
    $region10: #{deep_network_forward.7} parent=1 // pred_check
      _
    $region11: #{deep_network_forward.7} parent=1 // pred_check_branch
      %16 = sbr.rel (0) target = $region13
    $region12: #{deep_network_forward.7} parent=1 // pred_region
      _
    $region13: #{deep_network_forward.7} parent=1 // pred_fallthru
      _
    // Predicated region
    $region14: #{deep_network_forward.7} parent=1 // pred_check
      _
    $region15: #{deep_network_forward.7} parent=1 // pred_check_branch
      %18 = sbr.rel (0) target = $region17
    $region16: #{deep_network_forward.7} parent=1 // pred_region
      _
    $region17: #{deep_network_forward.7} parent=1 // pred_fallthru
      _
    // Predicated region
    $region18: #{deep_network_forward.7} parent=1 // pred_check
      _
    $region19: #{deep_network_forward.7} parent=1 // pred_check_branch
      %20 = sbr.rel (0) target = $region21
    $region20: #{deep_network_forward.7} parent=1 // pred_region
      _
    $region21: #{deep_network_forward.7} parent=1 // pred_fallthru
      _
    %v22 = vld [vmem:[%s0] sm:$0xff]
    %v23 = vld [vmem:[%s0 + $0x8] sm:$0x1f]
    %v24 = vld [vmem:[%s1] sm:$0xff]
    %v25 = vld [vmem:[%s1 + $0x8] sm:$0xff]
    %v26 = vld [vmem:[%s1 + $0x10] sm:$0xff]
    %v27 = vld [vmem:[%s1 + $0x18] sm:$0xff]
    %v28 = vld [vmem:[%s1 + $0x20] sm:$0xff]
    %v29 = vld [vmem:[%s1 + $0x28] sm:$0xff]
    %v30 = vld [vmem:[%s1 + $0x30] sm:$0xff]
    %v31 = vld [vmem:[%s1 + $0x38] sm:$0xff]
    %v32 = vld [vmem:[%s1 + $0x40] sm:$0xff]
    %v33 = vld [vmem:[%s1 + $0x48] sm:$0xff]
    %v34 = vld [vmem:[%s1 + $0x50] sm:$0xff]
    %v35 = vld [vmem:[%s1 + $0x58] sm:$0xff]
    %v36 = vld [vmem:[%s1 + $0x60] sm:$0xff]
    %v37 = vld [vmem:[%s1 + $0x68] sm:$0xff]
    %v38 = vld [vmem:[%s1 + $0x70] sm:$0xff]
    %v39 = vld [vmem:[%s1 + $0x78] sm:$0xff]
    %v40 = vld [vmem:[%s1 + $0x80] sm:$0xff]
    %v41 = vld [vmem:[%s1 + $0x88] sm:$0xff]
    %v42 = vld [vmem:[%s1 + $0x90] sm:$0xff]
    %v43 = vld [vmem:[%s1 + $0x98] sm:$0xff]
    %v44 = vld [vmem:[%s1 + $0xa0] sm:$0xff]
    %v45 = vld [vmem:[%s1 + $0xa8] sm:$0xff]
    %v46 = vld [vmem:[%s1 + $0xb0] sm:$0xff]
    %v47 = vld [vmem:[%s1 + $0xb8] sm:$0xff]
    %v48 = vld [vmem:[%s1 + $0xc0] sm:$0xff]
    %v49 = vld [vmem:[%s1 + $0xc8] sm:$0xff]
    %v50 = vld [vmem:[%s1 + $0xd0] sm:$0xff]
    %v51 = vld [vmem:[%s1 + $0xd8] sm:$0xff]
    %v52 = vld [vmem:[%s1 + $0xe0] sm:$0xff]
    %v53 = vld [vmem:[%s1 + $0xe8] sm:$0xff]
    %v54 = vld [vmem:[%s1 + $0xf0] sm:$0xff]
    %v55 = vld [vmem:[%s1 + $0xf8] sm:$0xff]
    %v56 = vld [vmem:[%s1 + $0x100] sm:$0xff]
    %v57 = vld [vmem:[%s1 + $0x108] sm:$0xff]
    %v58 = vld [vmem:[%s1 + $0x110] sm:$0xff]
    %v59 = vld [vmem:[%s1 + $0x118] sm:$0xff]
    %v60 = vld [vmem:[%s1 + $0x120] sm:$0xff]
    %v61 = vld [vmem:[%s1 + $0x128] sm:$0xff]
    %v62 = vld [vmem:[%s1 + $0x130] sm:$0xff]
    %v63 = vld [vmem:[%s1 + $0x138] sm:$0xff]
    %v64 = vld [vmem:[%s1 + $0x140] sm:$0xff]
    %v65 = vld [vmem:[%s1 + $0x148] sm:$0xff]
    %v66 = vld [vmem:[%s1 + $0x150] sm:$0xff]
    %v67 = vld [vmem:[%s1 + $0x158] sm:$0xff]
    %v68 = vld [vmem:[%s1 + $0x160] sm:$0xff]
    %v69 = vld [vmem:[%s1 + $0x168] sm:$0xff]
    %v70 = vld [vmem:[%s1 + $0x170] sm:$0xff]
    %v71 = vld [vmem:[%s1 + $0x178] sm:$0xff]
    %v72 = vld [vmem:[%s1 + $0x180] sm:$0xff]
    %v73 = vld [vmem:[%s1 + $0x188] sm:$0xff]
    %v74 = vld [vmem:[%s1 + $0x190] sm:$0xff]
    %v75 = vld [vmem:[%s1 + $0x198] sm:$0xff]
    %v76 = vld [vmem:[%s1 + $0x1a0] sm:$0xff]
    %v77 = vld [vmem:[%s1 + $0x1a8] sm:$0xff]
    %v78 = vld [vmem:[%s1 + $0x1b0] sm:$0xff]
    %v79 = vld [vmem:[%s1 + $0x1b8] sm:$0xff]
    %v80 = vld [vmem:[%s1 + $0x1c0] sm:$0xff]
    %v81 = vld [vmem:[%s1 + $0x1c8] sm:$0xff]
    %v82 = vld [vmem:[%s1 + $0x1d0] sm:$0xff]
    %v83 = vld [vmem:[%s1 + $0x1d8] sm:$0xff]
    %v84 = vld [vmem:[%s1 + $0x1e0] sm:$0xff]
    %v85 = vld [vmem:[%s1 + $0x1e8] sm:$0xff]
    %v86 = vld [vmem:[%s1 + $0x1f0] sm:$0xff]
    %v87 = vld [vmem:[%s1 + $0x1f8] sm:$0xff]
    %v88 = vld [vmem:[%s1 + $0x200] sm:$0xff]
    %v89 = vld [vmem:[%s1 + $0x208] sm:$0xff]
    %v90 = vld [vmem:[%s1 + $0x210] sm:$0xff]
    %v91 = vld [vmem:[%s1 + $0x218] sm:$0xff]
    %v92 = vld [vmem:[%s1 + $0x220] sm:$0xff]
    %v93 = vld [vmem:[%s1 + $0x228] sm:$0xff]
    %v94 = vld [vmem:[%s1 + $0x230] sm:$0xff]
    %v95 = vld [vmem:[%s1 + $0x238] sm:$0xff]
    %v96 = vld [vmem:[%s1 + $0x240] sm:$0xff]
    %v97 = vld [vmem:[%s1 + $0x248] sm:$0xff]
    %v98 = vld [vmem:[%s1 + $0x250] sm:$0xff]
    %v99 = vld [vmem:[%s1 + $0x258] sm:$0xff]
    %v100 = vld [vmem:[%s1 + $0x260] sm:$0xff]
    %v101 = vld [vmem:[%s1 + $0x268] sm:$0xff]
    %v102 = vld [vmem:[%s1 + $0x270] sm:$0xff]
    %v103 = vld [vmem:[%s1 + $0x278] sm:$0xff]
    %v104 = vld [vmem:[%s1 + $0x280] sm:$0xff]
    %v105 = vld [vmem:[%s1 + $0x288] sm:$0xff]
    %v106 = vld [vmem:[%s1 + $0x290] sm:$0xff]
    %v107 = vld [vmem:[%s1 + $0x298] sm:$0xff]
    %v108 = vld [vmem:[%s1 + $0x2a0] sm:$0xff]
    %v109 = vld [vmem:[%s1 + $0x2a8] sm:$0xff]
    %v110 = vld [vmem:[%s1 + $0x2b0] sm:$0xff]
    %v111 = vld [vmem:[%s1 + $0x2b8] sm:$0xff]
    %v112 = vld [vmem:[%s1 + $0x2c0] sm:$0xff]
    %v113 = vld [vmem:[%s1 + $0x2c8] sm:$0xff]
    %v114 = vld [vmem:[%s1 + $0x2d0] sm:$0xff]
    %v115 = vld [vmem:[%s1 + $0x2d8] sm:$0xff]
    %v116 = vld [vmem:[%s1 + $0x2e0] sm:$0xff]
    %v117 = vld [vmem:[%s1 + $0x2e8] sm:$0xff]
    %v118 = vld [vmem:[%s1 + $0x2f0] sm:$0xff]
    %v119 = vld [vmem:[%s1 + $0x2f8] sm:$0xff]
    %v120 = vld [vmem:[%s1 + $0x300] sm:$0xff]
    %v121 = vld [vmem:[%s1 + $0x308] sm:$0xff]
    %v122 = vld [vmem:[%s1 + $0x310] sm:$0xff]
    %v123 = vld [vmem:[%s1 + $0x318] sm:$0xff]
    %v124 = vld [vmem:[%s1 + $0x320] sm:$0xff]
    %v125 = vld [vmem:[%s1 + $0x328] sm:$0xff]
    %v126 = vld [vmem:[%s1 + $0x330] sm:$0xff]
    %v127 = vld [vmem:[%s1 + $0x338] sm:$0xff]
    %v128 = vld [vmem:[%s1 + $0x340] sm:$0xff]
    %v129 = vld [vmem:[%s1 + $0x348] sm:$0xff]
    %v130 = vld [vmem:[%s1 + $0x350] sm:$0xff]
    %v131 = vld [vmem:[%s1 + $0x358] sm:$0xff]
    %v132 = vld [vmem:[%s1 + $0x360] sm:$0xff]
    %v133 = vld [vmem:[%s1 + $0x368] sm:$0xff]
    %v134 = vld [vmem:[%s1 + $0x370] sm:$0xff]
    %v135 = vld [vmem:[%s1 + $0x378] sm:$0xff]
    %v136 = vld [vmem:[%s1 + $0x380] sm:$0xff]
    %v137 = vld [vmem:[%s1 + $0x388] sm:$0xff]
    %v138 = vld [vmem:[%s1 + $0x390] sm:$0xff]
    %v139 = vld [vmem:[%s1 + $0x398] sm:$0xff]
    %v140 = vld [vmem:[%s1 + $0x3a0] sm:$0xff]
    %v141 = vld [vmem:[%s1 + $0x3a8] sm:$0xff]
    %v142 = vld [vmem:[%s1 + $0x3b0] sm:$0xff]
    %v143 = vld [vmem:[%s1 + $0x3b8] sm:$0xff]
    %v144 = vld [vmem:[%s1 + $0x3c0] sm:$0xff]
    %v145 = vld [vmem:[%s1 + $0x3c8] sm:$0xff]
    %v146 = vld [vmem:[%s1 + $0x3d0] sm:$0xff]
    %v147 = vld [vmem:[%s1 + $0x3d8] sm:$0xff]
    %v148 = vld [vmem:[%s1 + $0x3e0] sm:$0xff]
    %v149 = vld [vmem:[%s1 + $0x3e8] sm:$0xff]
    %v150 = vld [vmem:[%s1 + $0x3f0] sm:$0xff]
    %v151 = vld [vmem:[%s1 + $0x3f8] sm:$0xff]
    %v152 = vld [vmem:[%s1 + $0x400] sm:$0xff]
    %v153 = vld [vmem:[%s1 + $0x408] sm:$0xff]
    %v154 = vld [vmem:[%s1 + $0x410] sm:$0xff]
    %v155 = vld [vmem:[%s1 + $0x418] sm:$0xff]
    %v156 = vld [vmem:[%s1 + $0x420] sm:$0xff]
    %v157 = vld [vmem:[%s1 + $0x428] sm:$0xff]
    %v158 = vld [vmem:[%s1 + $0x430] sm:$0xff]
    %v159 = vld [vmem:[%s1 + $0x438] sm:$0xff]
    %v160 = vld [vmem:[%s1 + $0x440] sm:$0xff]
    %v161 = vld [vmem:[%s1 + $0x448] sm:$0xff]
    %v162 = vld [vmem:[%s1 + $0x450] sm:$0xff]
    %v163 = vld [vmem:[%s1 + $0x458] sm:$0xff]
    %v164 = vld [vmem:[%s1 + $0x460] sm:$0xff]
    %v165 = vld [vmem:[%s1 + $0x468] sm:$0xff]
    %v166 = vld [vmem:[%s1 + $0x470] sm:$0xff]
    %v167 = vld [vmem:[%s1 + $0x478] sm:$0xff]
    %v168 = vld [vmem:[%s1 + $0x480] sm:$0xff]
    %v169 = vld [vmem:[%s1 + $0x488] sm:$0xff]
    %v170 = vld [vmem:[%s1 + $0x490] sm:$0xff]
    %v171 = vld [vmem:[%s1 + $0x498] sm:$0xff]
    %v172 = vld [vmem:[%s1 + $0x4a0] sm:$0xff]
    %v173 = vld [vmem:[%s1 + $0x4a8] sm:$0xff]
    %v174 = vld [vmem:[%s1 + $0x4b0] sm:$0xff]
    %v175 = vld [vmem:[%s1 + $0x4b8] sm:$0xff]
    %v176 = vld [vmem:[%s1 + $0x4c0] sm:$0xff]
    %v177 = vld [vmem:[%s1 + $0x4c8] sm:$0xff]
    %v178 = vld [vmem:[%s1 + $0x4d0] sm:$0xff]
    %v179 = vld [vmem:[%s1 + $0x4d8] sm:$0xff]
    %v180 = vld [vmem:[%s1 + $0x4e0] sm:$0xff]
    %v181 = vld [vmem:[%s1 + $0x4e8] sm:$0xff]
    %v182 = vld [vmem:[%s1 + $0x4f0] sm:$0xff]
    %v183 = vld [vmem:[%s1 + $0x4f8] sm:$0xff]
    %v184 = vld [vmem:[%s1 + $0x500] sm:$0xff]
    %v185 = vld [vmem:[%s1 + $0x508] sm:$0xff]
    %v186 = vld [vmem:[%s1 + $0x510] sm:$0xff]
    %v187 = vld [vmem:[%s1 + $0x518] sm:$0xff]
    %v188 = vld [vmem:[%s1 + $0x520] sm:$0xff]
    %v189 = vld [vmem:[%s1 + $0x528] sm:$0xff]
    %v190 = vld [vmem:[%s1 + $0x530] sm:$0xff]
    %v191 = vld [vmem:[%s1 + $0x538] sm:$0xff]
    %v192 = vld [vmem:[%s1 + $0x540] sm:$0xff]
    %v193 = vld [vmem:[%s1 + $0x548] sm:$0xff]
    %v194 = vld [vmem:[%s1 + $0x550] sm:$0xff]
    %v195 = vld [vmem:[%s1 + $0x558] sm:$0xff]
    %v196 = vld [vmem:[%s1 + $0x560] sm:$0xff]
    %v197 = vld [vmem:[%s1 + $0x568] sm:$0xff]
    %v198 = vld [vmem:[%s1 + $0x570] sm:$0xff]
    %v199 = vld [vmem:[%s1 + $0x578] sm:$0xff]
    %v200 = vld [vmem:[%s1 + $0x580] sm:$0xff]
    %v201 = vld [vmem:[%s1 + $0x588] sm:$0xff]
    %v202 = vld [vmem:[%s1 + $0x590] sm:$0xff]
    %v203 = vld [vmem:[%s1 + $0x598] sm:$0xff]
    %v204 = vld [vmem:[%s1 + $0x5a0] sm:$0xff]
    %v205 = vld [vmem:[%s1 + $0x5a8] sm:$0xff]
    %v206 = vld [vmem:[%s1 + $0x5b0] sm:$0xff]
    %v207 = vld [vmem:[%s1 + $0x5b8] sm:$0xff]
    %v208 = vld [vmem:[%s1 + $0x5c0] sm:$0xff]
    %v209 = vld [vmem:[%s1 + $0x5c8] sm:$0xff]
    %v210 = vld [vmem:[%s1 + $0x5d0] sm:$0xff]
    %v211 = vld [vmem:[%s1 + $0x5d8] sm:$0xff]
    %v212 = vld [vmem:[%s1 + $0x5e0] sm:$0xff]
    %v213 = vld [vmem:[%s1 + $0x5e8] sm:$0xff]
    %v214 = vld [vmem:[%s1 + $0x5f0] sm:$0xff]
    %v215 = vld [vmem:[%s1 + $0x5f8] sm:$0xff]
    %v216 = vld [vmem:[%s1 + $0x600] sm:$0xff]
    %v217 = vld [vmem:[%s1 + $0x608] sm:$0xff]
    %v218 = vld [vmem:[%s1 + $0x610] sm:$0xff]
    %v219 = vld [vmem:[%s1 + $0x618] sm:$0xff]
    %v220 = vld [vmem:[%s1 + $0x620] sm:$0xff]
    %v221 = vld [vmem:[%s1 + $0x628] sm:$0xff]
    %v222 = vld [vmem:[%s1 + $0x630] sm:$0xff]
    %v223 = vld [vmem:[%s1 + $0x638] sm:$0xff]
    %v224 = vld [vmem:[%s2] sm:$0x3]
    %v226 = vlaneseq
    %v227 = vshrl.u32 %v226, 7
    %v228 = vsub.s32 0, %v227
    %v229 = vrot.slane %v224, %v228
    %v230 = vlaneseq
    %v231 = vshrl.u32 %v230, 7
    %v232 = vsub.s32 1, %v231
    %v233 = vrot.slane %v224, %v232
    %v238 = vcombine.high %v22, %v22
    %v240 = vunpack.c.l.s4 1966171168
    %v241 = vunpack.c.0.s8 %v240
    %v242 = vlaneseq
    %v243 = vshrl.u32 %v242, 7
    %v244 = vsub.s32 %v241, %v243
    %v245 = vrot.slane %v22, %v244
    %v247 = vunpack.c.l.s4 1966171168
    %v248 = vunpack.c.0.s8 %v247
    %v249 = vlaneseq
    %v250 = vshrl.u32 %v249, 7
    %v251 = vsub.s32 %v248, %v250
    %v252 = vrot.slane %v238, %v251
    %v253 = vcombine.high %v245, %v245
    %v254 = vcombine.high %v252, %v252
    %v256 = vunpack.c.l.s4 1966171168
    %v257 = vunpack.c.0.s8 %v256
    %v258 = vlaneseq
    %v259 = vshrl.u32 %v258, 7
    %v260 = vsub.s32 %v257, %v259
    %v261 = vrot.slane %v245, %v260
    %v263 = vunpack.c.l.s4 1966171168
    %v264 = vunpack.c.0.s8 %v263
    %v265 = vlaneseq
    %v266 = vshrl.u32 %v265, 7
    %v267 = vsub.s32 %v264, %v266
    %v268 = vrot.slane %v252, %v267
    %v270 = vunpack.c.l.s4 1966171168
    %v271 = vunpack.c.0.s8 %v270
    %v272 = vlaneseq
    %v273 = vshrl.u32 %v272, 7
    %v274 = vsub.s32 %v271, %v273
    %v275 = vrot.slane %v253, %v274
    %v277 = vunpack.c.l.s4 1966171168
    %v278 = vunpack.c.0.s8 %v277
    %v279 = vlaneseq
    %v280 = vshrl.u32 %v279, 7
    %v281 = vsub.s32 %v278, %v280
    %v282 = vrot.slane %v254, %v281
    %v283 = vcombine.high %v261, %v261
    %v284 = vcombine.high %v268, %v268
    %v285 = vcombine.high %v275, %v275
    %v286 = vcombine.high %v282, %v282
    %v287 = vcombine.high %v23, %v23
    %v289 = vunpack.c.l.s4 1966171168
    %v290 = vunpack.c.0.s8 %v289
    %v291 = vlaneseq
    %v292 = vshrl.u32 %v291, 7
    %v293 = vsub.s32 %v290, %v292
    %v294 = vrot.slane %v23, %v293
    %v296 = vunpack.c.l.s4 1966171168
    %v297 = vunpack.c.0.s8 %v296
    %v298 = vlaneseq
    %v299 = vshrl.u32 %v298, 7
    %v300 = vsub.s32 %v297, %v299
    %v301 = vrot.slane %v287, %v300
    %v302 = vcombine.high %v294, %v294
    %v304 = vunpack.c.l.s4 1966171168
    %v305 = vunpack.c.0.s8 %v304
    %v306 = vlaneseq
    %v307 = vshrl.u32 %v306, 7
    %v308 = vsub.s32 %v305, %v307
    %v309 = vrot.slane %v294, %v308
    %v311 = vunpack.c.l.s4 1966171168
    %v312 = vunpack.c.0.s8 %v311
    %v313 = vlaneseq
    %v314 = vshrl.u32 %v313, 7
    %v315 = vsub.s32 %v312, %v314
    %v316 = vrot.slane %v301, %v315
    %v318 = vunpack.c.l.s4 1966171168
    %v319 = vunpack.c.0.s8 %v318
    %v320 = vlaneseq
    %v321 = vshrl.u32 %v320, 7
    %v322 = vsub.s32 %v319, %v321
    %v323 = vrot.slane %v302, %v322
    %v324 = vcombine.high %v309, %v309
    %v325 = vcombine.high %v323, %v323
    %v538 = vunpack.c.l.b16 %v24
    %v539 = vunpack.c.h.b16 %v24
    %v540 = vunpack.c.l.b16 %v25
    %v541 = vunpack.c.h.b16 %v25
    %v542 = vunpack.c.l.b16 %v26
    %v543 = vunpack.c.h.b16 %v26
    %v544 = vunpack.c.l.b16 %v27
    %v545 = vunpack.c.h.b16 %v27
    %v546 = vunpack.c.l.b16 %v28
    %v547 = vunpack.c.h.b16 %v28
    %v548 = vunpack.c.l.b16 %v29
    %v549 = vunpack.c.h.b16 %v29
    %v550 = vunpack.c.l.b16 %v30
    %v551 = vunpack.c.h.b16 %v30
    %v552 = vunpack.c.l.b16 %v31
    %v553 = vunpack.c.h.b16 %v31
    %v554 = vunpack.c.l.b16 %v32
    %v555 = vunpack.c.h.b16 %v32
    %v556 = vunpack.c.l.b16 %v33
    %v557 = vunpack.c.h.b16 %v33
    %v558 = vunpack.c.l.b16 %v34
    %v559 = vunpack.c.h.b16 %v34
    %v560 = vunpack.c.l.b16 %v35
    %v561 = vunpack.c.h.b16 %v35
    %v562 = vunpack.c.l.b16 %v36
    %v563 = vunpack.c.h.b16 %v36
    %v564 = vunpack.c.l.b16 %v37
    %v565 = vunpack.c.h.b16 %v37
    %v566 = vunpack.c.l.b16 %v38
    %v567 = vunpack.c.h.b16 %v38
    %v568 = vunpack.c.l.b16 %v39
    %v569 = vunpack.c.h.b16 %v39
    %v570 = vunpack.c.l.b16 %v40
    %v571 = vunpack.c.h.b16 %v40
    %v572 = vunpack.c.l.b16 %v41
    %v573 = vunpack.c.h.b16 %v41
    %v574 = vunpack.c.l.b16 %v42
    %v575 = vunpack.c.h.b16 %v42
    %v576 = vunpack.c.l.b16 %v43
    %v577 = vunpack.c.h.b16 %v43
    %v578 = vunpack.c.l.b16 %v44
    %v579 = vunpack.c.h.b16 %v44
    %v580 = vunpack.c.l.b16 %v45
    %v581 = vunpack.c.h.b16 %v45
    %v582 = vunpack.c.l.b16 %v46
    %v583 = vunpack.c.h.b16 %v46
    %v584 = vunpack.c.l.b16 %v47
    %v585 = vunpack.c.h.b16 %v47
    %v586 = vunpack.c.l.b16 %v48
    %v587 = vunpack.c.h.b16 %v48
    %v588 = vunpack.c.l.b16 %v49
    %v589 = vunpack.c.h.b16 %v49
    %v590 = vunpack.c.l.b16 %v50
    %v591 = vunpack.c.h.b16 %v50
    %v592 = vunpack.c.l.b16 %v51
    %v593 = vunpack.c.h.b16 %v51
    %v594 = vunpack.c.l.b16 %v52
    %v595 = vunpack.c.h.b16 %v52
    %v596 = vunpack.c.l.b16 %v53
    %v597 = vunpack.c.h.b16 %v53
    %v598 = vunpack.c.l.b16 %v54
    %v599 = vunpack.c.h.b16 %v54
    %v600 = vunpack.c.l.b16 %v55
    %v601 = vunpack.c.h.b16 %v55
    %v602 = vunpack.c.l.b16 %v56
    %v603 = vunpack.c.h.b16 %v56
    %v604 = vunpack.c.l.b16 %v57
    %v605 = vunpack.c.h.b16 %v57
    %v606 = vunpack.c.l.b16 %v58
    %v607 = vunpack.c.h.b16 %v58
    %v608 = vunpack.c.l.b16 %v59
    %v609 = vunpack.c.h.b16 %v59
    %v610 = vunpack.c.l.b16 %v60
    %v611 = vunpack.c.h.b16 %v60
    %v612 = vunpack.c.l.b16 %v61
    %v613 = vunpack.c.h.b16 %v61
    %v614 = vunpack.c.l.b16 %v62
    %v615 = vunpack.c.h.b16 %v62
    %v616 = vunpack.c.l.b16 %v63
    %v617 = vunpack.c.h.b16 %v63
    %v618 = vunpack.c.l.b16 %v64
    %v619 = vunpack.c.h.b16 %v64
    %v620 = vunpack.c.l.b16 %v65
    %v621 = vunpack.c.h.b16 %v65
    %v622 = vunpack.c.l.b16 %v66
    %v623 = vunpack.c.h.b16 %v66
    %v624 = vunpack.c.l.b16 %v67
    %v625 = vunpack.c.h.b16 %v67
    %v626 = vunpack.c.l.b16 %v68
    %v627 = vunpack.c.h.b16 %v68
    %v628 = vunpack.c.l.b16 %v69
    %v629 = vunpack.c.h.b16 %v69
    %v630 = vunpack.c.l.b16 %v70
    %v631 = vunpack.c.h.b16 %v70
    %v632 = vunpack.c.l.b16 %v71
    %v633 = vunpack.c.h.b16 %v71
    %v634 = vunpack.c.l.b16 %v72
    %v635 = vunpack.c.h.b16 %v72
    %v636 = vunpack.c.l.b16 %v73
    %v637 = vunpack.c.h.b16 %v73
    %v638 = vunpack.c.l.b16 %v74
    %v639 = vunpack.c.h.b16 %v74
    %v640 = vunpack.c.l.b16 %v75
    %v641 = vunpack.c.h.b16 %v75
    %v642 = vunpack.c.l.b16 %v76
    %v643 = vunpack.c.h.b16 %v76
    %v644 = vunpack.c.l.b16 %v77
    %v645 = vunpack.c.h.b16 %v77
    %v646 = vunpack.c.l.b16 %v78
    %v647 = vunpack.c.h.b16 %v78
    %v648 = vunpack.c.l.b16 %v79
    %v649 = vunpack.c.h.b16 %v79
    %v650 = vunpack.c.l.b16 %v80
    %v651 = vunpack.c.h.b16 %v80
    %v652 = vunpack.c.l.b16 %v81
    %v653 = vunpack.c.h.b16 %v81
    %v654 = vunpack.c.l.b16 %v82
    %v655 = vunpack.c.h.b16 %v82
    %v656 = vunpack.c.l.b16 %v83
    %v657 = vunpack.c.h.b16 %v83
    %v658 = vunpack.c.l.b16 %v84
    %v659 = vunpack.c.h.b16 %v84
    %v660 = vunpack.c.l.b16 %v85
    %v661 = vunpack.c.h.b16 %v85
    %v662 = vunpack.c.l.b16 %v86
    %v663 = vunpack.c.h.b16 %v86
    %v664 = vunpack.c.l.b16 %v87
    %v665 = vunpack.c.h.b16 %v87
    %v666 = vunpack.c.l.b16 %v88
    %v667 = vunpack.c.h.b16 %v88
    %v668 = vunpack.c.l.b16 %v89
    %v669 = vunpack.c.h.b16 %v89
    %v670 = vunpack.c.l.b16 %v90
    %v671 = vunpack.c.h.b16 %v90
    %v672 = vunpack.c.l.b16 %v91
    %v673 = vunpack.c.h.b16 %v91
    %v674 = vunpack.c.l.b16 %v92
    %v675 = vunpack.c.h.b16 %v92
    %v676 = vunpack.c.l.b16 %v93
    %v677 = vunpack.c.h.b16 %v93
    %v678 = vunpack.c.l.b16 %v94
    %v679 = vunpack.c.h.b16 %v94
    %v680 = vunpack.c.l.b16 %v95
    %v681 = vunpack.c.h.b16 %v95
    %v682 = vunpack.c.l.b16 %v96
    %v683 = vunpack.c.h.b16 %v96
    %v684 = vunpack.c.l.b16 %v97
    %v685 = vunpack.c.h.b16 %v97
    %v686 = vunpack.c.l.b16 %v98
    %v687 = vunpack.c.h.b16 %v98
    %v688 = vunpack.c.l.b16 %v99
    %v689 = vunpack.c.h.b16 %v99
    %v690 = vunpack.c.l.b16 %v100
    %v691 = vunpack.c.h.b16 %v100
    %v692 = vunpack.c.l.b16 %v101
    %v693 = vunpack.c.h.b16 %v101
    %v694 = vunpack.c.l.b16 %v102
    %v695 = vunpack.c.h.b16 %v102
    %v696 = vunpack.c.l.b16 %v103
    %v697 = vunpack.c.h.b16 %v103
    %v698 = vunpack.c.l.b16 %v104
    %v699 = vunpack.c.h.b16 %v104
    %v700 = vunpack.c.l.b16 %v105
    %v701 = vunpack.c.h.b16 %v105
    %v702 = vunpack.c.l.b16 %v106
    %v703 = vunpack.c.h.b16 %v106
    %v704 = vunpack.c.l.b16 %v107
    %v705 = vunpack.c.h.b16 %v107
    %v706 = vunpack.c.l.b16 %v108
    %v707 = vunpack.c.h.b16 %v108
    %v708 = vunpack.c.l.b16 %v109
    %v709 = vunpack.c.h.b16 %v109
    %v710 = vunpack.c.l.b16 %v110
    %v711 = vunpack.c.h.b16 %v110
    %v712 = vunpack.c.l.b16 %v111
    %v713 = vunpack.c.h.b16 %v111
    %v714 = vunpack.c.l.b16 %v112
    %v715 = vunpack.c.h.b16 %v112
    %v716 = vunpack.c.l.b16 %v113
    %v717 = vunpack.c.h.b16 %v113
    %v718 = vunpack.c.l.b16 %v114
    %v719 = vunpack.c.h.b16 %v114
    %v720 = vunpack.c.l.b16 %v115
    %v721 = vunpack.c.h.b16 %v115
    %v722 = vunpack.c.l.b16 %v116
    %v723 = vunpack.c.h.b16 %v116
    %v724 = vunpack.c.l.b16 %v117
    %v725 = vunpack.c.h.b16 %v117
    %v726 = vunpack.c.l.b16 %v118
    %v727 = vunpack.c.h.b16 %v118
    %v728 = vunpack.c.l.b16 %v119
    %v729 = vunpack.c.h.b16 %v119
    %v730 = vunpack.c.l.b16 %v120
    %v731 = vunpack.c.h.b16 %v120
    %v732 = vunpack.c.l.b16 %v121
    %v733 = vunpack.c.h.b16 %v121
    %v734 = vunpack.c.l.b16 %v122
    %v735 = vunpack.c.h.b16 %v122
    %v736 = vunpack.c.l.b16 %v123
    %v737 = vunpack.c.h.b16 %v123
    %v738 = vunpack.c.l.b16 %v124
    %v739 = vunpack.c.h.b16 %v124
    %v740 = vunpack.c.l.b16 %v125
    %v741 = vunpack.c.h.b16 %v125
    %v742 = vunpack.c.l.b16 %v126
    %v743 = vunpack.c.h.b16 %v126
    %v744 = vunpack.c.l.b16 %v127
    %v745 = vunpack.c.h.b16 %v127
    %v746 = vunpack.c.l.b16 %v128
    %v747 = vunpack.c.h.b16 %v128
    %v748 = vunpack.c.l.b16 %v129
    %v749 = vunpack.c.h.b16 %v129
    %v750 = vunpack.c.l.b16 %v130
    %v751 = vunpack.c.h.b16 %v130
    %v752 = vunpack.c.l.b16 %v131
    %v753 = vunpack.c.h.b16 %v131
    %v754 = vunpack.c.l.b16 %v132
    %v755 = vunpack.c.h.b16 %v132
    %v756 = vunpack.c.l.b16 %v133
    %v757 = vunpack.c.h.b16 %v133
    %v758 = vunpack.c.l.b16 %v134
    %v759 = vunpack.c.h.b16 %v134
    %v760 = vunpack.c.l.b16 %v135
    %v761 = vunpack.c.h.b16 %v135
    %v762 = vunpack.c.l.b16 %v136
    %v763 = vunpack.c.h.b16 %v136
    %v764 = vunpack.c.l.b16 %v137
    %v765 = vunpack.c.h.b16 %v137
    %v766 = vunpack.c.l.b16 %v138
    %v767 = vunpack.c.h.b16 %v138
    %v768 = vunpack.c.l.b16 %v139
    %v769 = vunpack.c.h.b16 %v139
    %v770 = vunpack.c.l.b16 %v140
    %v771 = vunpack.c.h.b16 %v140
    %v772 = vunpack.c.l.b16 %v141
    %v773 = vunpack.c.h.b16 %v141
    %v774 = vunpack.c.l.b16 %v142
    %v775 = vunpack.c.h.b16 %v142
    %v776 = vunpack.c.l.b16 %v143
    %v777 = vunpack.c.h.b16 %v143
    %v778 = vunpack.c.l.b16 %v144
    %v779 = vunpack.c.h.b16 %v144
    %v780 = vunpack.c.l.b16 %v145
    %v781 = vunpack.c.h.b16 %v145
    %v782 = vunpack.c.l.b16 %v146
    %v783 = vunpack.c.h.b16 %v146
    %v784 = vunpack.c.l.b16 %v147
    %v785 = vunpack.c.h.b16 %v147
    %v786 = vunpack.c.l.b16 %v148
    %v787 = vunpack.c.h.b16 %v148
    %v788 = vunpack.c.l.b16 %v149
    %v789 = vunpack.c.h.b16 %v149
    %v790 = vunpack.c.l.b16 %v150
    %v791 = vunpack.c.h.b16 %v150
    %v792 = vunpack.c.l.b16 %v151
    %v793 = vunpack.c.h.b16 %v151
    %v794 = vunpack.c.l.b16 %v152
    %v795 = vunpack.c.h.b16 %v152
    %v796 = vunpack.c.l.b16 %v153
    %v797 = vunpack.c.h.b16 %v153
    %v798 = vunpack.c.l.b16 %v154
    %v799 = vunpack.c.h.b16 %v154
    %v800 = vunpack.c.l.b16 %v155
    %v801 = vunpack.c.h.b16 %v155
    %v802 = vunpack.c.l.b16 %v156
    %v803 = vunpack.c.h.b16 %v156
    %v804 = vunpack.c.l.b16 %v157
    %v805 = vunpack.c.h.b16 %v157
    %v806 = vunpack.c.l.b16 %v158
    %v807 = vunpack.c.h.b16 %v158
    %v808 = vunpack.c.l.b16 %v159
    %v809 = vunpack.c.h.b16 %v159
    %v810 = vunpack.c.l.b16 %v160
    %v811 = vunpack.c.h.b16 %v160
    %v812 = vunpack.c.l.b16 %v161
    %v813 = vunpack.c.h.b16 %v161
    %v814 = vunpack.c.l.b16 %v162
    %v815 = vunpack.c.h.b16 %v162
    %v816 = vunpack.c.l.b16 %v163
    %v817 = vunpack.c.h.b16 %v163
    %v818 = vunpack.c.l.b16 %v164
    %v819 = vunpack.c.h.b16 %v164
    %v820 = vunpack.c.l.b16 %v165
    %v821 = vunpack.c.h.b16 %v165
    %v822 = vunpack.c.l.b16 %v166
    %v823 = vunpack.c.h.b16 %v166
    %v824 = vunpack.c.l.b16 %v167
    %v825 = vunpack.c.h.b16 %v167
    %v826 = vunpack.c.l.b16 %v168
    %v827 = vunpack.c.h.b16 %v168
    %v828 = vunpack.c.l.b16 %v169
    %v829 = vunpack.c.h.b16 %v169
    %v830 = vunpack.c.l.b16 %v170
    %v831 = vunpack.c.h.b16 %v170
    %v832 = vunpack.c.l.b16 %v171
    %v833 = vunpack.c.h.b16 %v171
    %v834 = vunpack.c.l.b16 %v172
    %v835 = vunpack.c.h.b16 %v172
    %v836 = vunpack.c.l.b16 %v173
    %v837 = vunpack.c.h.b16 %v173
    %v838 = vunpack.c.l.b16 %v174
    %v839 = vunpack.c.h.b16 %v174
    %v840 = vunpack.c.l.b16 %v175
    %v841 = vunpack.c.h.b16 %v175
    %v842 = vunpack.c.l.b16 %v176
    %v843 = vunpack.c.h.b16 %v176
    %v844 = vunpack.c.l.b16 %v177
    %v845 = vunpack.c.h.b16 %v177
    %v846 = vunpack.c.l.b16 %v178
    %v847 = vunpack.c.h.b16 %v178
    %v848 = vunpack.c.l.b16 %v179
    %v849 = vunpack.c.h.b16 %v179
    %v850 = vunpack.c.l.b16 %v180
    %v851 = vunpack.c.h.b16 %v180
    %v852 = vunpack.c.l.b16 %v181
    %v853 = vunpack.c.h.b16 %v181
    %v854 = vunpack.c.l.b16 %v182
    %v855 = vunpack.c.h.b16 %v182
    %v856 = vunpack.c.l.b16 %v183
    %v857 = vunpack.c.h.b16 %v183
    %v858 = vunpack.c.l.b16 %v184
    %v859 = vunpack.c.h.b16 %v184
    %v860 = vunpack.c.l.b16 %v185
    %v861 = vunpack.c.h.b16 %v185
    %v862 = vunpack.c.l.b16 %v186
    %v863 = vunpack.c.h.b16 %v186
    %v864 = vunpack.c.l.b16 %v187
    %v865 = vunpack.c.h.b16 %v187
    %v866 = vunpack.c.l.b16 %v188
    %v867 = vunpack.c.h.b16 %v188
    %v868 = vunpack.c.l.b16 %v189
    %v869 = vunpack.c.h.b16 %v189
    %v870 = vunpack.c.l.b16 %v190
    %v871 = vunpack.c.h.b16 %v190
    %v872 = vunpack.c.l.b16 %v191
    %v873 = vunpack.c.h.b16 %v191
    %v874 = vunpack.c.l.b16 %v192
    %v875 = vunpack.c.h.b16 %v192
    %v876 = vunpack.c.l.b16 %v193
    %v877 = vunpack.c.h.b16 %v193
    %v878 = vunpack.c.l.b16 %v194
    %v879 = vunpack.c.h.b16 %v194
    %v880 = vunpack.c.l.b16 %v195
    %v881 = vunpack.c.h.b16 %v195
    %v882 = vunpack.c.l.b16 %v196
    %v883 = vunpack.c.h.b16 %v196
    %v884 = vunpack.c.l.b16 %v197
    %v885 = vunpack.c.h.b16 %v197
    %v886 = vunpack.c.l.b16 %v198
    %v887 = vunpack.c.h.b16 %v198
    %v888 = vunpack.c.l.b16 %v199
    %v889 = vunpack.c.h.b16 %v199
    %v890 = vunpack.c.l.b16 %v200
    %v891 = vunpack.c.h.b16 %v200
    %v892 = vunpack.c.l.b16 %v201
    %v893 = vunpack.c.h.b16 %v201
    %v894 = vunpack.c.l.b16 %v202
    %v895 = vunpack.c.h.b16 %v202
    %v896 = vunpack.c.l.b16 %v203
    %v897 = vunpack.c.h.b16 %v203
    %v898 = vunpack.c.l.b16 %v204
    %v899 = vunpack.c.h.b16 %v204
    %v900 = vunpack.c.l.b16 %v205
    %v901 = vunpack.c.h.b16 %v205
    %v902 = vunpack.c.l.b16 %v206
    %v903 = vunpack.c.h.b16 %v206
    %v904 = vunpack.c.l.b16 %v207
    %v905 = vunpack.c.h.b16 %v207
    %v906 = vunpack.c.l.b16 %v208
    %v907 = vunpack.c.h.b16 %v208
    %v908 = vunpack.c.l.b16 %v209
    %v909 = vunpack.c.h.b16 %v209
    %v910 = vunpack.c.l.b16 %v210
    %v911 = vunpack.c.h.b16 %v210
    %v912 = vunpack.c.l.b16 %v211
    %v913 = vunpack.c.h.b16 %v211
    %v914 = vunpack.c.l.b16 %v212
    %v915 = vunpack.c.h.b16 %v212
    %v916 = vunpack.c.l.b16 %v213
    %v917 = vunpack.c.h.b16 %v213
    %v918 = vunpack.c.l.b16 %v214
    %v919 = vunpack.c.h.b16 %v214
    %v920 = vunpack.c.l.b16 %v215
    %v921 = vunpack.c.h.b16 %v215
    %v922 = vunpack.c.l.b16 %v216
    %v923 = vunpack.c.h.b16 %v216
    %v924 = vunpack.c.l.b16 %v217
    %v925 = vunpack.c.h.b16 %v217
    %v926 = vunpack.c.l.b16 %v218
    %v927 = vunpack.c.h.b16 %v218
    %v928 = vunpack.c.l.b16 %v219
    %v929 = vunpack.c.h.b16 %v219
    %v930 = vunpack.c.l.b16 %v220
    %v931 = vunpack.c.h.b16 %v220
    %v932 = vunpack.c.l.b16 %v221
    %v933 = vunpack.c.h.b16 %v221
    %v934 = vunpack.c.l.b16 %v222
    %v935 = vunpack.c.h.b16 %v222
    %v936 = vunpack.c.l.b16 %v223
    %v937 = vunpack.c.h.b16 %v223
    %v938 = vpack.c.b16 %v540, %v538
    %v939 = vpack.c.b16 %v541, %v539
    %v940 = vpack.c.b16 %v544, %v542
    %v941 = vpack.c.b16 %v545, %v543
    %v942 = vpack.c.b16 %v548, %v546
    %v943 = vpack.c.b16 %v549, %v547
    %v944 = vpack.c.b16 %v552, %v550
    %v945 = vpack.c.b16 %v553, %v551
    %v946 = vpack.c.b16 %v556, %v554
    %v947 = vpack.c.b16 %v557, %v555
    %v948 = vpack.c.b16 %v560, %v558
    %v949 = vpack.c.b16 %v561, %v559
    %v950 = vpack.c.b16 %v564, %v562
    %v951 = vpack.c.b16 %v565, %v563
    %v952 = vpack.c.b16 %v568, %v566
    %v953 = vpack.c.b16 %v569, %v567
    %v954 = vpack.c.b16 %v572, %v570
    %v955 = vpack.c.b16 %v573, %v571
    %v956 = vpack.c.b16 %v576, %v574
    %v957 = vpack.c.b16 %v577, %v575
    %v958 = vpack.c.b16 %v580, %v578
    %v959 = vpack.c.b16 %v581, %v579
    %v960 = vpack.c.b16 %v584, %v582
    %v961 = vpack.c.b16 %v585, %v583
    %v962 = vpack.c.b16 %v588, %v586
    %v963 = vpack.c.b16 %v589, %v587
    %v964 = vpack.c.b16 %v592, %v590
    %v965 = vpack.c.b16 %v593, %v591
    %v966 = vpack.c.b16 %v596, %v594
    %v967 = vpack.c.b16 %v597, %v595
    %v968 = vpack.c.b16 %v600, %v598
    %v969 = vpack.c.b16 %v601, %v599
    %v970 = vpack.c.b16 %v604, %v602
    %v971 = vpack.c.b16 %v605, %v603
    %v972 = vpack.c.b16 %v608, %v606
    %v973 = vpack.c.b16 %v609, %v607
    %v974 = vpack.c.b16 %v612, %v610
    %v975 = vpack.c.b16 %v613, %v611
    %v976 = vpack.c.b16 %v616, %v614
    %v977 = vpack.c.b16 %v617, %v615
    %v978 = vpack.c.b16 %v620, %v618
    %v979 = vpack.c.b16 %v621, %v619
    %v980 = vpack.c.b16 %v624, %v622
    %v981 = vpack.c.b16 %v625, %v623
    %v982 = vpack.c.b16 %v628, %v626
    %v983 = vpack.c.b16 %v629, %v627
    %v984 = vpack.c.b16 %v632, %v630
    %v985 = vpack.c.b16 %v633, %v631
    %v986 = vpack.c.b16 %v636, %v634
    %v987 = vpack.c.b16 %v637, %v635
    %v988 = vpack.c.b16 %v640, %v638
    %v989 = vpack.c.b16 %v641, %v639
    %v990 = vpack.c.b16 %v644, %v642
    %v991 = vpack.c.b16 %v645, %v643
    %v992 = vpack.c.b16 %v648, %v646
    %v993 = vpack.c.b16 %v649, %v647
    %v994 = vpack.c.b16 %v652, %v650
    %v995 = vpack.c.b16 %v653, %v651
    %v996 = vpack.c.b16 %v656, %v654
    %v997 = vpack.c.b16 %v657, %v655
    %v998 = vpack.c.b16 %v660, %v658
    %v999 = vpack.c.b16 %v661, %v659
    %v1000 = vpack.c.b16 %v664, %v662
    %v1001 = vpack.c.b16 %v665, %v663
    %v1002 = vpack.c.b16 %v668, %v666
    %v1003 = vpack.c.b16 %v669, %v667
    %v1004 = vpack.c.b16 %v672, %v670
    %v1005 = vpack.c.b16 %v673, %v671
    %v1006 = vpack.c.b16 %v676, %v674
    %v1007 = vpack.c.b16 %v677, %v675
    %v1008 = vpack.c.b16 %v680, %v678
    %v1009 = vpack.c.b16 %v681, %v679
    %v1010 = vpack.c.b16 %v684, %v682
    %v1011 = vpack.c.b16 %v685, %v683
    %v1012 = vpack.c.b16 %v688, %v686
    %v1013 = vpack.c.b16 %v689, %v687
    %v1014 = vpack.c.b16 %v692, %v690
    %v1015 = vpack.c.b16 %v693, %v691
    %v1016 = vpack.c.b16 %v696, %v694
    %v1017 = vpack.c.b16 %v697, %v695
    %v1018 = vpack.c.b16 %v700, %v698
    %v1019 = vpack.c.b16 %v701, %v699
    %v1020 = vpack.c.b16 %v704, %v702
    %v1021 = vpack.c.b16 %v705, %v703
    %v1022 = vpack.c.b16 %v708, %v706
    %v1023 = vpack.c.b16 %v709, %v707
    %v1024 = vpack.c.b16 %v712, %v710
    %v1025 = vpack.c.b16 %v713, %v711
    %v1026 = vpack.c.b16 %v716, %v714
    %v1027 = vpack.c.b16 %v717, %v715
    %v1028 = vpack.c.b16 %v720, %v718
    %v1029 = vpack.c.b16 %v721, %v719
    %v1030 = vpack.c.b16 %v724, %v722
    %v1031 = vpack.c.b16 %v725, %v723
    %v1032 = vpack.c.b16 %v728, %v726
    %v1033 = vpack.c.b16 %v729, %v727
    %v1034 = vpack.c.b16 %v732, %v730
    %v1035 = vpack.c.b16 %v733, %v731
    %v1036 = vpack.c.b16 %v736, %v734
    %v1037 = vpack.c.b16 %v737, %v735
    %v1038 = vpack.c.b16 %v740, %v738
    %v1039 = vpack.c.b16 %v741, %v739
    %v1040 = vpack.c.b16 %v744, %v742
    %v1041 = vpack.c.b16 %v745, %v743
    %v1042 = vpack.c.b16 %v748, %v746
    %v1043 = vpack.c.b16 %v749, %v747
    %v1044 = vpack.c.b16 %v752, %v750
    %v1045 = vpack.c.b16 %v753, %v751
    %v1046 = vpack.c.b16 %v756, %v754
    %v1047 = vpack.c.b16 %v757, %v755
    %v1048 = vpack.c.b16 %v760, %v758
    %v1049 = vpack.c.b16 %v761, %v759
    %v1050 = vpack.c.b16 %v764, %v762
    %v1051 = vpack.c.b16 %v765, %v763
    %v1052 = vpack.c.b16 %v768, %v766
    %v1053 = vpack.c.b16 %v769, %v767
    %v1054 = vpack.c.b16 %v772, %v770
    %v1055 = vpack.c.b16 %v773, %v771
    %v1056 = vpack.c.b16 %v776, %v774
    %v1057 = vpack.c.b16 %v777, %v775
    %v1058 = vpack.c.b16 %v780, %v778
    %v1059 = vpack.c.b16 %v781, %v779
    %v1060 = vpack.c.b16 %v784, %v782
    %v1061 = vpack.c.b16 %v785, %v783
    %v1062 = vpack.c.b16 %v788, %v786
    %v1063 = vpack.c.b16 %v789, %v787
    %v1064 = vpack.c.b16 %v792, %v790
    %v1065 = vpack.c.b16 %v793, %v791
    %v1066 = vpack.c.b16 %v796, %v794
    %v1067 = vpack.c.b16 %v797, %v795
    %v1068 = vpack.c.b16 %v800, %v798
    %v1069 = vpack.c.b16 %v801, %v799
    %v1070 = vpack.c.b16 %v804, %v802
    %v1071 = vpack.c.b16 %v805, %v803
    %v1072 = vpack.c.b16 %v808, %v806
    %v1073 = vpack.c.b16 %v809, %v807
    %v1074 = vpack.c.b16 %v812, %v810
    %v1075 = vpack.c.b16 %v813, %v811
    %v1076 = vpack.c.b16 %v816, %v814
    %v1077 = vpack.c.b16 %v817, %v815
    %v1078 = vpack.c.b16 %v820, %v818
    %v1079 = vpack.c.b16 %v821, %v819
    %v1080 = vpack.c.b16 %v824, %v822
    %v1081 = vpack.c.b16 %v825, %v823
    %v1082 = vpack.c.b16 %v828, %v826
    %v1083 = vpack.c.b16 %v829, %v827
    %v1084 = vpack.c.b16 %v832, %v830
    %v1085 = vpack.c.b16 %v833, %v831
    %v1086 = vpack.c.b16 %v836, %v834
    %v1087 = vpack.c.b16 %v837, %v835
    %v1088 = vpack.c.b16 %v840, %v838
    %v1089 = vpack.c.b16 %v841, %v839
    %v1090 = vpack.c.b16 %v844, %v842
    %v1091 = vpack.c.b16 %v845, %v843
    %v1092 = vpack.c.b16 %v848, %v846
    %v1093 = vpack.c.b16 %v849, %v847
    %v1094 = vpack.c.b16 %v852, %v850
    %v1095 = vpack.c.b16 %v853, %v851
    %v1096 = vpack.c.b16 %v856, %v854
    %v1097 = vpack.c.b16 %v857, %v855
    %v1098 = vpack.c.b16 %v860, %v858
    %v1099 = vpack.c.b16 %v861, %v859
    %v1100 = vpack.c.b16 %v864, %v862
    %v1101 = vpack.c.b16 %v865, %v863
    %v1102 = vpack.c.b16 %v868, %v866
    %v1103 = vpack.c.b16 %v869, %v867
    %v1104 = vpack.c.b16 %v872, %v870
    %v1105 = vpack.c.b16 %v873, %v871
    %v1106 = vpack.c.b16 %v876, %v874
    %v1107 = vpack.c.b16 %v877, %v875
    %v1108 = vpack.c.b16 %v880, %v878
    %v1109 = vpack.c.b16 %v881, %v879
    %v1110 = vpack.c.b16 %v884, %v882
    %v1111 = vpack.c.b16 %v885, %v883
    %v1112 = vpack.c.b16 %v888, %v886
    %v1113 = vpack.c.b16 %v889, %v887
    %v1114 = vpack.c.b16 %v892, %v890
    %v1115 = vpack.c.b16 %v893, %v891
    %v1116 = vpack.c.b16 %v896, %v894
    %v1117 = vpack.c.b16 %v897, %v895
    %v1118 = vpack.c.b16 %v900, %v898
    %v1119 = vpack.c.b16 %v901, %v899
    %v1120 = vpack.c.b16 %v904, %v902
    %v1121 = vpack.c.b16 %v905, %v903
    %v1122 = vpack.c.b16 %v908, %v906
    %v1123 = vpack.c.b16 %v909, %v907
    %v1124 = vpack.c.b16 %v912, %v910
    %v1125 = vpack.c.b16 %v913, %v911
    %v1126 = vpack.c.b16 %v916, %v914
    %v1127 = vpack.c.b16 %v917, %v915
    %v1128 = vpack.c.b16 %v920, %v918
    %v1129 = vpack.c.b16 %v921, %v919
    %v1130 = vpack.c.b16 %v924, %v922
    %v1131 = vpack.c.b16 %v925, %v923
    %v1132 = vpack.c.b16 %v928, %v926
    %v1133 = vpack.c.b16 %v929, %v927
    %v1134 = vpack.c.b16 %v932, %v930
    %v1135 = vpack.c.b16 %v933, %v931
    %v1136 = vpack.c.b16 %v936, %v934
    %v1137 = vpack.c.b16 %v937, %v935
    %vm1338 = vcmask 523264
    %v1340 = vsel %vm1338, %v316, 0
    %1342 = vmatprep.subr.bf16.mxu0 %v953
    %1343 = vmatpush1.bf16.msra.mxu0 %v952
    %1344 = vmatprep.subr.bf16.mxu0 %v951
    %1345 = vmatpush1.bf16.msra.mxu0 %v950
    %1346 = vmatprep.subr.bf16.mxu0 %v949
    %1347 = vmatpush1.bf16.msra.mxu0 %v948
    %1348 = vmatprep.subr.bf16.mxu0 %v947
    %1349 = vmatpush1.bf16.msra.mxu0 %v946
    %1350 = vmatprep.subr.bf16.mxu0 %v945
    %1351 = vmatpush1.bf16.msra.mxu0 %v944
    %1352 = vmatprep.subr.bf16.mxu0 %v943
    %1353 = vmatpush1.bf16.msra.mxu0 %v942
    %1354 = vmatprep.subr.bf16.mxu0 %v941
    %1355 = vmatpush1.bf16.msra.mxu0 %v940
    %1356 = vmatprep.subr.bf16.mxu0 %v939
    %1357 = vmatpush1.bf16.msra.mxu0 %v938
    %1358 = vmatprep.subr.bf16.mxu0 %v969
    %1359 = vmatpush2.bf16.msra.mxu0 %v968
    %1360 = vmatprep.subr.bf16.mxu0 %v967
    %1361 = vmatpush2.bf16.msra.mxu0 %v966
    %1362 = vmatprep.subr.bf16.mxu0 %v965
    %1363 = vmatpush2.bf16.msra.mxu0 %v964
    %1364 = vmatprep.subr.bf16.mxu0 %v963
    %1365 = vmatpush2.bf16.msra.mxu0 %v962
    %1366 = vmatprep.subr.bf16.mxu0 %v961
    %1367 = vmatpush2.bf16.msra.mxu0 %v960
    %1368 = vmatprep.subr.bf16.mxu0 %v959
    %1369 = vmatpush2.bf16.msra.mxu0 %v958
    %1370 = vmatprep.subr.bf16.mxu0 %v957
    %1371 = vmatpush2.bf16.msra.mxu0 %v956
    %1372 = vmatprep.subr.bf16.mxu0 %v955
    %1373 = vmatpush2.bf16.msra.mxu0 %v954
    %1374 = vmatprep.mubr.bf16.mxu0 %v275
    %1375 = vmatmul.mubr.bf16.gmra.mxu0 %v261
    %v1376 = vpop.f32.mrf.mxu0
    %v1377 = vadd.f32 %v229, %v1376
    %v1378 = vpop.f32.mrf.mxu0
    %v1379 = vadd.f32 %v233, %v1378
    %v1380 = vpop.f32.mrf.mxu0
    %v1381 = vpop.f32.mrf.mxu0
    %1382 = vdwg.mxu0
    %1383 = vmatprep.subr.bf16.mxu0 %v985
    %1384 = vmatpush1.bf16.msra.mxu0 %v984
    %1385 = vmatprep.subr.bf16.mxu0 %v983
    %1386 = vmatpush1.bf16.msra.mxu0 %v982
    %1387 = vmatprep.subr.bf16.mxu0 %v981
    %1388 = vmatpush1.bf16.msra.mxu0 %v980
    %1389 = vmatprep.subr.bf16.mxu0 %v979
    %1390 = vmatpush1.bf16.msra.mxu0 %v978
    %1391 = vmatprep.subr.bf16.mxu0 %v977
    %1392 = vmatpush1.bf16.msra.mxu0 %v976
    %1393 = vmatprep.subr.bf16.mxu0 %v975
    %1394 = vmatpush1.bf16.msra.mxu0 %v974
    %1395 = vmatprep.subr.bf16.mxu0 %v973
    %1396 = vmatpush1.bf16.msra.mxu0 %v972
    %1397 = vmatprep.subr.bf16.mxu0 %v971
    %1398 = vmatpush1.bf16.msra.mxu0 %v970
    %1399 = vmatprep.subr.bf16.mxu0 %v1001
    %1400 = vmatpush2.bf16.msra.mxu0 %v1000
    %1401 = vmatprep.subr.bf16.mxu0 %v999
    %1402 = vmatpush2.bf16.msra.mxu0 %v998
    %1403 = vmatprep.subr.bf16.mxu0 %v997
    %1404 = vmatpush2.bf16.msra.mxu0 %v996
    %1405 = vmatprep.subr.bf16.mxu0 %v995
    %1406 = vmatpush2.bf16.msra.mxu0 %v994
    %1407 = vmatprep.subr.bf16.mxu0 %v993
    %1408 = vmatpush2.bf16.msra.mxu0 %v992
    %1409 = vmatprep.subr.bf16.mxu0 %v991
    %1410 = vmatpush2.bf16.msra.mxu0 %v990
    %1411 = vmatprep.subr.bf16.mxu0 %v989
    %1412 = vmatpush2.bf16.msra.mxu0 %v988
    %1413 = vmatprep.subr.bf16.mxu0 %v987
    %1414 = vmatpush2.bf16.msra.mxu0 %v986
    %1415 = vmatprep.mubr.bf16.mxu0 %v285
    %1416 = vmatmul.mubr.bf16.gmra.mxu0 %v283
    %v1417 = vpop.f32.mrf.mxu0
    %v1418 = vadd.f32 %v1377, %v1417
    %v1419 = vpop.f32.mrf.mxu0
    %v1420 = vadd.f32 %v1379, %v1419
    %v1421 = vpop.f32.mrf.mxu0
    %v1422 = vpop.f32.mrf.mxu0
    %1423 = vdwg.mxu0
    %1424 = vmatprep.subr.bf16.mxu0 %v1017
    %1425 = vmatpush1.bf16.msra.mxu0 %v1016
    %1426 = vmatprep.subr.bf16.mxu0 %v1015
    %1427 = vmatpush1.bf16.msra.mxu0 %v1014
    %1428 = vmatprep.subr.bf16.mxu0 %v1013
    %1429 = vmatpush1.bf16.msra.mxu0 %v1012
    %1430 = vmatprep.subr.bf16.mxu0 %v1011
    %1431 = vmatpush1.bf16.msra.mxu0 %v1010
    %1432 = vmatprep.subr.bf16.mxu0 %v1009
    %1433 = vmatpush1.bf16.msra.mxu0 %v1008
    %1434 = vmatprep.subr.bf16.mxu0 %v1007
    %1435 = vmatpush1.bf16.msra.mxu0 %v1006
    %1436 = vmatprep.subr.bf16.mxu0 %v1005
    %1437 = vmatpush1.bf16.msra.mxu0 %v1004
    %1438 = vmatprep.subr.bf16.mxu0 %v1003
    %1439 = vmatpush1.bf16.msra.mxu0 %v1002
    %1440 = vmatprep.subr.bf16.mxu0 %v1033
    %1441 = vmatpush2.bf16.msra.mxu0 %v1032
    %1442 = vmatprep.subr.bf16.mxu0 %v1031
    %1443 = vmatpush2.bf16.msra.mxu0 %v1030
    %1444 = vmatprep.subr.bf16.mxu0 %v1029
    %1445 = vmatpush2.bf16.msra.mxu0 %v1028
    %1446 = vmatprep.subr.bf16.mxu0 %v1027
    %1447 = vmatpush2.bf16.msra.mxu0 %v1026
    %1448 = vmatprep.subr.bf16.mxu0 %v1025
    %1449 = vmatpush2.bf16.msra.mxu0 %v1024
    %1450 = vmatprep.subr.bf16.mxu0 %v1023
    %1451 = vmatpush2.bf16.msra.mxu0 %v1022
    %1452 = vmatprep.subr.bf16.mxu0 %v1021
    %1453 = vmatpush2.bf16.msra.mxu0 %v1020
    %1454 = vmatprep.subr.bf16.mxu0 %v1019
    %1455 = vmatpush2.bf16.msra.mxu0 %v1018
    %1456 = vmatprep.mubr.bf16.mxu0 %v282
    %1457 = vmatmul.mubr.bf16.gmra.mxu0 %v268
    %v1458 = vpop.f32.mrf.mxu0
    %v1459 = vadd.f32 %v1418, %v1458
    %v1460 = vpop.f32.mrf.mxu0
    %v1461 = vadd.f32 %v1420, %v1460
    %v1462 = vpop.f32.mrf.mxu0
    %v1463 = vpop.f32.mrf.mxu0
    %1464 = vdwg.mxu0
    %1465 = vmatprep.subr.bf16.mxu0 %v1049
    %1466 = vmatpush1.bf16.msra.mxu0 %v1048
    %1467 = vmatprep.subr.bf16.mxu0 %v1047
    %1468 = vmatpush1.bf16.msra.mxu0 %v1046
    %1469 = vmatprep.subr.bf16.mxu0 %v1045
    %1470 = vmatpush1.bf16.msra.mxu0 %v1044
    %1471 = vmatprep.subr.bf16.mxu0 %v1043
    %1472 = vmatpush1.bf16.msra.mxu0 %v1042
    %1473 = vmatprep.subr.bf16.mxu0 %v1041
    %1474 = vmatpush1.bf16.msra.mxu0 %v1040
    %1475 = vmatprep.subr.bf16.mxu0 %v1039
    %1476 = vmatpush1.bf16.msra.mxu0 %v1038
    %1477 = vmatprep.subr.bf16.mxu0 %v1037
    %1478 = vmatpush1.bf16.msra.mxu0 %v1036
    %1479 = vmatprep.subr.bf16.mxu0 %v1035
    %1480 = vmatpush1.bf16.msra.mxu0 %v1034
    %1481 = vmatprep.subr.bf16.mxu0 %v1065
    %1482 = vmatpush2.bf16.msra.mxu0 %v1064
    %1483 = vmatprep.subr.bf16.mxu0 %v1063
    %1484 = vmatpush2.bf16.msra.mxu0 %v1062
    %1485 = vmatprep.subr.bf16.mxu0 %v1061
    %1486 = vmatpush2.bf16.msra.mxu0 %v1060
    %1487 = vmatprep.subr.bf16.mxu0 %v1059
    %1488 = vmatpush2.bf16.msra.mxu0 %v1058
    %1489 = vmatprep.subr.bf16.mxu0 %v1057
    %1490 = vmatpush2.bf16.msra.mxu0 %v1056
    %1491 = vmatprep.subr.bf16.mxu0 %v1055
    %1492 = vmatpush2.bf16.msra.mxu0 %v1054
    %1493 = vmatprep.subr.bf16.mxu0 %v1053
    %1494 = vmatpush2.bf16.msra.mxu0 %v1052
    %1495 = vmatprep.subr.bf16.mxu0 %v1051
    %1496 = vmatpush2.bf16.msra.mxu0 %v1050
    %1497 = vmatprep.mubr.bf16.mxu0 %v286
    %1498 = vmatmul.mubr.bf16.gmra.mxu0 %v284
    %v1499 = vpop.f32.mrf.mxu0
    %v1500 = vadd.f32 %v1459, %v1499
    %v1501 = vpop.f32.mrf.mxu0
    %v1502 = vadd.f32 %v1461, %v1501
    %v1503 = vpop.f32.mrf.mxu0
    %v1504 = vpop.f32.mrf.mxu0
    %1505 = vdwg.mxu0
    %1506 = vmatprep.subr.bf16.mxu0 %v1081
    %1507 = vmatpush1.bf16.msra.mxu0 %v1080
    %1508 = vmatprep.subr.bf16.mxu0 %v1079
    %1509 = vmatpush1.bf16.msra.mxu0 %v1078
    %1510 = vmatprep.subr.bf16.mxu0 %v1077
    %1511 = vmatpush1.bf16.msra.mxu0 %v1076
    %1512 = vmatprep.subr.bf16.mxu0 %v1075
    %1513 = vmatpush1.bf16.msra.mxu0 %v1074
    %1514 = vmatprep.subr.bf16.mxu0 %v1073
    %1515 = vmatpush1.bf16.msra.mxu0 %v1072
    %1516 = vmatprep.subr.bf16.mxu0 %v1071
    %1517 = vmatpush1.bf16.msra.mxu0 %v1070
    %1518 = vmatprep.subr.bf16.mxu0 %v1069
    %1519 = vmatpush1.bf16.msra.mxu0 %v1068
    %1520 = vmatprep.subr.bf16.mxu0 %v1067
    %1521 = vmatpush1.bf16.msra.mxu0 %v1066
    %1522 = vmatprep.subr.bf16.mxu0 %v1097
    %1523 = vmatpush2.bf16.msra.mxu0 %v1096
    %1524 = vmatprep.subr.bf16.mxu0 %v1095
    %1525 = vmatpush2.bf16.msra.mxu0 %v1094
    %1526 = vmatprep.subr.bf16.mxu0 %v1093
    %1527 = vmatpush2.bf16.msra.mxu0 %v1092
    %1528 = vmatprep.subr.bf16.mxu0 %v1091
    %1529 = vmatpush2.bf16.msra.mxu0 %v1090
    %1530 = vmatprep.subr.bf16.mxu0 %v1089
    %1531 = vmatpush2.bf16.msra.mxu0 %v1088
    %1532 = vmatprep.subr.bf16.mxu0 %v1087
    %1533 = vmatpush2.bf16.msra.mxu0 %v1086
    %1534 = vmatprep.subr.bf16.mxu0 %v1085
    %1535 = vmatpush2.bf16.msra.mxu0 %v1084
    %1536 = vmatprep.subr.bf16.mxu0 %v1083
    %1537 = vmatpush2.bf16.msra.mxu0 %v1082
    %1538 = vmatprep.mubr.bf16.mxu0 %v323
    %1539 = vmatmul.mubr.bf16.gmra.mxu0 %v309
    %v1540 = vpop.f32.mrf.mxu0
    %v1541 = vadd.f32 %v1500, %v1540
    %v1542 = vpop.f32.mrf.mxu0
    %v1543 = vadd.f32 %v1502, %v1542
    %v1544 = vpop.f32.mrf.mxu0
    %v1545 = vpop.f32.mrf.mxu0
    %1546 = vdwg.mxu0
    %1547 = vmatprep.subr.bf16.mxu0 %v1113
    %1548 = vmatpush1.bf16.msra.mxu0 %v1112
    %1549 = vmatprep.subr.bf16.mxu0 %v1111
    %1550 = vmatpush1.bf16.msra.mxu0 %v1110
    %1551 = vmatprep.subr.bf16.mxu0 %v1109
    %1552 = vmatpush1.bf16.msra.mxu0 %v1108
    %1553 = vmatprep.subr.bf16.mxu0 %v1107
    %1554 = vmatpush1.bf16.msra.mxu0 %v1106
    %1555 = vmatprep.subr.bf16.mxu0 %v1105
    %1556 = vmatpush1.bf16.msra.mxu0 %v1104
    %1557 = vmatprep.subr.bf16.mxu0 %v1103
    %1558 = vmatpush1.bf16.msra.mxu0 %v1102
    %1559 = vmatprep.subr.bf16.mxu0 %v1101
    %1560 = vmatpush1.bf16.msra.mxu0 %v1100
    %1561 = vmatprep.subr.bf16.mxu0 %v1099
    %1562 = vmatpush1.bf16.msra.mxu0 %v1098
    %1563 = vmatprep.subr.bf16.mxu0 %v1129
    %1564 = vmatpush2.bf16.msra.mxu0 %v1128
    %1565 = vmatprep.subr.bf16.mxu0 %v1127
    %1566 = vmatpush2.bf16.msra.mxu0 %v1126
    %1567 = vmatprep.subr.bf16.mxu0 %v1125
    %1568 = vmatpush2.bf16.msra.mxu0 %v1124
    %1569 = vmatprep.subr.bf16.mxu0 %v1123
    %1570 = vmatpush2.bf16.msra.mxu0 %v1122
    %1571 = vmatprep.subr.bf16.mxu0 %v1121
    %1572 = vmatpush2.bf16.msra.mxu0 %v1120
    %1573 = vmatprep.subr.bf16.mxu0 %v1119
    %1574 = vmatpush2.bf16.msra.mxu0 %v1118
    %1575 = vmatprep.subr.bf16.mxu0 %v1117
    %1576 = vmatpush2.bf16.msra.mxu0 %v1116
    %1577 = vmatprep.subr.bf16.mxu0 %v1115
    %1578 = vmatpush2.bf16.msra.mxu0 %v1114
    %1579 = vmatprep.mubr.bf16.mxu0 %v325
    %1580 = vmatmul.mubr.bf16.gmra.mxu0 %v324
    %v1581 = vpop.f32.mrf.mxu0
    %v1582 = vadd.f32 %v1541, %v1581
    %v1583 = vpop.f32.mrf.mxu0
    %v1584 = vadd.f32 %v1543, %v1583
    %v1585 = vpop.f32.mrf.mxu0
    %v1586 = vpop.f32.mrf.mxu0
    %1587 = vdwg.mxu0
    %1588 = vmatprep.subr.bf16.mxu0 0
    %1589 = vmatpush1.bf16.msra.mxu0 0
    %1590 = vmatprep.subr.bf16.mxu0 0
    %1591 = vmatpush1.bf16.msra.mxu0 0
    %1592 = vmatprep.subr.bf16.mxu0 0
    %1593 = vmatpush1.bf16.msra.mxu0 0
    %1594 = vmatprep.subr.bf16.mxu0 0
    %1595 = vmatpush1.bf16.msra.mxu0 0
    %1596 = vmatprep.subr.bf16.mxu0 %v1137
    %1597 = vmatpush1.bf16.msra.mxu0 %v1136
    %1598 = vmatprep.subr.bf16.mxu0 %v1135
    %1599 = vmatpush1.bf16.msra.mxu0 %v1134
    %1600 = vmatprep.subr.bf16.mxu0 %v1133
    %1601 = vmatpush1.bf16.msra.mxu0 %v1132
    %1602 = vmatprep.subr.bf16.mxu0 %v1131
    %1603 = vmatpush1.bf16.msra.mxu0 %v1130
    %1604 = vmatprep.subr.bf16.mxu0 0
    %1605 = vmatpush2.bf16.msra.mxu0 0
    %1606 = vmatprep.subr.bf16.mxu0 0
    %1607 = vmatpush2.bf16.msra.mxu0 0
    %1608 = vmatprep.subr.bf16.mxu0 0
    %1609 = vmatpush2.bf16.msra.mxu0 0
    %1610 = vmatprep.subr.bf16.mxu0 0
    %1611 = vmatpush2.bf16.msra.mxu0 0
    %1612 = vmatprep.subr.bf16.mxu0 0
    %1613 = vmatpush2.bf16.msra.mxu0 0
    %1614 = vmatprep.subr.bf16.mxu0 0
    %1615 = vmatpush2.bf16.msra.mxu0 0
    %1616 = vmatprep.subr.bf16.mxu0 0
    %1617 = vmatpush2.bf16.msra.mxu0 0
    %1618 = vmatprep.subr.bf16.mxu0 0
    %1619 = vmatpush2.bf16.msra.mxu0 0
    %1620 = vmatprep.mubr.bf16.mxu0 0
    %1621 = vmatmul.mubr.bf16.gmra.mxu0 %v1340
    %v1622 = vpop.f32.mrf.mxu0
    %v1623 = vadd.f32 %v1582, %v1622
    %v1624 = vpop.f32.mrf.mxu0
    %v1625 = vadd.f32 %v1584, %v1624
    %v1626 = vpop.f32.mrf.mxu0
    %v1627 = vpop.f32.mrf.mxu0
    %1628 = vdwg.mxu0
    %v1629 = vmax.f32 %v1623, 0.0
    %v1630 = vmax.f32 %v1625, 0.0
    %v1631 = vld [vmem:[%s3] sm:$0xff]
    %v1632 = vld [vmem:[%s3 + $0x8] sm:$0xff]
    %v1633 = vld [vmem:[%s3 + $0x10] sm:$0xff]
    %v1634 = vld [vmem:[%s3 + $0x18] sm:$0xff]
    %v1635 = vld [vmem:[%s3 + $0x20] sm:$0xff]
    %v1636 = vld [vmem:[%s3 + $0x28] sm:$0xff]
    %v1637 = vld [vmem:[%s3 + $0x30] sm:$0xff]
    %v1638 = vld [vmem:[%s3 + $0x38] sm:$0xff]
    %v1639 = vld [vmem:[%s3 + $0x40] sm:$0xff]
    %v1640 = vld [vmem:[%s3 + $0x48] sm:$0xff]
    %v1641 = vld [vmem:[%s3 + $0x50] sm:$0xff]
    %v1642 = vld [vmem:[%s3 + $0x58] sm:$0xff]
    %v1643 = vld [vmem:[%s3 + $0x60] sm:$0xff]
    %v1644 = vld [vmem:[%s3 + $0x68] sm:$0xff]
    %v1645 = vld [vmem:[%s3 + $0x70] sm:$0xff]
    %v1646 = vld [vmem:[%s3 + $0x78] sm:$0xff]
    %v1647 = vld [vmem:[%s3 + $0x80] sm:$0xff]
    %v1648 = vld [vmem:[%s3 + $0x88] sm:$0xff]
    %v1649 = vld [vmem:[%s3 + $0x90] sm:$0xff]
    %v1650 = vld [vmem:[%s3 + $0x98] sm:$0xff]
    %v1651 = vld [vmem:[%s3 + $0xa0] sm:$0xff]
    %v1652 = vld [vmem:[%s3 + $0xa8] sm:$0xff]
    %v1653 = vld [vmem:[%s3 + $0xb0] sm:$0xff]
    %v1654 = vld [vmem:[%s3 + $0xb8] sm:$0xff]
    %v1655 = vld [vmem:[%s3 + $0xc0] sm:$0xff]
    %v1656 = vld [vmem:[%s3 + $0xc8] sm:$0xff]
    %v1657 = vld [vmem:[%s3 + $0xd0] sm:$0xff]
    %v1658 = vld [vmem:[%s3 + $0xd8] sm:$0xff]
    %v1659 = vld [vmem:[%s3 + $0xe0] sm:$0xff]
    %v1660 = vld [vmem:[%s3 + $0xe8] sm:$0xff]
    %v1661 = vld [vmem:[%s3 + $0xf0] sm:$0xff]
    %v1662 = vld [vmem:[%s3 + $0xf8] sm:$0xff]
    %v1663 = vld [vmem:[%s4] sm:$0x1]
    %v1665 = vlaneseq
    %v1666 = vshrl.u32 %v1665, 7
    %v1667 = vsub.s32 0, %v1666
    %v1668 = vrot.slane %v1663, %v1667
    %1670 = vmatprep.subr.mxu0 0.0
    %1671 = vmatpush1.msra.mxu0 %v1646
    %1672 = vmatprep.subr.mxu0 0.0
    %1673 = vmatpush1.msra.mxu0 %v1645
    %1674 = vmatprep.subr.mxu0 0.0
    %1675 = vmatpush1.msra.mxu0 %v1644
    %1676 = vmatprep.subr.mxu0 0.0
    %1677 = vmatpush1.msra.mxu0 %v1643
    %1678 = vmatprep.subr.mxu0 0.0
    %1679 = vmatpush1.msra.mxu0 %v1642
    %1680 = vmatprep.subr.mxu0 0.0
    %1681 = vmatpush1.msra.mxu0 %v1641
    %1682 = vmatprep.subr.mxu0 0.0
    %1683 = vmatpush1.msra.mxu0 %v1640
    %1684 = vmatprep.subr.mxu0 0.0
    %1685 = vmatpush1.msra.mxu0 %v1639
    %1686 = vmatprep.subr.mxu0 0.0
    %1687 = vmatpush1.msra.mxu0 %v1638
    %1688 = vmatprep.subr.mxu0 0.0
    %1689 = vmatpush1.msra.mxu0 %v1637
    %1690 = vmatprep.subr.mxu0 0.0
    %1691 = vmatpush1.msra.mxu0 %v1636
    %1692 = vmatprep.subr.mxu0 0.0
    %1693 = vmatpush1.msra.mxu0 %v1635
    %1694 = vmatprep.subr.mxu0 0.0
    %1695 = vmatpush1.msra.mxu0 %v1634
    %1696 = vmatprep.subr.mxu0 0.0
    %1697 = vmatpush1.msra.mxu0 %v1633
    %1698 = vmatprep.subr.mxu0 0.0
    %1699 = vmatpush1.msra.mxu0 %v1632
    %1700 = vmatprep.subr.mxu0 0.0
    %1701 = vmatpush1.msra.mxu0 %v1631
    %1702 = vmatprep.subr.mxu0 0.0
    %1703 = vmatpush2.msra.mxu0 %v1662
    %1704 = vmatprep.subr.mxu0 0.0
    %1705 = vmatpush2.msra.mxu0 %v1661
    %1706 = vmatprep.subr.mxu0 0.0
    %1707 = vmatpush2.msra.mxu0 %v1660
    %1708 = vmatprep.subr.mxu0 0.0
    %1709 = vmatpush2.msra.mxu0 %v1659
    %1710 = vmatprep.subr.mxu0 0.0
    %1711 = vmatpush2.msra.mxu0 %v1658
    %1712 = vmatprep.subr.mxu0 0.0
    %1713 = vmatpush2.msra.mxu0 %v1657
    %1714 = vmatprep.subr.mxu0 0.0
    %1715 = vmatpush2.msra.mxu0 %v1656
    %1716 = vmatprep.subr.mxu0 0.0
    %1717 = vmatpush2.msra.mxu0 %v1655
    %1718 = vmatprep.subr.mxu0 0.0
    %1719 = vmatpush2.msra.mxu0 %v1654
    %1720 = vmatprep.subr.mxu0 0.0
    %1721 = vmatpush2.msra.mxu0 %v1653
    %1722 = vmatprep.subr.mxu0 0.0
    %1723 = vmatpush2.msra.mxu0 %v1652
    %1724 = vmatprep.subr.mxu0 0.0
    %1725 = vmatpush2.msra.mxu0 %v1651
    %1726 = vmatprep.subr.mxu0 0.0
    %1727 = vmatpush2.msra.mxu0 %v1650
    %1728 = vmatprep.subr.mxu0 0.0
    %1729 = vmatpush2.msra.mxu0 %v1649
    %1730 = vmatprep.subr.mxu0 0.0
    %1731 = vmatpush2.msra.mxu0 %v1648
    %1732 = vmatprep.subr.mxu0 0.0
    %1733 = vmatpush2.msra.mxu0 %v1647
    %1734 = vmatprep.mubr.f32.mxu0 %v1630
    %1735 = vmatmul.mubr.f32.gmra.mxu0 %v1629
    %v1736 = vpop.f32.mrf.mxu0
    %v1737 = vadd.f32 %v1668, %v1736
    %v1738 = vpop.f32.mrf.mxu0
    %1739 = vdwg.mxu0
    %vm1740 = vcmask 33792
    %1741 = vst.msk [vmem:[#allocation2] sm:$0x3] %vm1740, %v1737
    // Predicated region
    $region22: #{deep_network_forward.7} parent=1 // pred_check
      _
    $region23: #{deep_network_forward.7} parent=1 // pred_check_branch
      %1743 = sbr.rel (0) target = $region25
    $region24: #{deep_network_forward.7} parent=1 // pred_region
      %s1745 = ssub.s32 32, 32
      %1746 = vsyncadd [#allocation3], %s1745
      %s1748 = sshll.u32 [#allocation2], 4
      %s1749 = int_to_ptr.vmem [resolvable:$true] %s1748
      %1751 = dma.vmem_to_hbm [thread:$0]  %s1749, 32, %s5, [#allocation3]
    $region25: #{deep_network_forward.7} parent=1 // pred_fallthru
      _
    // Predicated region
    $region26: #{deep_network_forward.7} parent=1 // pred_check
      _
    $region27: #{deep_network_forward.7} parent=1 // pred_check_branch
      %1753 = sbr.rel (0) target = $region29
    $region28: #{deep_network_forward.7} parent=1 // pred_region
      %1754 = dma.done [#allocation3], 32
    $region29: #{deep_network_forward.7} parent=1 // pred_fallthru
      _
    %1755 = vsyncpa [#allocation3], 1

</llo_original>
